<compile_context>
chip_gen: v5e
topology: v5e:2x2
jax: 0.10.0
libtpu: 0.0.40
codegen_flags: <defaults>
</compile_context>

<pallas_src>
import functools

import jax
import jax.numpy as jnp
from jax.experimental import pallas as pl
from jax.experimental.pallas import tpu as pltpu


# ----------------------------- fused Pallas kernel ---------------------------------

def decoder_stack_kernel(
    x0_ref, src_ref, bias_self_ref, bias_xt_ref,
    ws_ref, wc_ref, w1_ref, w2_ref, vecs_ref, b1_ref,
    out_ref, x_res,
    *, heads: int, d_k: int, eps: float,
):
    l = pl.program_id(0)                       # layer index (grid axis, sequential)
    B, S_t, D = x0_ref.shape
    S_s = src_ref.shape[1]
    d_ff = w1_ref.shape[2]
    H = heads
    bf16, f32 = jnp.bfloat16, jnp.float32
    scale = jnp.float32(1.0 / (d_k ** 0.5))
    epsf = jnp.float32(eps)

    # Layer 0: load embedded+PE target into the resident activation scratch.
    @pl.when(l == 0)
    def _():
        x_res[...] = x0_ref[...]

    x = x_res[...]                             # (B, S_t, D) f32, resident across layers
    src = src_ref[...]                         # (B, S_s, D) f32

    # Packed D-wide vectors: [bo_self, bo_cross, b2, ln1_g, ln1_b, ln2_g, ln2_b, ln3_g, ln3_b]
    vecs = vecs_ref[0]                         # (9, D) f32
    bo_s, bo_c, b2 = vecs[0:1], vecs[1:2], vecs[2:3]
    ln1_g, ln1_b = vecs[3:4], vecs[4:5]
    ln2_g, ln2_b = vecs[5:6], vecs[6:7]
    ln3_g, ln3_b = vecs[7:8], vecs[8:9]
    b1 = b1_ref[0]                             # (1, d_ff) f32

    w_self = ws_ref[0]                         # (4H, d_k, D) bf16: [q|k|v|o] head rows
    w_cross = wc_ref[0]                        # (4H, d_k, D) bf16

    # --- helpers: only leading-dim broadcasts/reshapes (minor (sublane,lane) dims untouched) ---
    def rep_act(a, n):                         # (B, S, X) -> (B*n, S, X), b-major
        Bq, S, X = a.shape
        return jnp.broadcast_to(a[:, None], (Bq, n, S, X)).reshape(Bq * n, S, X)

    def rep_w(w):                              # (R, d_k, D) -> (B*R, d_k, D), b-major
        R, A, C = w.shape
        return jnp.broadcast_to(w[None], (B, R, A, C)).reshape(B * R, A, C)

    def layer_norm(v, g, b):                   # v: (B, S, D) f32
        mu = jnp.mean(v, axis=-1, keepdims=True)
        d = v - mu
        var = jnp.mean(d * d, axis=-1, keepdims=True)
        return d * jax.lax.rsqrt(var + epsf) * g[None] + b[None]

    def mha(q_in, kv_in, bias, w_slab, bo, fuse_qkv):
        # q_in: (B, Sq, D), kv_in: (B, Sk, D), bias: (B, Sq, Sk) additive (0 / -1e30)
        Sq, Sk = q_in.shape[1], kv_in.shape[1]
        if fuse_qkv:
            # one batched einsum computes Q, K and V for all heads at once
            xr = rep_act(q_in.astype(bf16), 3 * H)                       # (B*3H, Sq, D)
            qkv = jnp.einsum('nsd,nfd->nsf', xr, rep_w(w_slab[0:3 * H]),
                             preferred_element_type=f32)                 # (B*3H, Sq, d_k)
            qkv = qkv.reshape(B, 3, H, Sq, d_k)
            q = qkv[:, 0].reshape(B * H, Sq, d_k)
            k = qkv[:, 1].reshape(B * H, Sk, d_k)
            v = qkv[:, 2].reshape(B * H, Sk, d_k)
        else:
            qr = rep_act(q_in.astype(bf16), H)                           # (B*H, Sq, D)
            q = jnp.einsum('nsd,nfd->nsf', qr, rep_w(w_slab[0:H]),
                           preferred_element_type=f32)                   # (B*H, Sq, d_k)
            kvr = rep_act(kv_in.astype(bf16), 2 * H)                     # (B*2H, Sk, D)
            kv = jnp.einsum('nsd,nfd->nsf', kvr, rep_w(w_slab[H:3 * H]),
                            preferred_element_type=f32)
            kv = kv.reshape(B, 2, H, Sk, d_k)
            k = kv[:, 0].reshape(B * H, Sk, d_k)
            v = kv[:, 1].reshape(B * H, Sk, d_k)

        # scores, additive bias, softmax (f32 math; (B*H)-batched einsums)
        s = jnp.einsum('nqd,nkd->nqk', q.astype(bf16), k.astype(bf16),
                       preferred_element_type=f32)                       # (B*H, Sq, Sk)
        s = s * scale + jnp.broadcast_to(bias[:, None], (B, H, Sq, Sk)).reshape(B * H, Sq, Sk)
        s = s - jnp.max(s, axis=-1, keepdims=True)
        p = jnp.exp(s)
        p = p * pl.reciprocal(jnp.sum(p, axis=-1, keepdims=True), approx=True)

        o = jnp.einsum('nqk,nkd->nqd', p.astype(bf16), v.astype(bf16),
                       preferred_element_type=f32)                       # (B*H, Sq, d_k)
        # per-head output projection, then sum over heads (slab adds, no lane concat)
        proj = jnp.einsum('nqf,nfd->nqd', o.astype(bf16), rep_w(w_slab[3 * H:4 * H]),
                          preferred_element_type=f32)                    # (B*H, Sq, D)
        proj = proj.reshape(B, H, Sq, D)
        head_sum = proj[:, 0]
        for h in range(1, H):
            head_sum = head_sum + proj[:, h]
        return head_sum + bo[None]                                       # (B, Sq, D)

    def ffn(v):
        w1 = w1_ref[0]                                                   # (D, d_ff) bf16
        w2 = w2_ref[0]                                                   # (d_ff, D) bf16
        h = jnp.einsum('bsd,bdf->bsf', v.astype(bf16),
                       jnp.broadcast_to(w1[None], (B, D, d_ff)),
                       preferred_element_type=f32)
        h = jnp.maximum(h + b1[None], 0.0)
        return jnp.einsum('bsf,bfd->bsd', h.astype(bf16),
                          jnp.broadcast_to(w2[None], (B, d_ff, D)),
                          preferred_element_type=f32) + b2[None]

    # ---- one decoder layer (dropout == identity in eval mode) ----
    x = layer_norm(x + mha(x, x, bias_self_ref[...], w_self, bo_s, True), ln1_g, ln1_b)
    x = layer_norm(x + mha(x, src, bias_xt_ref[...], w_cross, bo_c, False), ln2_g, ln2_b)
    x = layer_norm(x + ffn(x), ln3_g, ln3_b)

    x_res[...] = x          # stays resident in VMEM for the next layer
    out_ref[...] = x        # constant out index_map -> written back to HBM once at the end


def fused_decoder_stack(x, src, bias_self, bias_xt, params, *, heads, eps):
    """Run all decoder layers in one pallas_call. x:(B,S_t,D) f32, biases additive f32."""
    B, S_t, D = x.shape
    S_s = src.shape[1]
    L = params["attn_w_self"].shape[0]
    d_k = params["attn_w_self"].shape[2]
    d_ff = params["w1"].shape[2]

    kern = functools.partial(decoder_stack_kernel, heads=heads, d_k=d_k, eps=eps)

    return pl.pallas_call(
        kern,
        out_shape=jax.ShapeDtypeStruct((B, S_t, D), jnp.float32),
        grid=(L,),
        in_specs=[
            pl.BlockSpec((B, S_t, D), lambda l: (0, 0, 0)),          # x0 (fetched once)
            pl.BlockSpec((B, S_s, D), lambda l: (0, 0, 0)),          # encoder memory
            pl.BlockSpec((B, S_t, S_t), lambda l: (0, 0, 0)),        # self-attn additive bias
            pl.BlockSpec((B, S_t, S_s), lambda l: (0, 0, 0)),        # cross-attn additive bias
            pl.BlockSpec((1, 4 * heads, d_k, D), lambda l: (l, 0, 0, 0)),  # self-attn weights
            pl.BlockSpec((1, 4 * heads, d_k, D), lambda l: (l, 0, 0, 0)),  # cross-attn weights
            pl.BlockSpec((1, D, d_ff), lambda l: (l, 0, 0)),         # FFN w1
            pl.BlockSpec((1, d_ff, D), lambda l: (l, 0, 0)),         # FFN w2
            pl.BlockSpec((1, 9, D), lambda l: (l, 0, 0)),            # packed D-wide vectors
            pl.BlockSpec((1, 1, d_ff), lambda l: (l, 0, 0)),         # FFN b1
        ],
        out_specs=pl.BlockSpec((B, S_t, D), lambda l: (0, 0, 0)),
        scratch_shapes=[pltpu.VMEM((B, S_t, D), jnp.float32)],       # resident activation
        compiler_params=pltpu.CompilerParams(
            dimension_semantics=("arbitrary",)),                     # layers are sequential
    )(x, src, bias_self, bias_xt,
      params["attn_w_self"], params["attn_w_cross"],
      params["w1"], params["w2"], params["vecs"], params["b1"])


# ----------------------------- plain-JAX glue ---------------------------------

def sinusoidal_positional_encoding(max_len, d_model):
    # PE[pos, i] = sin(pos / 10000^(2*(i//2)/d))  for even i, cos(...) for odd i
    pos = jnp.arange(max_len, dtype=jnp.float32)[:, None]
    i = jnp.arange(d_model)[None, :]
    exponent = (2 * (i // 2)).astype(jnp.float32) / d_model
    angle = pos / jnp.power(10000.0, exponent)
    return jnp.where(i % 2 == 0, jnp.sin(angle), jnp.cos(angle))


def init_decoder_params(key, vocab, max_len, pad_idx, d_model, n_layers, d_ff, heads):
    d_k = d_model // heads
    k_emb, k_s, k_c, k_w1, k_w2 = jax.random.split(key, 5)
    s = 0.05
    emb = jax.random.normal(k_emb, (vocab, d_model), jnp.float32) * 0.1
    emb = emb.at[pad_idx].set(0.0)                    # padding_idx -> zero embedding

    # attention weight slabs: rows [q heads | k heads | v heads | o heads], each (d_k, D), bf16
    attn_w_self = (jax.random.normal(k_s, (n_layers, 4 * heads, d_k, d_model), jnp.float32)
                   * s).astype(jnp.bfloat16)
    attn_w_cross = (jax.random.normal(k_c, (n_layers, 4 * heads, d_k, d_model), jnp.float32)
                    * s).astype(jnp.bfloat16)
    w1 = (jax.random.normal(k_w1, (n_layers, d_model, d_ff), jnp.float32) * s).astype(jnp.bfloat16)
    w2 = (jax.random.normal(k_w2, (n_layers, d_ff, d_model), jnp.float32) * s).astype(jnp.bfloat16)

    # packed D-wide vectors: [bo_self, bo_cross, b2, ln1_g, ln1_b, ln2_g, ln2_b, ln3_g, ln3_b]
    vecs = jnp.zeros((n_layers, 9, d_model), jnp.float32)
    vecs = vecs.at[:, 3].set(1.0).at[:, 5].set(1.0).at[:, 7].set(1.0)   # LN gammas = 1
    b1 = jnp.zeros((n_layers, 1, d_ff), jnp.float32)

    return {
        "embedding": emb,
        "pos_enc": sinusoidal_positional_encoding(max_len, d_model),
        "attn_w_self": attn_w_self, "attn_w_cross": attn_w_cross,
        "w1": w1, "w2": w2, "vecs": vecs, "b1": b1,
    }


def transformer_decoder(tgt_ids, src, mask_src_tgt, mask_self, params, *, heads, eps):
    # TODO(synk): embedding gather + positional-encoding add kept in plain JAX (glue).
    x = jnp.take(params["embedding"], tgt_ids, axis=0)               # (B, S_t, D)
    x = x + params["pos_enc"][: x.shape[1]][None, :, :]
    # convert boolean masks (True == masked out) to additive bias ONCE
    bias_self = jnp.where(mask_self, jnp.float32(-1e30), jnp.float32(0.0))
    bias_xt = jnp.where(mask_src_tgt, jnp.float32(-1e30), jnp.float32(0.0))
    return fused_decoder_stack(x, src.astype(jnp.float32), bias_self, bias_xt,
                               params, heads=heads, eps=eps)


# ----------------------------------- main --------------------------------------

if __name__ == "__main__":
    # module hyper-params (small)
    TGT_VOCAB, MAX_LEN, PAD_IDX = 50, 16, 0
    D_MODEL, N_LAYERS, D_FF, HEADS = 32, 2, 64, 4
    LN_EPS = 1e-5                                   # dropout is identity (eval mode)

    B, S_TGT, S_SRC = 2, 8, 10

    key = jax.random.PRNGKey(0)
    kp, kt, ks = jax.random.split(key, 3)

    params = init_decoder_params(kp, TGT_VOCAB, MAX_LEN, PAD_IDX,
                                 D_MODEL, N_LAYERS, D_FF, HEADS)

    # target token ids, with a couple of pad tokens at the end of each sequence
    tgt_ids = jax.random.randint(kt, (B, S_TGT), 1, TGT_VOCAB, dtype=jnp.int32)
    tgt_ids = tgt_ids.at[:, -2:].set(PAD_IDX)

    # encoder memory
    src = jax.random.normal(ks, (B, S_SRC, D_MODEL), jnp.float32)

    # self-attention mask: causal OR target-padding (True == masked out)
    causal = jnp.triu(jnp.ones((S_TGT, S_TGT), jnp.bool_), k=1)
    tgt_pad = (tgt_ids == PAD_IDX)                                   # (B, S_TGT)
    mask_self = jnp.logical_or(causal[None, :, :], tgt_pad[:, None, :])  # (B, S_t, S_t)

    # src-tgt mask: mask out the last source position (example source padding)
    mask_src_tgt = jnp.zeros((B, S_TGT, S_SRC), jnp.bool_).at[:, :, -1].set(True)

    out = transformer_decoder(tgt_ids, src, mask_src_tgt, mask_self, params,
                              heads=HEADS, eps=LN_EPS)
    out = jax.block_until_ready(out)
    assert out.shape == (B, S_TGT, D_MODEL)
    assert bool(jnp.all(jnp.isfinite(out)))
    print("KERNEL_OK")
</pallas_src>

<mosaic_0001>
module attributes {stable_mosaic.version = 11 : i64} {
  func.func @decoder_stack_kernel(%arg0: i32, %arg1: memref<2x8x32xf32, #tpu.memory_space<vmem>>, %arg2: memref<2x10x32xf32, #tpu.memory_space<vmem>>, %arg3: memref<2x8x8xf32, #tpu.memory_space<vmem>>, %arg4: memref<2x8x10xf32, #tpu.memory_space<vmem>>, %arg5: memref<1x16x8x32xbf16, #tpu.memory_space<vmem>>, %arg6: memref<1x16x8x32xbf16, #tpu.memory_space<vmem>>, %arg7: memref<1x32x64xbf16, #tpu.memory_space<vmem>>, %arg8: memref<1x64x32xbf16, #tpu.memory_space<vmem>>, %arg9: memref<1x9x32xf32, #tpu.memory_space<vmem>>, %arg10: memref<1x1x64xf32, #tpu.memory_space<vmem>>, %arg11: memref<2x8x32xf32, #tpu.memory_space<vmem>>, %arg12: memref<2x8x32xf32, #tpu.memory_space<vmem>>) attributes {dimension_semantics = [#tpu.dimension_semantics<arbitrary>], iteration_bounds = array<i64: 2>, scalar_prefetch = 0 : i64, scratch_operands = 1 : i64, tpu.core_type = #tpu.core_type<tc>, window_params = [{pipeline_mode = #tpu.pipeline_mode<synchronous>, transform_indices = @transform_0, window_bounds = array<i64: 2, 8, 32>}, {pipeline_mode = #tpu.pipeline_mode<synchronous>, transform_indices = @transform_1, window_bounds = array<i64: 2, 10, 32>}, {pipeline_mode = #tpu.pipeline_mode<synchronous>, transform_indices = @transform_2, window_bounds = array<i64: 2, 8, 8>}, {pipeline_mode = #tpu.pipeline_mode<synchronous>, transform_indices = @transform_3, window_bounds = array<i64: 2, 8, 10>}, {transform_indices = @transform_4, window_bounds = array<i64: 1, 16, 8, 32>}, {transform_indices = @transform_5, window_bounds = array<i64: 1, 16, 8, 32>}, {transform_indices = @transform_6, window_bounds = array<i64: 1, 32, 64>}, {transform_indices = @transform_7, window_bounds = array<i64: 1, 64, 32>}, {transform_indices = @transform_8, window_bounds = array<i64: 1, 9, 32>}, {transform_indices = @transform_9, window_bounds = array<i64: 1, 1, 64>}, {pipeline_mode = #tpu.pipeline_mode<synchronous>, transform_indices = @transform_10, window_bounds = array<i64: 2, 8, 32>}]} {
    %c0_i32 = arith.constant 0 : i32
    %0 = arith.cmpi eq, %arg0, %c0_i32 : i32
    %1 = arith.extui %0 : i1 to i32
    %c0_i32_0 = arith.constant 0 : i32
    %2 = arith.cmpi ne, %1, %c0_i32_0 : i32
    scf.if %2 {
      %c0_70 = arith.constant 0 : index
      %c0_71 = arith.constant 0 : index
      %c0_72 = arith.constant 0 : index
      %257 = vector.load %arg1[%c0_70, %c0_71, %c0_72] : memref<2x8x32xf32, #tpu.memory_space<vmem>>, vector<2x8x32xf32>
      %c0_73 = arith.constant 0 : index
      %c0_74 = arith.constant 0 : index
      %c0_75 = arith.constant 0 : index
      %258 = vector.load %arg12[%c0_73, %c0_74, %c0_75] : memref<2x8x32xf32, #tpu.memory_space<vmem>>, vector<2x8x32xf32>
      tpu.vector_store %arg12[%c0_73, %c0_74, %c0_75], %257 {strides = array<i32>} : memref<2x8x32xf32, #tpu.memory_space<vmem>>, vector<2x8x32xf32>,
    } else {
    }
    %c0 = arith.constant 0 : index
    %c0_1 = arith.constant 0 : index
    %c0_2 = arith.constant 0 : index
    %3 = vector.load %arg12[%c0, %c0_1, %c0_2] : memref<2x8x32xf32, #tpu.memory_space<vmem>>, vector<2x8x32xf32>
    %c0_3 = arith.constant 0 : index
    %c0_4 = arith.constant 0 : index
    %c0_5 = arith.constant 0 : index
    %4 = vector.load %arg2[%c0_3, %c0_4, %c0_5] : memref<2x10x32xf32, #tpu.memory_space<vmem>>, vector<2x10x32xf32>
    %c0_6 = arith.constant 0 : index
    %c0_7 = arith.constant 0 : index
    %c0_8 = arith.constant 0 : index
    %5 = vector.load %arg9[%c0_6, %c0_7, %c0_8] : memref<1x9x32xf32, #tpu.memory_space<vmem>>, vector<1x9x32xf32>
    %6 = vector.shape_cast %5 : vector<1x9x32xf32> to vector<9x32xf32>
    %7 = vector.extract_strided_slice %6 {offsets = [0, 0], sizes = [1, 32], strides = [1, 1]} : vector<9x32xf32> to vector<1x32xf32>
    %8 = vector.extract_strided_slice %6 {offsets = [1, 0], sizes = [1, 32], strides = [1, 1]} : vector<9x32xf32> to vector<1x32xf32>
    %9 = vector.extract_strided_slice %6 {offsets = [2, 0], sizes = [1, 32], strides = [1, 1]} : vector<9x32xf32> to vector<1x32xf32>
    %10 = vector.extract_strided_slice %6 {offsets = [3, 0], sizes = [1, 32], strides = [1, 1]} : vector<9x32xf32> to vector<1x32xf32>
    %11 = vector.extract_strided_slice %6 {offsets = [4, 0], sizes = [1, 32], strides = [1, 1]} : vector<9x32xf32> to vector<1x32xf32>
    %12 = vector.extract_strided_slice %6 {offsets = [5, 0], sizes = [1, 32], strides = [1, 1]} : vector<9x32xf32> to vector<1x32xf32>
    %13 = vector.extract_strided_slice %6 {offsets = [6, 0], sizes = [1, 32], strides = [1, 1]} : vector<9x32xf32> to vector<1x32xf32>
    %14 = vector.extract_strided_slice %6 {offsets = [7, 0], sizes = [1, 32], strides = [1, 1]} : vector<9x32xf32> to vector<1x32xf32>
    %15 = vector.extract_strided_slice %6 {offsets = [8, 0], sizes = [1, 32], strides = [1, 1]} : vector<9x32xf32> to vector<1x32xf32>
    %c0_9 = arith.constant 0 : index
    %c0_10 = arith.constant 0 : index
    %c0_11 = arith.constant 0 : index
    %16 = vector.load %arg10[%c0_9, %c0_10, %c0_11] : memref<1x1x64xf32, #tpu.memory_space<vmem>>, vector<1x1x64xf32>
    %17 = vector.shape_cast %16 : vector<1x1x64xf32> to vector<1x64xf32>
    %c0_12 = arith.constant 0 : index
    %c0_13 = arith.constant 0 : index
    %c0_14 = arith.constant 0 : index
    %c0_15 = arith.constant 0 : index
    %18 = vector.load %arg5[%c0_12, %c0_13, %c0_14, %c0_15] : memref<1x16x8x32xbf16, #tpu.memory_space<vmem>>, vector<1x16x8x32xbf16>
    %19 = vector.shape_cast %18 : vector<1x16x8x32xbf16> to vector<16x8x32xbf16>
    %c0_16 = arith.constant 0 : index
    %c0_17 = arith.constant 0 : index
    %c0_18 = arith.constant 0 : index
    %c0_19 = arith.constant 0 : index
    %20 = vector.load %arg6[%c0_16, %c0_17, %c0_18, %c0_19] : memref<1x16x8x32xbf16, #tpu.memory_space<vmem>>, vector<1x16x8x32xbf16>
    %21 = vector.shape_cast %20 : vector<1x16x8x32xbf16> to vector<16x8x32xbf16>
    %c0_20 = arith.constant 0 : index
    %c0_21 = arith.constant 0 : index
    %c0_22 = arith.constant 0 : index
    %22 = vector.load %arg3[%c0_20, %c0_21, %c0_22] : memref<2x8x8xf32, #tpu.memory_space<vmem>>, vector<2x8x8xf32>
    %23 = arith.truncf %3 : vector<2x8x32xf32> to vector<2x8x32xbf16>
    %24 = vector.shape_cast %23 : vector<2x8x32xbf16> to vector<2x1x8x32xbf16>
    %25 = vector.shape_cast %24 : vector<2x1x8x32xbf16> to vector<2x1x8x32xbf16>
    %26 = vector.broadcast %25 : vector<2x1x8x32xbf16> to vector<2x12x8x32xbf16>
    %27 = vector.shape_cast %26 : vector<2x12x8x32xbf16> to vector<24x8x32xbf16>
    %28 = vector.extract_strided_slice %19 {offsets = [0, 0, 0], sizes = [12, 8, 32], strides = [1, 1, 1]} : vector<16x8x32xbf16> to vector<12x8x32xbf16>
    %29 = vector.shape_cast %28 : vector<12x8x32xbf16> to vector<1x12x8x32xbf16>
    %30 = vector.shape_cast %29 : vector<1x12x8x32xbf16> to vector<1x12x8x32xbf16>
    %31 = vector.broadcast %30 : vector<1x12x8x32xbf16> to vector<2x12x8x32xbf16>
    %32 = vector.shape_cast %31 : vector<2x12x8x32xbf16> to vector<24x8x32xbf16>
    "tpu.trace_start"() <{level = 10 : i32, message = "nsd,nfd->nsf"}> : () -> ()
    %cst = arith.constant dense<0.000000e+00> : vector<24x8x8xf32>
    %33 = tpu.matmul %27, %32, %cst {dimension_numbers = #tpu.dot_dimension_numbers<[2], [2], [1], [1], [0, 0, 0, 1, 1, 1], [0], [0]>} : vector<24x8x32xbf16>, vector<24x8x32xbf16>, vector<24x8x8xf32> -> vector<24x8x8xf32>
    "tpu.trace_stop"() : () -> ()
    %34 = vector.shape_cast %33 : vector<24x8x8xf32> to vector<2x3x4x8x8xf32>
    %35 = vector.extract_strided_slice %34 {offsets = [0, 0, 0, 0, 0], sizes = [2, 1, 4, 8, 8], strides = [1, 1, 1, 1, 1]} : vector<2x3x4x8x8xf32> to vector<2x1x4x8x8xf32>
    %36 = vector.shape_cast %35 : vector<2x1x4x8x8xf32> to vector<2x4x8x8xf32>
    %37 = vector.shape_cast %36 : vector<2x4x8x8xf32> to vector<8x8x8xf32>
    %38 = vector.extract_strided_slice %34 {offsets = [0, 1, 0, 0, 0], sizes = [2, 1, 4, 8, 8], strides = [1, 1, 1, 1, 1]} : vector<2x3x4x8x8xf32> to vector<2x1x4x8x8xf32>
    %39 = vector.shape_cast %38 : vector<2x1x4x8x8xf32> to vector<2x4x8x8xf32>
    %40 = vector.shape_cast %39 : vector<2x4x8x8xf32> to vector<8x8x8xf32>
    %41 = vector.extract_strided_slice %34 {offsets = [0, 2, 0, 0, 0], sizes = [2, 1, 4, 8, 8], strides = [1, 1, 1, 1, 1]} : vector<2x3x4x8x8xf32> to vector<2x1x4x8x8xf32>
    %42 = vector.shape_cast %41 : vector<2x1x4x8x8xf32> to vector<2x4x8x8xf32>
    %43 = vector.shape_cast %42 : vector<2x4x8x8xf32> to vector<8x8x8xf32>
    %44 = arith.truncf %37 : vector<8x8x8xf32> to vector<8x8x8xbf16>
    %45 = arith.truncf %40 : vector<8x8x8xf32> to vector<8x8x8xbf16>
    "tpu.trace_start"() <{level = 10 : i32, message = "nqd,nkd->nqk"}> : () -> ()
    %cst_23 = arith.constant dense<0.000000e+00> : vector<8x8x8xf32>
    %46 = tpu.matmul %44, %45, %cst_23 {dimension_numbers = #tpu.dot_dimension_numbers<[2], [2], [1], [1], [0, 0, 0, 1, 1, 1], [0], [0]>} : vector<8x8x8xbf16>, vector<8x8x8xbf16>, vector<8x8x8xf32> -> vector<8x8x8xf32>
    "tpu.trace_stop"() : () -> ()
    %cst_24 = arith.constant 0.353553385 : f32
    %47 = vector.broadcast %cst_24 : f32 to vector<8x8x8xf32>
    %48 = arith.mulf %46, %47 : vector<8x8x8xf32>
    %49 = vector.shape_cast %22 : vector<2x8x8xf32> to vector<2x1x8x8xf32>
    %50 = vector.shape_cast %49 : vector<2x1x8x8xf32> to vector<2x1x8x8xf32>
    %51 = vector.broadcast %50 : vector<2x1x8x8xf32> to vector<2x4x8x8xf32>
    %52 = vector.shape_cast %51 : vector<2x4x8x8xf32> to vector<8x8x8xf32>
    %53 = arith.addf %48, %52 : vector<8x8x8xf32>
    %cst_25 = arith.constant dense<0xFF800000> : vector<8x8xf32>
    %54 = vector.multi_reduction <maximumf>, %53, %cst_25 [2] : vector<8x8x8xf32> to vector<8x8xf32>
    %55 = vector.shape_cast %54 : vector<8x8xf32> to vector<8x8x1xf32>
    %56 = vector.broadcast %55 : vector<8x8x1xf32> to vector<8x8x8xf32>
    %57 = arith.subf %53, %56 : vector<8x8x8xf32>
    %58 = math.exp %57 : vector<8x8x8xf32>
    %cst_26 = arith.constant dense<0.000000e+00> : vector<8x8xf32>
    %59 = vector.multi_reduction <add>, %58, %cst_26 [2] : vector<8x8x8xf32> to vector<8x8xf32>
    %60 = vector.shape_cast %59 : vector<8x8xf32> to vector<8x8x1xf32>
    %61 = tpu.reciprocal %60 {approx = true} : vector<8x8x1xf32> -> vector<8x8x1xf32>
    %62 = vector.broadcast %61 : vector<8x8x1xf32> to vector<8x8x8xf32>
    %63 = arith.mulf %58, %62 : vector<8x8x8xf32>
    %64 = arith.truncf %63 : vector<8x8x8xf32> to vector<8x8x8xbf16>
    %65 = arith.truncf %43 : vector<8x8x8xf32> to vector<8x8x8xbf16>
    "tpu.trace_start"() <{level = 10 : i32, message = "nqk,nkd->nqd"}> : () -> ()
    %cst_27 = arith.constant dense<0.000000e+00> : vector<8x8x8xf32>
    %66 = tpu.matmul %64, %65, %cst_27 {dimension_numbers = #tpu.dot_dimension_numbers<[2], [1], [1], [2], [0, 0, 0, 1, 1, 2], [0], [0]>} : vector<8x8x8xbf16>, vector<8x8x8xbf16>, vector<8x8x8xf32> -> vector<8x8x8xf32>
    "tpu.trace_stop"() : () -> ()
    %67 = arith.truncf %66 : vector<8x8x8xf32> to vector<8x8x8xbf16>
    %68 = vector.extract_strided_slice %19 {offsets = [12, 0, 0], sizes = [4, 8, 32], strides = [1, 1, 1]} : vector<16x8x32xbf16> to vector<4x8x32xbf16>
    %69 = vector.shape_cast %68 : vector<4x8x32xbf16> to vector<1x4x8x32xbf16>
    %70 = vector.shape_cast %69 : vector<1x4x8x32xbf16> to vector<1x4x8x32xbf16>
    %71 = vector.broadcast %70 : vector<1x4x8x32xbf16> to vector<2x4x8x32xbf16>
    %72 = vector.shape_cast %71 : vector<2x4x8x32xbf16> to vector<8x8x32xbf16>
    "tpu.trace_start"() <{level = 10 : i32, message = "nqf,nfd->nqd"}> : () -> ()
    %cst_28 = arith.constant dense<0.000000e+00> : vector<8x8x32xf32>
    %73 = tpu.matmul %67, %72, %cst_28 {dimension_numbers = #tpu.dot_dimension_numbers<[2], [1], [1], [2], [0, 0, 0, 1, 1, 2], [0], [0]>} : vector<8x8x8xbf16>, vector<8x8x32xbf16>, vector<8x8x32xf32> -> vector<8x8x32xf32>
    "tpu.trace_stop"() : () -> ()
    %74 = vector.shape_cast %73 : vector<8x8x32xf32> to vector<2x4x8x32xf32>
    %75 = vector.extract_strided_slice %74 {offsets = [0, 0, 0, 0], sizes = [2, 1, 8, 32], strides = [1, 1, 1, 1]} : vector<2x4x8x32xf32> to vector<2x1x8x32xf32>
    %76 = vector.shape_cast %75 : vector<2x1x8x32xf32> to vector<2x8x32xf32>
    %77 = vector.extract_strided_slice %74 {offsets = [0, 1, 0, 0], sizes = [2, 1, 8, 32], strides = [1, 1, 1, 1]} : vector<2x4x8x32xf32> to vector<2x1x8x32xf32>
    %78 = vector.shape_cast %77 : vector<2x1x8x32xf32> to vector<2x8x32xf32>
    %79 = arith.addf %76, %78 : vector<2x8x32xf32>
    %80 = vector.extract_strided_slice %74 {offsets = [0, 2, 0, 0], sizes = [2, 1, 8, 32], strides = [1, 1, 1, 1]} : vector<2x4x8x32xf32> to vector<2x1x8x32xf32>
    %81 = vector.shape_cast %80 : vector<2x1x8x32xf32> to vector<2x8x32xf32>
    %82 = arith.addf %79, %81 : vector<2x8x32xf32>
    %83 = vector.extract_strided_slice %74 {offsets = [0, 3, 0, 0], sizes = [2, 1, 8, 32], strides = [1, 1, 1, 1]} : vector<2x4x8x32xf32> to vector<2x1x8x32xf32>
    %84 = vector.shape_cast %83 : vector<2x1x8x32xf32> to vector<2x8x32xf32>
    %85 = arith.addf %82, %84 : vector<2x8x32xf32>
    %86 = vector.shape_cast %7 : vector<1x32xf32> to vector<1x1x32xf32>
    %87 = vector.broadcast %86 : vector<1x1x32xf32> to vector<2x8x32xf32>
    %88 = arith.addf %85, %87 : vector<2x8x32xf32>
    %89 = arith.addf %3, %88 : vector<2x8x32xf32>
    %cst_29 = arith.constant dense<0.000000e+00> : vector<2x8xf32>
    %90 = vector.multi_reduction <add>, %89, %cst_29 [2] : vector<2x8x32xf32> to vector<2x8xf32>
    %91 = vector.shape_cast %90 : vector<2x8xf32> to vector<2x8x1xf32>
    %cst_30 = arith.constant 3.200000e+01 : f32
    %92 = vector.broadcast %cst_30 : f32 to vector<2x8x1xf32>
    %93 = arith.divf %91, %92 : vector<2x8x1xf32>
    %94 = vector.broadcast %93 : vector<2x8x1xf32> to vector<2x8x32xf32>
    %95 = arith.subf %89, %94 : vector<2x8x32xf32>
    %96 = arith.mulf %95, %95 : vector<2x8x32xf32>
    %cst_31 = arith.constant dense<0.000000e+00> : vector<2x8xf32>
    %97 = vector.multi_reduction <add>, %96, %cst_31 [2] : vector<2x8x32xf32> to vector<2x8xf32>
    %98 = vector.shape_cast %97 : vector<2x8xf32> to vector<2x8x1xf32>
    %cst_32 = arith.constant 3.200000e+01 : f32
    %99 = vector.broadcast %cst_32 : f32 to vector<2x8x1xf32>
    %100 = arith.divf %98, %99 : vector<2x8x1xf32>
    %cst_33 = arith.constant 9.99999974E-6 : f32
    %101 = vector.broadcast %cst_33 : f32 to vector<2x8x1xf32>
    %102 = arith.addf %100, %101 : vector<2x8x1xf32>
    %103 = math.rsqrt %102 : vector<2x8x1xf32>
    %104 = vector.broadcast %103 : vector<2x8x1xf32> to vector<2x8x32xf32>
    %105 = arith.mulf %95, %104 : vector<2x8x32xf32>
    %106 = vector.shape_cast %10 : vector<1x32xf32> to vector<1x1x32xf32>
    %107 = vector.broadcast %106 : vector<1x1x32xf32> to vector<2x8x32xf32>
    %108 = arith.mulf %105, %107 : vector<2x8x32xf32>
    %109 = vector.shape_cast %11 : vector<1x32xf32> to vector<1x1x32xf32>
    %110 = vector.broadcast %109 : vector<1x1x32xf32> to vector<2x8x32xf32>
    %111 = arith.addf %108, %110 : vector<2x8x32xf32>
    %c0_34 = arith.constant 0 : index
    %c0_35 = arith.constant 0 : index
    %c0_36 = arith.constant 0 : index
    %112 = vector.load %arg4[%c0_34, %c0_35, %c0_36] : memref<2x8x10xf32, #tpu.memory_space<vmem>>, vector<2x8x10xf32>
    %113 = arith.truncf %111 : vector<2x8x32xf32> to vector<2x8x32xbf16>
    %114 = vector.shape_cast %113 : vector<2x8x32xbf16> to vector<2x1x8x32xbf16>
    %115 = vector.shape_cast %114 : vector<2x1x8x32xbf16> to vector<2x1x8x32xbf16>
    %116 = vector.broadcast %115 : vector<2x1x8x32xbf16> to vector<2x4x8x32xbf16>
    %117 = vector.shape_cast %116 : vector<2x4x8x32xbf16> to vector<8x8x32xbf16>
    %118 = vector.extract_strided_slice %21 {offsets = [0, 0, 0], sizes = [4, 8, 32], strides = [1, 1, 1]} : vector<16x8x32xbf16> to vector<4x8x32xbf16>
    %119 = vector.shape_cast %118 : vector<4x8x32xbf16> to vector<1x4x8x32xbf16>
    %120 = vector.shape_cast %119 : vector<1x4x8x32xbf16> to vector<1x4x8x32xbf16>
    %121 = vector.broadcast %120 : vector<1x4x8x32xbf16> to vector<2x4x8x32xbf16>
    %122 = vector.shape_cast %121 : vector<2x4x8x32xbf16> to vector<8x8x32xbf16>
    "tpu.trace_start"() <{level = 10 : i32, message = "nsd,nfd->nsf"}> : () -> ()
    %cst_37 = arith.constant dense<0.000000e+00> : vector<8x8x8xf32>
    %123 = tpu.matmul %117, %122, %cst_37 {dimension_numbers = #tpu.dot_dimension_numbers<[2], [2], [1], [1], [0, 0, 0, 1, 1, 1], [0], [0]>} : vector<8x8x32xbf16>, vector<8x8x32xbf16>, vector<8x8x8xf32> -> vector<8x8x8xf32>
    "tpu.trace_stop"() : () -> ()
    %124 = arith.truncf %4 : vector<2x10x32xf32> to vector<2x10x32xbf16>
    %125 = vector.shape_cast %124 : vector<2x10x32xbf16> to vector<2x1x10x32xbf16>
    %126 = vector.shape_cast %125 : vector<2x1x10x32xbf16> to vector<2x1x10x32xbf16>
    %127 = vector.broadcast %126 : vector<2x1x10x32xbf16> to vector<2x8x10x32xbf16>
    %128 = vector.shape_cast %127 : vector<2x8x10x32xbf16> to vector<16x10x32xbf16>
    %129 = vector.extract_strided_slice %21 {offsets = [4, 0, 0], sizes = [8, 8, 32], strides = [1, 1, 1]} : vector<16x8x32xbf16> to vector<8x8x32xbf16>
    %130 = vector.shape_cast %129 : vector<8x8x32xbf16> to vector<1x8x8x32xbf16>
    %131 = vector.shape_cast %130 : vector<1x8x8x32xbf16> to vector<1x8x8x32xbf16>
    %132 = vector.broadcast %131 : vector<1x8x8x32xbf16> to vector<2x8x8x32xbf16>
    %133 = vector.shape_cast %132 : vector<2x8x8x32xbf16> to vector<16x8x32xbf16>
    "tpu.trace_start"() <{level = 10 : i32, message = "nsd,nfd->nsf"}> : () -> ()
    %cst_38 = arith.constant dense<0.000000e+00> : vector<16x10x8xf32>
    %134 = tpu.matmul %128, %133, %cst_38 {dimension_numbers = #tpu.dot_dimension_numbers<[2], [2], [1], [1], [0, 0, 0, 1, 1, 1], [0], [0]>} : vector<16x10x32xbf16>, vector<16x8x32xbf16>, vector<16x10x8xf32> -> vector<16x10x8xf32>
    "tpu.trace_stop"() : () -> ()
    %135 = vector.shape_cast %134 : vector<16x10x8xf32> to vector<2x2x4x10x8xf32>
    %136 = vector.extract_strided_slice %135 {offsets = [0, 0, 0, 0, 0], sizes = [2, 1, 4, 10, 8], strides = [1, 1, 1, 1, 1]} : vector<2x2x4x10x8xf32> to vector<2x1x4x10x8xf32>
    %137 = vector.shape_cast %136 : vector<2x1x4x10x8xf32> to vector<2x4x10x8xf32>
    %138 = vector.shape_cast %137 : vector<2x4x10x8xf32> to vector<8x10x8xf32>
    %139 = vector.extract_strided_slice %135 {offsets = [0, 1, 0, 0, 0], sizes = [2, 1, 4, 10, 8], strides = [1, 1, 1, 1, 1]} : vector<2x2x4x10x8xf32> to vector<2x1x4x10x8xf32>
    %140 = vector.shape_cast %139 : vector<2x1x4x10x8xf32> to vector<2x4x10x8xf32>
    %141 = vector.shape_cast %140 : vector<2x4x10x8xf32> to vector<8x10x8xf32>
    %142 = arith.truncf %123 : vector<8x8x8xf32> to vector<8x8x8xbf16>
    %143 = arith.truncf %138 : vector<8x10x8xf32> to vector<8x10x8xbf16>
    "tpu.trace_start"() <{level = 10 : i32, message = "nqd,nkd->nqk"}> : () -> ()
    %cst_39 = arith.constant dense<0.000000e+00> : vector<8x8x10xf32>
    %144 = tpu.matmul %142, %143, %cst_39 {dimension_numbers = #tpu.dot_dimension_numbers<[2], [2], [1], [1], [0, 0, 0, 1, 1, 1], [0], [0]>} : vector<8x8x8xbf16>, vector<8x10x8xbf16>, vector<8x8x10xf32> -> vector<8x8x10xf32>
    "tpu.trace_stop"() : () -> ()
    %cst_40 = arith.constant 0.353553385 : f32
    %145 = vector.broadcast %cst_40 : f32 to vector<8x8x10xf32>
    %146 = arith.mulf %144, %145 : vector<8x8x10xf32>
    %147 = vector.shape_cast %112 : vector<2x8x10xf32> to vector<2x1x8x10xf32>
    %148 = vector.shape_cast %147 : vector<2x1x8x10xf32> to vector<2x1x8x10xf32>
    %149 = vector.broadcast %148 : vector<2x1x8x10xf32> to vector<2x4x8x10xf32>
    %150 = vector.shape_cast %149 : vector<2x4x8x10xf32> to vector<8x8x10xf32>
    %151 = arith.addf %146, %150 : vector<8x8x10xf32>
    %cst_41 = arith.constant dense<0xFF800000> : vector<8x8xf32>
    %152 = vector.multi_reduction <maximumf>, %151, %cst_41 [2] : vector<8x8x10xf32> to vector<8x8xf32>
    %153 = vector.shape_cast %152 : vector<8x8xf32> to vector<8x8x1xf32>
    %154 = vector.broadcast %153 : vector<8x8x1xf32> to vector<8x8x10xf32>
    %155 = arith.subf %151, %154 : vector<8x8x10xf32>
    %156 = math.exp %155 : vector<8x8x10xf32>
    %cst_42 = arith.constant dense<0.000000e+00> : vector<8x8xf32>
    %157 = vector.multi_reduction <add>, %156, %cst_42 [2] : vector<8x8x10xf32> to vector<8x8xf32>
    %158 = vector.shape_cast %157 : vector<8x8xf32> to vector<8x8x1xf32>
    %159 = tpu.reciprocal %158 {approx = true} : vector<8x8x1xf32> -> vector<8x8x1xf32>
    %160 = vector.broadcast %159 : vector<8x8x1xf32> to vector<8x8x10xf32>
    %161 = arith.mulf %156, %160 : vector<8x8x10xf32>
    %162 = arith.truncf %161 : vector<8x8x10xf32> to vector<8x8x10xbf16>
    %163 = arith.truncf %141 : vector<8x10x8xf32> to vector<8x10x8xbf16>
    "tpu.trace_start"() <{level = 10 : i32, message = "nqk,nkd->nqd"}> : () -> ()
    %cst_43 = arith.constant dense<0.000000e+00> : vector<8x8x8xf32>
    %164 = tpu.matmul %162, %163, %cst_43 {dimension_numbers = #tpu.dot_dimension_numbers<[2], [1], [1], [2], [0, 0, 0, 1, 1, 2], [0], [0]>} : vector<8x8x10xbf16>, vector<8x10x8xbf16>, vector<8x8x8xf32> -> vector<8x8x8xf32>
    "tpu.trace_stop"() : () -> ()
    %165 = arith.truncf %164 : vector<8x8x8xf32> to vector<8x8x8xbf16>
    %166 = vector.extract_strided_slice %21 {offsets = [12, 0, 0], sizes = [4, 8, 32], strides = [1, 1, 1]} : vector<16x8x32xbf16> to vector<4x8x32xbf16>
    %167 = vector.shape_cast %166 : vector<4x8x32xbf16> to vector<1x4x8x32xbf16>
    %168 = vector.shape_cast %167 : vector<1x4x8x32xbf16> to vector<1x4x8x32xbf16>
    %169 = vector.broadcast %168 : vector<1x4x8x32xbf16> to vector<2x4x8x32xbf16>
    %170 = vector.shape_cast %169 : vector<2x4x8x32xbf16> to vector<8x8x32xbf16>
    "tpu.trace_start"() <{level = 10 : i32, message = "nqf,nfd->nqd"}> : () -> ()
    %cst_44 = arith.constant dense<0.000000e+00> : vector<8x8x32xf32>
    %171 = tpu.matmul %165, %170, %cst_44 {dimension_numbers = #tpu.dot_dimension_numbers<[2], [1], [1], [2], [0, 0, 0, 1, 1, 2], [0], [0]>} : vector<8x8x8xbf16>, vector<8x8x32xbf16>, vector<8x8x32xf32> -> vector<8x8x32xf32>
    "tpu.trace_stop"() : () -> ()
    %172 = vector.shape_cast %171 : vector<8x8x32xf32> to vector<2x4x8x32xf32>
    %173 = vector.extract_strided_slice %172 {offsets = [0, 0, 0, 0], sizes = [2, 1, 8, 32], strides = [1, 1, 1, 1]} : vector<2x4x8x32xf32> to vector<2x1x8x32xf32>
    %174 = vector.shape_cast %173 : vector<2x1x8x32xf32> to vector<2x8x32xf32>
    %175 = vector.extract_strided_slice %172 {offsets = [0, 1, 0, 0], sizes = [2, 1, 8, 32], strides = [1, 1, 1, 1]} : vector<2x4x8x32xf32> to vector<2x1x8x32xf32>
    %176 = vector.shape_cast %175 : vector<2x1x8x32xf32> to vector<2x8x32xf32>
    %177 = arith.addf %174, %176 : vector<2x8x32xf32>
    %178 = vector.extract_strided_slice %172 {offsets = [0, 2, 0, 0], sizes = [2, 1, 8, 32], strides = [1, 1, 1, 1]} : vector<2x4x8x32xf32> to vector<2x1x8x32xf32>
    %179 = vector.shape_cast %178 : vector<2x1x8x32xf32> to vector<2x8x32xf32>
    %180 = arith.addf %177, %179 : vector<2x8x32xf32>
    %181 = vector.extract_strided_slice %172 {offsets = [0, 3, 0, 0], sizes = [2, 1, 8, 32], strides = [1, 1, 1, 1]} : vector<2x4x8x32xf32> to vector<2x1x8x32xf32>
    %182 = vector.shape_cast %181 : vector<2x1x8x32xf32> to vector<2x8x32xf32>
    %183 = arith.addf %180, %182 : vector<2x8x32xf32>
    %184 = vector.shape_cast %8 : vector<1x32xf32> to vector<1x1x32xf32>
    %185 = vector.broadcast %184 : vector<1x1x32xf32> to vector<2x8x32xf32>
    %186 = arith.addf %183, %185 : vector<2x8x32xf32>
    %187 = arith.addf %111, %186 : vector<2x8x32xf32>
    %cst_45 = arith.constant dense<0.000000e+00> : vector<2x8xf32>
    %188 = vector.multi_reduction <add>, %187, %cst_45 [2] : vector<2x8x32xf32> to vector<2x8xf32>
    %189 = vector.shape_cast %188 : vector<2x8xf32> to vector<2x8x1xf32>
    %cst_46 = arith.constant 3.200000e+01 : f32
    %190 = vector.broadcast %cst_46 : f32 to vector<2x8x1xf32>
    %191 = arith.divf %189, %190 : vector<2x8x1xf32>
    %192 = vector.broadcast %191 : vector<2x8x1xf32> to vector<2x8x32xf32>
    %193 = arith.subf %187, %192 : vector<2x8x32xf32>
    %194 = arith.mulf %193, %193 : vector<2x8x32xf32>
    %cst_47 = arith.constant dense<0.000000e+00> : vector<2x8xf32>
    %195 = vector.multi_reduction <add>, %194, %cst_47 [2] : vector<2x8x32xf32> to vector<2x8xf32>
    %196 = vector.shape_cast %195 : vector<2x8xf32> to vector<2x8x1xf32>
    %cst_48 = arith.constant 3.200000e+01 : f32
    %197 = vector.broadcast %cst_48 : f32 to vector<2x8x1xf32>
    %198 = arith.divf %196, %197 : vector<2x8x1xf32>
    %cst_49 = arith.constant 9.99999974E-6 : f32
    %199 = vector.broadcast %cst_49 : f32 to vector<2x8x1xf32>
    %200 = arith.addf %198, %199 : vector<2x8x1xf32>
    %201 = math.rsqrt %200 : vector<2x8x1xf32>
    %202 = vector.broadcast %201 : vector<2x8x1xf32> to vector<2x8x32xf32>
    %203 = arith.mulf %193, %202 : vector<2x8x32xf32>
    %204 = vector.shape_cast %12 : vector<1x32xf32> to vector<1x1x32xf32>
    %205 = vector.broadcast %204 : vector<1x1x32xf32> to vector<2x8x32xf32>
    %206 = arith.mulf %203, %205 : vector<2x8x32xf32>
    %207 = vector.shape_cast %13 : vector<1x32xf32> to vector<1x1x32xf32>
    %208 = vector.broadcast %207 : vector<1x1x32xf32> to vector<2x8x32xf32>
    %209 = arith.addf %206, %208 : vector<2x8x32xf32>
    %c0_50 = arith.constant 0 : index
    %c0_51 = arith.constant 0 : index
    %c0_52 = arith.constant 0 : index
    %210 = vector.load %arg7[%c0_50, %c0_51, %c0_52] : memref<1x32x64xbf16, #tpu.memory_space<vmem>>, vector<1x32x64xbf16>
    %211 = vector.shape_cast %210 : vector<1x32x64xbf16> to vector<32x64xbf16>
    %c0_53 = arith.constant 0 : index
    %c0_54 = arith.constant 0 : index
    %c0_55 = arith.constant 0 : index
    %212 = vector.load %arg8[%c0_53, %c0_54, %c0_55] : memref<1x64x32xbf16, #tpu.memory_space<vmem>>, vector<1x64x32xbf16>
    %213 = vector.shape_cast %212 : vector<1x64x32xbf16> to vector<64x32xbf16>
    %214 = arith.truncf %209 : vector<2x8x32xf32> to vector<2x8x32xbf16>
    %215 = vector.shape_cast %211 : vector<32x64xbf16> to vector<1x32x64xbf16>
    %216 = vector.shape_cast %215 : vector<1x32x64xbf16> to vector<1x32x64xbf16>
    %217 = vector.broadcast %216 : vector<1x32x64xbf16> to vector<2x32x64xbf16>
    "tpu.trace_start"() <{level = 10 : i32, message = "bsd,bdf->bsf"}> : () -> ()
    %cst_56 = arith.constant dense<0.000000e+00> : vector<2x8x64xf32>
    %218 = tpu.matmul %214, %217, %cst_56 {dimension_numbers = #tpu.dot_dimension_numbers<[2], [1], [1], [2], [0, 0, 0, 1, 1, 2], [0], [0]>} : vector<2x8x32xbf16>, vector<2x32x64xbf16>, vector<2x8x64xf32> -> vector<2x8x64xf32>
    "tpu.trace_stop"() : () -> ()
    %219 = vector.shape_cast %17 : vector<1x64xf32> to vector<1x1x64xf32>
    %220 = vector.broadcast %219 : vector<1x1x64xf32> to vector<2x8x64xf32>
    %221 = arith.addf %218, %220 : vector<2x8x64xf32>
    %cst_57 = arith.constant 0.000000e+00 : f32
    %222 = vector.broadcast %cst_57 : f32 to vector<2x8x64xf32>
    %223 = arith.maximumf %221, %222 : vector<2x8x64xf32>
    %224 = arith.truncf %223 : vector<2x8x64xf32> to vector<2x8x64xbf16>
    %225 = vector.shape_cast %213 : vector<64x32xbf16> to vector<1x64x32xbf16>
    %226 = vector.shape_cast %225 : vector<1x64x32xbf16> to vector<1x64x32xbf16>
    %227 = vector.broadcast %226 : vector<1x64x32xbf16> to vector<2x64x32xbf16>
    "tpu.trace_start"() <{level = 10 : i32, message = "bsf,bfd->bsd"}> : () -> ()
    %cst_58 = arith.constant dense<0.000000e+00> : vector<2x8x32xf32>
    %228 = tpu.matmul %224, %227, %cst_58 {dimension_numbers = #tpu.dot_dimension_numbers<[2], [1], [1], [2], [0, 0, 0, 1, 1, 2], [0], [0]>} : vector<2x8x64xbf16>, vector<2x64x32xbf16>, vector<2x8x32xf32> -> vector<2x8x32xf32>
    "tpu.trace_stop"() : () -> ()
    %229 = vector.shape_cast %9 : vector<1x32xf32> to vector<1x1x32xf32>
    %230 = vector.broadcast %229 : vector<1x1x32xf32> to vector<2x8x32xf32>
    %231 = arith.addf %228, %230 : vector<2x8x32xf32>
    %232 = arith.addf %209, %231 : vector<2x8x32xf32>
    %cst_59 = arith.constant dense<0.000000e+00> : vector<2x8xf32>
    %233 = vector.multi_reduction <add>, %232, %cst_59 [2] : vector<2x8x32xf32> to vector<2x8xf32>
    %234 = vector.shape_cast %233 : vector<2x8xf32> to vector<2x8x1xf32>
    %cst_60 = arith.constant 3.200000e+01 : f32
    %235 = vector.broadcast %cst_60 : f32 to vector<2x8x1xf32>
    %236 = arith.divf %234, %235 : vector<2x8x1xf32>
    %237 = vector.broadcast %236 : vector<2x8x1xf32> to vector<2x8x32xf32>
    %238 = arith.subf %232, %237 : vector<2x8x32xf32>
    %239 = arith.mulf %238, %238 : vector<2x8x32xf32>
    %cst_61 = arith.constant dense<0.000000e+00> : vector<2x8xf32>
    %240 = vector.multi_reduction <add>, %239, %cst_61 [2] : vector<2x8x32xf32> to vector<2x8xf32>
    %241 = vector.shape_cast %240 : vector<2x8xf32> to vector<2x8x1xf32>
    %cst_62 = arith.constant 3.200000e+01 : f32
    %242 = vector.broadcast %cst_62 : f32 to vector<2x8x1xf32>
    %243 = arith.divf %241, %242 : vector<2x8x1xf32>
    %cst_63 = arith.constant 9.99999974E-6 : f32
    %244 = vector.broadcast %cst_63 : f32 to vector<2x8x1xf32>
    %245 = arith.addf %243, %244 : vector<2x8x1xf32>
    %246 = math.rsqrt %245 : vector<2x8x1xf32>
    %247 = vector.broadcast %246 : vector<2x8x1xf32> to vector<2x8x32xf32>
    %248 = arith.mulf %238, %247 : vector<2x8x32xf32>
    %249 = vector.shape_cast %14 : vector<1x32xf32> to vector<1x1x32xf32>
    %250 = vector.broadcast %249 : vector<1x1x32xf32> to vector<2x8x32xf32>
    %251 = arith.mulf %248, %250 : vector<2x8x32xf32>
    %252 = vector.shape_cast %15 : vector<1x32xf32> to vector<1x1x32xf32>
    %253 = vector.broadcast %252 : vector<1x1x32xf32> to vector<2x8x32xf32>
    %254 = arith.addf %251, %253 : vector<2x8x32xf32>
    %c0_64 = arith.constant 0 : index
    %c0_65 = arith.constant 0 : index
    %c0_66 = arith.constant 0 : index
    %255 = vector.load %arg12[%c0_64, %c0_65, %c0_66] : memref<2x8x32xf32, #tpu.memory_space<vmem>>, vector<2x8x32xf32>
    tpu.vector_store %arg12[%c0_64, %c0_65, %c0_66], %254 {strides = array<i32>} : memref<2x8x32xf32, #tpu.memory_space<vmem>>, vector<2x8x32xf32>,
    %c0_67 = arith.constant 0 : index
    %c0_68 = arith.constant 0 : index
    %c0_69 = arith.constant 0 : index
    %256 = vector.load %arg11[%c0_67, %c0_68, %c0_69] : memref<2x8x32xf32, #tpu.memory_space<vmem>>, vector<2x8x32xf32>
    tpu.vector_store %arg11[%c0_67, %c0_68, %c0_69], %254 {strides = array<i32>} : memref<2x8x32xf32, #tpu.memory_space<vmem>>, vector<2x8x32xf32>,
    return
  }
  func.func @transform_0(%arg0: i32) -> (i32, i32, i32) {
    %c0_i32 = arith.constant 0 : i32
    %c0_i32_0 = arith.constant 0 : i32
    %c0_i32_1 = arith.constant 0 : i32
    %c0_i32_2 = arith.constant 0 : i32
    return %c0_i32, %c0_i32_0, %c0_i32_1 : i32, i32, i32
  }
  func.func @transform_1(%arg0: i32) -> (i32, i32, i32) {
    %c0_i32 = arith.constant 0 : i32
    %c0_i32_0 = arith.constant 0 : i32
    %c0_i32_1 = arith.constant 0 : i32
    %c0_i32_2 = arith.constant 0 : i32
    return %c0_i32, %c0_i32_0, %c0_i32_1 : i32, i32, i32
  }
  func.func @transform_2(%arg0: i32) -> (i32, i32, i32) {
    %c0_i32 = arith.constant 0 : i32
    %c0_i32_0 = arith.constant 0 : i32
    %c0_i32_1 = arith.constant 0 : i32
    %c0_i32_2 = arith.constant 0 : i32
    return %c0_i32, %c0_i32_0, %c0_i32_1 : i32, i32, i32
  }
  func.func @transform_3(%arg0: i32) -> (i32, i32, i32) {
    %c0_i32 = arith.constant 0 : i32
    %c0_i32_0 = arith.constant 0 : i32
    %c0_i32_1 = arith.constant 0 : i32
    %c0_i32_2 = arith.constant 0 : i32
    return %c0_i32, %c0_i32_0, %c0_i32_1 : i32, i32, i32
  }
  func.func @transform_4(%arg0: i32) -> (i32, i32, i32, i32) {
    %c0_i32 = arith.constant 0 : i32
    %c0_i32_0 = arith.constant 0 : i32
    %c0_i32_1 = arith.constant 0 : i32
    %c0_i32_2 = arith.constant 0 : i32
    return %arg0, %c0_i32, %c0_i32_0, %c0_i32_1 : i32, i32, i32, i32
  }
  func.func @transform_5(%arg0: i32) -> (i32, i32, i32, i32) {
    %c0_i32 = arith.constant 0 : i32
    %c0_i32_0 = arith.constant 0 : i32
    %c0_i32_1 = arith.constant 0 : i32
    %c0_i32_2 = arith.constant 0 : i32
    return %arg0, %c0_i32, %c0_i32_0, %c0_i32_1 : i32, i32, i32, i32
  }
  func.func @transform_6(%arg0: i32) -> (i32, i32, i32) {
    %c0_i32 = arith.constant 0 : i32
    %c0_i32_0 = arith.constant 0 : i32
    %c0_i32_1 = arith.constant 0 : i32
    return %arg0, %c0_i32, %c0_i32_0 : i32, i32, i32
  }
  func.func @transform_7(%arg0: i32) -> (i32, i32, i32) {
    %c0_i32 = arith.constant 0 : i32
    %c0_i32_0 = arith.constant 0 : i32
    %c0_i32_1 = arith.constant 0 : i32
    return %arg0, %c0_i32, %c0_i32_0 : i32, i32, i32
  }
  func.func @transform_8(%arg0: i32) -> (i32, i32, i32) {
    %c0_i32 = arith.constant 0 : i32
    %c0_i32_0 = arith.constant 0 : i32
    %c0_i32_1 = arith.constant 0 : i32
    return %arg0, %c0_i32, %c0_i32_0 : i32, i32, i32
  }
  func.func @transform_9(%arg0: i32) -> (i32, i32, i32) {
    %c0_i32 = arith.constant 0 : i32
    %c0_i32_0 = arith.constant 0 : i32
    %c0_i32_1 = arith.constant 0 : i32
    return %arg0, %c0_i32, %c0_i32_0 : i32, i32, i32
  }
  func.func @transform_10(%arg0: i32) -> (i32, i32, i32) {
    %c0_i32 = arith.constant 0 : i32
    %c0_i32_0 = arith.constant 0 : i32
    %c0_i32_1 = arith.constant 0 : i32
    %c0_i32_2 = arith.constant 0 : i32
    return %c0_i32, %c0_i32_0, %c0_i32_1 : i32, i32, i32
  }
}

</mosaic_0001>

<llo_original>
// kernel: tpu_custom_call.1
$region0: #{tpu_custom_call.1}
  #allocation0 [shape = 'u32[]', space=smem, size = 0x4, offset = 0x4, fixed_abs, tag = 'smem constant byte address 0x4 - core index']
  #allocation1 [shape = 'u32[72,128]{1,0:T(1,128)}', space=vmem, size = 0x9000, scoped, tag = 'internal scratch']
  #allocation2 [shape = 'f32[2,8,32]{2,1,0:T(8,128)}', space=vmem, size = 0x2000, scoped, tag = 'scratch operand']
  %s0 = inlined_call_operand.vmem [shape: f32[2,8,32], index: 0, kind: input, shape index: {}]
  %s1 = inlined_call_operand.vmem [shape: f32[2,10,32], index: 1, kind: input, shape index: {}]
  %s2 = inlined_call_operand.vmem [shape: f32[2,8,8], index: 2, kind: input, shape index: {}]
  %s3 = inlined_call_operand.vmem [shape: f32[2,8,10], index: 3, kind: input, shape index: {}]
  %s4 = inlined_call_operand.hbm [shape: bf16[2,16,8,32], index: 4, kind: input, shape index: {}]
  %s5 = inlined_call_operand.hbm [shape: bf16[2,16,8,32], index: 5, kind: input, shape index: {}]
  %s6 = inlined_call_operand.vmem [shape: bf16[2,32,64], index: 6, kind: input, shape index: {}]
  %s7 = inlined_call_operand.vmem [shape: bf16[2,64,32], index: 7, kind: input, shape index: {}]
  %s8 = inlined_call_operand.vmem [shape: f32[2,9,32], index: 8, kind: input, shape index: {}]
  %s9 = inlined_call_operand.vmem [shape: f32[2,1,64], index: 9, kind: input, shape index: {}]
  %s10 = inlined_call_operand.hbm [shape: f32[2,8,32], index: 10, kind: output, shape index: {}]
  %s11 = sld [smem:[#allocation0]]
  $region85: #{tpu_custom_call.1} parent=0
    _
  %s13 = ssub.s32 1, %s11
  %s14 = scalar_select 0, %s13, %s11
  $region1: #{tpu_custom_call.1} parent=0
    #allocation3 [shape = 'u8[65536]{0}', space=vmem, size = 0x10000, scoped, tag = 'input window, operand 4']
    #allocation4 [shape = 's32[2]{0}', space=sflag, size = 0x8, scoped, tag = 'scoped memory for tpu_custom_call.1']
    #allocation5 [shape = 's32[2]{0}', space=sflag, size = 0x8, scoped, tag = 'scoped memory for tpu_custom_call.1']
    #allocation6 [shape = 'u8[65536]{0}', space=vmem, size = 0x10000, scoped, tag = 'input window, operand 5']
    #allocation7 [shape = 's32[2]{0}', space=sflag, size = 0x8, scoped, tag = 'scoped memory for tpu_custom_call.1']
    #allocation8 [shape = 'u8[8192]{0}', space=vmem, size = 0x2000, scoped, tag = 'output window, operand 0, single buffered']
    %15 = vsyncpa [#allocation4], 0
    %s16 = scalar_lea.sflag [#allocation4], 1
    %17 = vsyncpa %s16, 0
    %18 = vsyncpa [#allocation7], 0
    %s19 = scalar_lea.sflag [#allocation7], 1
    %20 = vsyncpa %s19, 0
    %21 = vsyncpa [#allocation5], 0
    loop: start=0, step=1, limit=4
    $region2: #{tpu_custom_call.1} parent=1 // loop_pre_header
      _
    $region3: #{tpu_custom_call.1} parent=1 // loop_header
      %s23 = sphi 0, %s27
      %p24 = scmp.ge.s32.totalorder %s23, 4
      %s31 = sphi 0, %s31
      %s33 = sphi 0, %s31
      %s34 = sphi 0, %s33
      %s48 = sphi 0, %s34
      %s52 = sphi 0, %s52
      %s54 = sphi 0, %s52
      %s55 = sphi 0, %s54
      %s69 = sphi 0, %s55
      %s73 = sphi 0, %s73
      %s75 = sphi 0, %s73
      %s76 = sphi 0, %s75
      %s90 = sphi 0, %s76
      %s94 = sphi 0, %s94
      %s96 = sphi 0, %s94
      %s97 = sphi 0, %s96
      %s111 = sphi 0, %s97
      %s117 = sphi 0, %s119
      %s120 = sphi 0, %s117
      %s121 = sphi 0, %s120
      %s137 = sphi 0, %s121
      %s143 = sphi 0, %s145
      %s146 = sphi 0, %s143
      %s147 = sphi 0, %s146
      %s163 = sphi 0, %s147
      %s169 = sphi 0, %s171
      %s172 = sphi 0, %s169
      %s173 = sphi 0, %s172
      %s189 = sphi 0, %s173
      %s195 = sphi 0, %s197
      %s198 = sphi 0, %s195
      %s199 = sphi 0, %s198
      %s215 = sphi 0, %s199
      %s221 = sphi 0, %s223
      %s224 = sphi 0, %s221
      %s225 = sphi 0, %s224
      %s241 = sphi 0, %s225
      %s247 = sphi 0, %s249
      %s250 = sphi 0, %s247
      %s251 = sphi 0, %s250
      %s267 = sphi 0, %s251
      %s271 = sphi 0, %s271
      %s273 = sphi 0, %s271
      %s274 = sphi 0, %s273
      %s288 = sphi 0, %s274
    $region4: #{tpu_custom_call.1} parent=1 // loop_header_branch
      %26 = sbr.rel (%p24) target = $region8
    $region5: #{tpu_custom_call.1} parent=1 // loop_body
      %s28 = ssub.s32 %s23, 1
      %s29 = ssub.s32 %s23, 2
      %s30 = sadd.s32 %s23, 1
      %s32 = sadd.s32 %s31, 1
      %p35 = scmp.eq.s32.totalorder %s23, 1
      %p36 = scmp.ne.s32.totalorder %s31, %s33
      %p37 = scmp.eq.s32.totalorder %s23, 0
      %p38 = por %p36, %p37
      %p39 = scmp.ne.s32.totalorder %s31, %s33
      %p40 = scmp.eq.s32.totalorder %s28, 1
      %p41 = por %p39, %p40
      %p42 = scmp.ne.s32.totalorder %s33, %s34
      %p43 = scmp.eq.s32.totalorder %s28, 0
      %p44 = por %p42, %p43
      %p45 = scmp.ne.s32.totalorder %s33, %s34
      %p46 = scmp.eq.s32.totalorder %s29, 1
      %p47 = por %p45, %p46
      %p49 = scmp.ne.s32.totalorder %s34, %s48
      %p50 = scmp.eq.s32.totalorder %s29, 0
      %p51 = por %p49, %p50
      %s53 = sadd.s32 %s52, 1
      %p56 = scmp.eq.s32.totalorder %s23, 1
      %p57 = scmp.ne.s32.totalorder %s52, %s54
      %p58 = scmp.eq.s32.totalorder %s23, 0
      %p59 = por %p57, %p58
      %p60 = scmp.ne.s32.totalorder %s52, %s54
      %p61 = scmp.eq.s32.totalorder %s28, 1
      %p62 = por %p60, %p61
      %p63 = scmp.ne.s32.totalorder %s54, %s55
      %p64 = scmp.eq.s32.totalorder %s28, 0
      %p65 = por %p63, %p64
      %p66 = scmp.ne.s32.totalorder %s54, %s55
      %p67 = scmp.eq.s32.totalorder %s29, 1
      %p68 = por %p66, %p67
      %p70 = scmp.ne.s32.totalorder %s55, %s69
      %p71 = scmp.eq.s32.totalorder %s29, 0
      %p72 = por %p70, %p71
      %s74 = sadd.s32 %s73, 1
      %p77 = scmp.eq.s32.totalorder %s23, 1
      %p78 = scmp.ne.s32.totalorder %s73, %s75
      %p79 = scmp.eq.s32.totalorder %s23, 0
      %p80 = por %p78, %p79
      %p81 = scmp.ne.s32.totalorder %s73, %s75
      %p82 = scmp.eq.s32.totalorder %s28, 1
      %p83 = por %p81, %p82
      %p84 = scmp.ne.s32.totalorder %s75, %s76
      %p85 = scmp.eq.s32.totalorder %s28, 0
      %p86 = por %p84, %p85
      %p87 = scmp.ne.s32.totalorder %s75, %s76
      %p88 = scmp.eq.s32.totalorder %s29, 1
      %p89 = por %p87, %p88
      %p91 = scmp.ne.s32.totalorder %s76, %s90
      %p92 = scmp.eq.s32.totalorder %s29, 0
      %p93 = por %p91, %p92
      %s95 = sadd.s32 %s94, 1
      %p98 = scmp.eq.s32.totalorder %s23, 1
      %p99 = scmp.ne.s32.totalorder %s94, %s96
      %p100 = scmp.eq.s32.totalorder %s23, 0
      %p101 = por %p99, %p100
      %p102 = scmp.ne.s32.totalorder %s94, %s96
      %p103 = scmp.eq.s32.totalorder %s28, 1
      %p104 = por %p102, %p103
      %p105 = scmp.ne.s32.totalorder %s96, %s97
      %p106 = scmp.eq.s32.totalorder %s28, 0
      %p107 = por %p105, %p106
      %p108 = scmp.ne.s32.totalorder %s96, %s97
      %p109 = scmp.eq.s32.totalorder %s29, 1
      %p110 = por %p108, %p109
      %p112 = scmp.ne.s32.totalorder %s97, %s111
      %p113 = scmp.eq.s32.totalorder %s29, 0
      %p114 = por %p112, %p113
      %s115 = ssub.s32 %s23, %s30
      %p116 = scmp.eq.s32.totalorder %s115, 0
      %s118 = sadd.s32 %s117, 1
      %s119 = scalar_select %p116, %s117, %s118
      %p122 = pneg %p116
      %p123 = scmp.eq.s32.totalorder %s23, 1
      %p124 = por %p122, %p123
      %p125 = scmp.ne.s32.totalorder %s117, %s120
      %p126 = scmp.eq.s32.totalorder %s23, 0
      %p127 = por %p125, %p126
      %p128 = scmp.ne.s32.totalorder %s117, %s120
      %p129 = scmp.eq.s32.totalorder %s28, 1
      %p130 = por %p128, %p129
      %p131 = scmp.ne.s32.totalorder %s120, %s121
      %p132 = scmp.eq.s32.totalorder %s28, 0
      %p133 = por %p131, %p132
      %p134 = scmp.ne.s32.totalorder %s120, %s121
      %p135 = scmp.eq.s32.totalorder %s29, 1
      %p136 = por %p134, %p135
      %p138 = scmp.ne.s32.totalorder %s121, %s137
      %p139 = scmp.eq.s32.totalorder %s29, 0
      %p140 = por %p138, %p139
      %s141 = ssub.s32 %s23, %s30
      %p142 = scmp.eq.s32.totalorder %s141, 0
      %s144 = sadd.s32 %s143, 1
      %s145 = scalar_select %p142, %s143, %s144
      %p148 = pneg %p142
      %p149 = scmp.eq.s32.totalorder %s23, 1
      %p150 = por %p148, %p149
      %p151 = scmp.ne.s32.totalorder %s143, %s146
      %p152 = scmp.eq.s32.totalorder %s23, 0
      %p153 = por %p151, %p152
      %p154 = scmp.ne.s32.totalorder %s143, %s146
      %p155 = scmp.eq.s32.totalorder %s28, 1
      %p156 = por %p154, %p155
      %p157 = scmp.ne.s32.totalorder %s146, %s147
      %p158 = scmp.eq.s32.totalorder %s28, 0
      %p159 = por %p157, %p158
      %p160 = scmp.ne.s32.totalorder %s146, %s147
      %p161 = scmp.eq.s32.totalorder %s29, 1
      %p162 = por %p160, %p161
      %p164 = scmp.ne.s32.totalorder %s147, %s163
      %p165 = scmp.eq.s32.totalorder %s29, 0
      %p166 = por %p164, %p165
      %s167 = ssub.s32 %s23, %s30
      %p168 = scmp.eq.s32.totalorder %s167, 0
      %s170 = sadd.s32 %s169, 1
      %s171 = scalar_select %p168, %s169, %s170
      %p174 = pneg %p168
      %p175 = scmp.eq.s32.totalorder %s23, 1
      %p176 = por %p174, %p175
      %p177 = scmp.ne.s32.totalorder %s169, %s172
      %p178 = scmp.eq.s32.totalorder %s23, 0
      %p179 = por %p177, %p178
      %p180 = scmp.ne.s32.totalorder %s169, %s172
      %p181 = scmp.eq.s32.totalorder %s28, 1
      %p182 = por %p180, %p181
      %p183 = scmp.ne.s32.totalorder %s172, %s173
      %p184 = scmp.eq.s32.totalorder %s28, 0
      %p185 = por %p183, %p184
      %p186 = scmp.ne.s32.totalorder %s172, %s173
      %p187 = scmp.eq.s32.totalorder %s29, 1
      %p188 = por %p186, %p187
      %p190 = scmp.ne.s32.totalorder %s173, %s189
      %p191 = scmp.eq.s32.totalorder %s29, 0
      %p192 = por %p190, %p191
      %s193 = ssub.s32 %s23, %s30
      %p194 = scmp.eq.s32.totalorder %s193, 0
      %s196 = sadd.s32 %s195, 1
      %s197 = scalar_select %p194, %s195, %s196
      %p200 = pneg %p194
      %p201 = scmp.eq.s32.totalorder %s23, 1
      %p202 = por %p200, %p201
      %p203 = scmp.ne.s32.totalorder %s195, %s198
      %p204 = scmp.eq.s32.totalorder %s23, 0
      %p205 = por %p203, %p204
      %p206 = scmp.ne.s32.totalorder %s195, %s198
      %p207 = scmp.eq.s32.totalorder %s28, 1
      %p208 = por %p206, %p207
      %p209 = scmp.ne.s32.totalorder %s198, %s199
      %p210 = scmp.eq.s32.totalorder %s28, 0
      %p211 = por %p209, %p210
      %p212 = scmp.ne.s32.totalorder %s198, %s199
      %p213 = scmp.eq.s32.totalorder %s29, 1
      %p214 = por %p212, %p213
      %p216 = scmp.ne.s32.totalorder %s199, %s215
      %p217 = scmp.eq.s32.totalorder %s29, 0
      %p218 = por %p216, %p217
      %s219 = ssub.s32 %s23, %s30
      %p220 = scmp.eq.s32.totalorder %s219, 0
      %s222 = sadd.s32 %s221, 1
      %s223 = scalar_select %p220, %s221, %s222
      %p226 = pneg %p220
      %p227 = scmp.eq.s32.totalorder %s23, 1
      %p228 = por %p226, %p227
      %p229 = scmp.ne.s32.totalorder %s221, %s224
      %p230 = scmp.eq.s32.totalorder %s23, 0
      %p231 = por %p229, %p230
      %p232 = scmp.ne.s32.totalorder %s221, %s224
      %p233 = scmp.eq.s32.totalorder %s28, 1
      %p234 = por %p232, %p233
      %p235 = scmp.ne.s32.totalorder %s224, %s225
      %p236 = scmp.eq.s32.totalorder %s28, 0
      %p237 = por %p235, %p236
      %p238 = scmp.ne.s32.totalorder %s224, %s225
      %p239 = scmp.eq.s32.totalorder %s29, 1
      %p240 = por %p238, %p239
      %p242 = scmp.ne.s32.totalorder %s225, %s241
      %p243 = scmp.eq.s32.totalorder %s29, 0
      %p244 = por %p242, %p243
      %s245 = ssub.s32 %s23, %s30
      %p246 = scmp.eq.s32.totalorder %s245, 0
      %s248 = sadd.s32 %s247, 1
      %s249 = scalar_select %p246, %s247, %s248
      %p252 = pneg %p246
      %p253 = scmp.eq.s32.totalorder %s23, 1
      %p254 = por %p252, %p253
      %p255 = scmp.ne.s32.totalorder %s247, %s250
      %p256 = scmp.eq.s32.totalorder %s23, 0
      %p257 = por %p255, %p256
      %p258 = scmp.ne.s32.totalorder %s247, %s250
      %p259 = scmp.eq.s32.totalorder %s28, 1
      %p260 = por %p258, %p259
      %p261 = scmp.ne.s32.totalorder %s250, %s251
      %p262 = scmp.eq.s32.totalorder %s28, 0
      %p263 = por %p261, %p262
      %p264 = scmp.ne.s32.totalorder %s250, %s251
      %p265 = scmp.eq.s32.totalorder %s29, 1
      %p266 = por %p264, %p265
      %p268 = scmp.ne.s32.totalorder %s251, %s267
      %p269 = scmp.eq.s32.totalorder %s29, 0
      %p270 = por %p268, %p269
      %s272 = sadd.s32 %s271, 1
      %p275 = scmp.eq.s32.totalorder %s23, 1
      %p276 = scmp.ne.s32.totalorder %s271, %s273
      %p277 = scmp.eq.s32.totalorder %s23, 0
      %p278 = por %p276, %p277
      %p279 = scmp.ne.s32.totalorder %s271, %s273
      %p280 = scmp.eq.s32.totalorder %s28, 1
      %p281 = por %p279, %p280
      %p282 = scmp.ne.s32.totalorder %s273, %s274
      %p283 = scmp.eq.s32.totalorder %s28, 0
      %p284 = por %p282, %p283
      %p285 = scmp.ne.s32.totalorder %s273, %s274
      %p286 = scmp.eq.s32.totalorder %s29, 1
      %p287 = por %p285, %p286
      %p289 = scmp.ne.s32.totalorder %s274, %s288
      %p290 = scmp.eq.s32.totalorder %s29, 0
      %p291 = por %p289, %p290
      %p292 = scmp.le.s32.totalorder 1, %s23
      %p293 = scmp.lt.s32.totalorder %s23, 3
      %p294 = pnand %p292, %p293
      %p295 = pneg %p294
      // Predicated region
      $region9: #{tpu_custom_call.1} parent=5 // pred_check
        _
      $region10: #{tpu_custom_call.1} parent=5 // pred_check_branch
        %297 = sbr.rel (%p294) target = $region12
      $region11: #{tpu_custom_call.1} parent=5 // pred_region
        %s298 = ssub.s32 %s23, 1
        // Predicated region
        $region13: #{tpu_custom_call.1} parent=11 // pred_check
          %p299 = pneg %p44
        $region14: #{tpu_custom_call.1} parent=11 // pred_check_branch
          %301 = sbr.rel (%p299) target = $region16
        $region15: #{tpu_custom_call.1} parent=11 // pred_region
          _
        $region16: #{tpu_custom_call.1} parent=11 // pred_fallthru
          _
        // Predicated region
        $region17: #{tpu_custom_call.1} parent=11 // pred_check
          %p302 = pneg %p65
        $region18: #{tpu_custom_call.1} parent=11 // pred_check_branch
          %304 = sbr.rel (%p302) target = $region20
        $region19: #{tpu_custom_call.1} parent=11 // pred_region
          _
        $region20: #{tpu_custom_call.1} parent=11 // pred_fallthru
          _
        // Predicated region
        $region21: #{tpu_custom_call.1} parent=11 // pred_check
          %p305 = pneg %p86
        $region22: #{tpu_custom_call.1} parent=11 // pred_check_branch
          %307 = sbr.rel (%p305) target = $region24
        $region23: #{tpu_custom_call.1} parent=11 // pred_region
          _
        $region24: #{tpu_custom_call.1} parent=11 // pred_fallthru
          _
        // Predicated region
        $region25: #{tpu_custom_call.1} parent=11 // pred_check
          %p308 = pneg %p107
        $region26: #{tpu_custom_call.1} parent=11 // pred_check_branch
          %310 = sbr.rel (%p308) target = $region28
        $region27: #{tpu_custom_call.1} parent=11 // pred_region
          _
        $region28: #{tpu_custom_call.1} parent=11 // pred_fallthru
          _
      $region12: #{tpu_custom_call.1} parent=5 // pred_fallthru
        _
      %p311 = scmp.lt.s32.totalorder %s23, 2
      // Predicated region
      $region29: #{tpu_custom_call.1} parent=5 // pred_check
        %p312 = pneg %p311
      $region30: #{tpu_custom_call.1} parent=5 // pred_check_branch
        %314 = sbr.rel (%p312) target = $region32
      $region31: #{tpu_custom_call.1} parent=5 // pred_region
        // Predicated region
        $region33: #{tpu_custom_call.1} parent=31 // pred_check
          %p315 = pneg %p127
        $region34: #{tpu_custom_call.1} parent=31 // pred_check_branch
          %317 = sbr.rel (%p315) target = $region36
        $region35: #{tpu_custom_call.1} parent=31 // pred_region
          %s318 = sand.u32 %s117, 1
          %s319 = scalar_lea.sflag [#allocation4], %s318
          %s320 = sand.u32 %s117, 1
          %s321 = smul.addr %s320, 64
          %s322 = scalar_lea.vmem [#allocation3], %s321
          %324 = vsyncadd %s319, 0
          %s325 = smul.addr %s23, 16
          %s326 = smul.addr %s325, 4
          %s327 = scalar_lea.hbm %s4, %s326
          %s328 = sshll.u32 %s327, 4
          %s329 = int_to_ptr.hbm [resolvable:$true] %s328
          %s330 = sshll.u32 %s322, 4
          %s331 = int_to_ptr.vmem [resolvable:$true] %s330
          %336 = dma.hbm_to_vmem [thread:$0]  %s329, 1024, %s331, %s319, 64, 64, 4
        $region36: #{tpu_custom_call.1} parent=31 // pred_fallthru
          _
        // Predicated region
        $region37: #{tpu_custom_call.1} parent=31 // pred_check
          %p337 = pneg %p153
        $region38: #{tpu_custom_call.1} parent=31 // pred_check_branch
          %339 = sbr.rel (%p337) target = $region40
        $region39: #{tpu_custom_call.1} parent=31 // pred_region
          %s340 = sand.u32 %s143, 1
          %s341 = scalar_lea.sflag [#allocation7], %s340
          %s342 = sand.u32 %s143, 1
          %s343 = smul.addr %s342, 64
          %s344 = scalar_lea.vmem [#allocation6], %s343
          %346 = vsyncadd %s341, 0
          %s347 = smul.addr %s23, 16
          %s348 = smul.addr %s347, 4
          %s349 = scalar_lea.hbm %s5, %s348
          %s350 = sshll.u32 %s349, 4
          %s351 = int_to_ptr.hbm [resolvable:$true] %s350
          %s352 = sshll.u32 %s344, 4
          %s353 = int_to_ptr.vmem [resolvable:$true] %s352
          %358 = dma.hbm_to_vmem [thread:$0]  %s351, 1024, %s353, %s341, 64, 64, 4
        $region40: #{tpu_custom_call.1} parent=31 // pred_fallthru
          _
        // Predicated region
        $region41: #{tpu_custom_call.1} parent=31 // pred_check
          %p359 = pneg %p179
        $region42: #{tpu_custom_call.1} parent=31 // pred_check_branch
          %361 = sbr.rel (%p359) target = $region44
        $region43: #{tpu_custom_call.1} parent=31 // pred_region
          %p362 = scmp.lt.s32.totalorder %s23, 1
          %s363 = scalar_select %p362, %s23, 1
          %s364 = smul.addr %s363, 4
          %s365 = smul.addr %s364, 4
          %s366 = scalar_lea.vmem %s6, %s365
        $region44: #{tpu_custom_call.1} parent=31 // pred_fallthru
          _
        // Predicated region
        $region45: #{tpu_custom_call.1} parent=31 // pred_check
          %p367 = pneg %p205
        $region46: #{tpu_custom_call.1} parent=31 // pred_check_branch
          %369 = sbr.rel (%p367) target = $region48
        $region47: #{tpu_custom_call.1} parent=31 // pred_region
          %p370 = scmp.lt.s32.totalorder %s23, 1
          %s371 = scalar_select %p370, %s23, 1
          %s372 = smul.addr %s371, 8
          %s373 = smul.addr %s372, 4
          %s374 = scalar_lea.vmem %s7, %s373
        $region48: #{tpu_custom_call.1} parent=31 // pred_fallthru
          _
        // Predicated region
        $region49: #{tpu_custom_call.1} parent=31 // pred_check
          %p375 = pneg %p231
        $region50: #{tpu_custom_call.1} parent=31 // pred_check_branch
          %377 = sbr.rel (%p375) target = $region52
        $region51: #{tpu_custom_call.1} parent=31 // pred_region
          %p378 = scmp.lt.s32.totalorder %s23, 1
          %s379 = scalar_select %p378, %s23, 1
          %s380 = smul.addr %s379, 2
          %s381 = smul.addr %s380, 8
          %s382 = scalar_lea.vmem %s8, %s381
        $region52: #{tpu_custom_call.1} parent=31 // pred_fallthru
          _
        // Predicated region
        $region53: #{tpu_custom_call.1} parent=31 // pred_check
          %p383 = pneg %p257
        $region54: #{tpu_custom_call.1} parent=31 // pred_check_branch
          %385 = sbr.rel (%p383) target = $region56
        $region55: #{tpu_custom_call.1} parent=31 // pred_region
          %p386 = scmp.lt.s32.totalorder %s23, 1
          %s387 = scalar_select %p386, %s23, 1
          %s388 = scalar_lea.vmem %s9, %s387
        $region56: #{tpu_custom_call.1} parent=31 // pred_fallthru
          _
      $region32: #{tpu_custom_call.1} parent=5 // pred_fallthru
        _
      %p389 = scmp.le.s32.totalorder 1, %s23
      %p390 = scmp.lt.s32.totalorder %s23, 3
      %p391 = pnand %p389, %p390
      %p392 = pneg %p391
      // Predicated region
      $region57: #{tpu_custom_call.1} parent=5 // pred_check
        _
      $region58: #{tpu_custom_call.1} parent=5 // pred_check_branch
        %394 = sbr.rel (%p391) target = $region60
      $region59: #{tpu_custom_call.1} parent=5 // pred_region
        %s395 = ssub.s32 %s23, 1
        %s396 = sand.u32 %s120, 1
        %s397 = scalar_lea.sflag [#allocation4], %s396
        %s398 = sand.u32 %s120, 1
        %s399 = smul.addr %s398, 64
        %s400 = scalar_lea.vmem [#allocation3], %s399
        // Predicated region
        $region61: #{tpu_custom_call.1} parent=59 // pred_check
          %p401 = pneg %p133
        $region62: #{tpu_custom_call.1} parent=59 // pred_check_branch
          %403 = sbr.rel (%p401) target = $region64
        $region63: #{tpu_custom_call.1} parent=59 // pred_region
          %405 = dma.done %s397, 1024
        $region64: #{tpu_custom_call.1} parent=59 // pred_fallthru
          _
        %s406 = sand.u32 %s146, 1
        %s407 = scalar_lea.sflag [#allocation7], %s406
        %s408 = sand.u32 %s146, 1
        %s409 = smul.addr %s408, 64
        %s410 = scalar_lea.vmem [#allocation6], %s409
        // Predicated region
        $region65: #{tpu_custom_call.1} parent=59 // pred_check
          %p411 = pneg %p159
        $region66: #{tpu_custom_call.1} parent=59 // pred_check_branch
          %413 = sbr.rel (%p411) target = $region68
        $region67: #{tpu_custom_call.1} parent=59 // pred_region
          %415 = dma.done %s407, 1024
        $region68: #{tpu_custom_call.1} parent=59 // pred_fallthru
          _
        %p416 = pneg %p44
        %p417 = pneg %p41
        %p418 = pneg %p65
        %p419 = pneg %p62
        %p420 = pneg %p86
        %p421 = pneg %p83
        %p422 = pneg %p107
        %p423 = pneg %p104
        %s424 = sand.u32 %s120, 1
        %s425 = scalar_lea.sflag [#allocation4], %s424
        %s426 = sand.u32 %s120, 1
        %s427 = smul.addr %s426, 64
        %s428 = scalar_lea.vmem [#allocation3], %s427
        %p429 = pneg %p133
        %p430 = pneg %p130
        %s431 = sand.u32 %s146, 1
        %s432 = scalar_lea.sflag [#allocation7], %s431
        %s433 = sand.u32 %s146, 1
        %s434 = smul.addr %s433, 64
        %s435 = scalar_lea.vmem [#allocation6], %s434
        %p436 = pneg %p159
        %p437 = pneg %p156
        %p438 = scmp.lt.s32.totalorder %s28, 1
        %s439 = scalar_select %p438, %s28, 1
        %s440 = smul.addr %s439, 4
        %s441 = smul.addr %s440, 4
        %s442 = scalar_lea.vmem %s6, %s441
        %p443 = pneg %p185
        %p444 = pneg %p182
        %p445 = scmp.lt.s32.totalorder %s28, 1
        %s446 = scalar_select %p445, %s28, 1
        %s447 = smul.addr %s446, 8
        %s448 = smul.addr %s447, 4
        %s449 = scalar_lea.vmem %s7, %s448
        %p450 = pneg %p211
        %p451 = pneg %p208
        %p452 = scmp.lt.s32.totalorder %s28, 1
        %s453 = scalar_select %p452, %s28, 1
        %s454 = smul.addr %s453, 2
        %s455 = smul.addr %s454, 8
        %s456 = scalar_lea.vmem %s8, %s455
        %p457 = pneg %p237
        %p458 = pneg %p234
        %p459 = scmp.lt.s32.totalorder %s28, 1
        %s460 = scalar_select %p459, %s28, 1
        %s461 = scalar_lea.vmem %s9, %s460
        %p462 = pneg %p263
        %p463 = pneg %p260
        %p464 = pneg %p284
        %p465 = pneg %p281
        %p466 = scmp.lt.s32.totalorder %s28, 1
        %s467 = scalar_select %p466, %s28, 1
        %s468 = smul.addr %s467, 4
        %s469 = smul.addr %s468, 4
        %s470 = scalar_lea.vmem %s6, %s469
        %p471 = scmp.lt.s32.totalorder %s28, 1
        %s472 = scalar_select %p471, %s28, 1
        %s473 = smul.addr %s472, 8
        %s474 = smul.addr %s473, 4
        %s475 = scalar_lea.vmem %s7, %s474
        %p476 = scmp.lt.s32.totalorder %s28, 1
        %s477 = scalar_select %p476, %s28, 1
        %s478 = smul.addr %s477, 2
        %s479 = smul.addr %s478, 8
        %s480 = scalar_lea.vmem %s8, %s479
        %p481 = scmp.lt.s32.totalorder %s28, 1
        %s482 = scalar_select %p481, %s28, 1
        %s483 = scalar_lea.vmem %s9, %s482
        %p485 = scmp.eq.s32.totalorder %s28, 0
        // Predicated region
        $region69: #{tpu_custom_call.1} parent=59 // pred_check
          %p486 = pneg %p485
        $region70: #{tpu_custom_call.1} parent=59 // pred_check_branch
          %488 = sbr.rel (%p486) target = $region72
        $region71: #{tpu_custom_call.1} parent=59 // pred_region
          %v489 = vld [vmem:[%s0] sm:$0xff]
          %v490 = vld [vmem:[%s0 + $0x8] sm:$0xff]
          %vm491 = vcmask 261120
          %492 = vst.msk [vmem:[#allocation2] sm:$0xff] %vm491, %v489
          %493 = vst.msk [vmem:[#allocation2 + $0x8] sm:$0xff] %vm491, %v490
        $region72: #{tpu_custom_call.1} parent=59 // pred_fallthru
          _
        %v494 = vld [vmem:[#allocation2] sm:$0xff]
        %v495 = vld [vmem:[#allocation2 + $0x8] sm:$0xff]
        %v496 = vld [vmem:[%s1] sm:$0xff]
        %v497 = vld [vmem:[%s1 + $0x8] sm:$0x3]
        %v498 = vld [vmem:[%s1 + $0x10] sm:$0xff]
        %v499 = vld [vmem:[%s1 + $0x18] sm:$0x3]
        %v500 = vld [vmem:[%s480] sm:$0xff]
        %v501 = vld [vmem:[%s480 + $0x8] sm:$0x1]
        %v502 = vld [vmem:[%s483] sm:$0x1]
        %v503 = vld [vmem:[%s400] sm:$0xf]
        %v504 = vld [vmem:[%s400 + $0x4] sm:$0xf]
        %v505 = vld [vmem:[%s400 + $0x8] sm:$0xf]
        %v506 = vld [vmem:[%s400 + $0xc] sm:$0xf]
        %v507 = vld [vmem:[%s400 + $0x10] sm:$0xf]
        %v508 = vld [vmem:[%s400 + $0x14] sm:$0xf]
        %v509 = vld [vmem:[%s400 + $0x18] sm:$0xf]
        %v510 = vld [vmem:[%s400 + $0x1c] sm:$0xf]
        %v511 = vld [vmem:[%s400 + $0x20] sm:$0xf]
        %v512 = vld [vmem:[%s400 + $0x24] sm:$0xf]
        %v513 = vld [vmem:[%s400 + $0x28] sm:$0xf]
        %v514 = vld [vmem:[%s400 + $0x2c] sm:$0xf]
        %v515 = vld [vmem:[%s400 + $0x30] sm:$0xf]
        %v516 = vld [vmem:[%s400 + $0x34] sm:$0xf]
        %v517 = vld [vmem:[%s400 + $0x38] sm:$0xf]
        %v518 = vld [vmem:[%s400 + $0x3c] sm:$0xf]
        %v519 = vld [vmem:[%s410] sm:$0xf]
        %v520 = vld [vmem:[%s410 + $0x4] sm:$0xf]
        %v521 = vld [vmem:[%s410 + $0x8] sm:$0xf]
        %v522 = vld [vmem:[%s410 + $0xc] sm:$0xf]
        %v523 = vld [vmem:[%s410 + $0x10] sm:$0xf]
        %v524 = vld [vmem:[%s410 + $0x14] sm:$0xf]
        %v525 = vld [vmem:[%s410 + $0x18] sm:$0xf]
        %v526 = vld [vmem:[%s410 + $0x1c] sm:$0xf]
        %v527 = vld [vmem:[%s410 + $0x20] sm:$0xf]
        %v528 = vld [vmem:[%s410 + $0x24] sm:$0xf]
        %v529 = vld [vmem:[%s410 + $0x28] sm:$0xf]
        %v530 = vld [vmem:[%s410 + $0x2c] sm:$0xf]
        %v531 = vld [vmem:[%s410 + $0x30] sm:$0xf]
        %v532 = vld [vmem:[%s410 + $0x34] sm:$0xf]
        %v533 = vld [vmem:[%s410 + $0x38] sm:$0xf]
        %v534 = vld [vmem:[%s410 + $0x3c] sm:$0xf]
        %v535 = vld [vmem:[%s2] sm:$0xff]
        %v536 = vld [vmem:[%s2 + $0x8] sm:$0xff]
        %v537 = vpack.c.bf16 %v494, %v494
        %v538 = vpack.c.bf16 %v495, %v495
        %vm539 = vcmask 261120
        %v541 = vsel %vm539, %v537, 0
        %v544 = vsel %vm539, %v503, 0
        %546 = vmatpush.bf16.xpose.msra.mxu0 0
        %547 = vmatpush.bf16.xpose.msra.mxu0 0
        %548 = vmatpush.bf16.xpose.msra.mxu0 0
        %549 = vmatpush.bf16.xpose.msra.mxu0 0
        %550 = vmatpush.bf16.xpose.msra.mxu0 0
        %551 = vmatpush.bf16.xpose.msra.mxu0 0
        %552 = vmatpush.bf16.xpose.msra.mxu0 0
        %553 = vmatpush.bf16.xpose.msra.mxu0 %v544
        %554 = vmatmul.bf16.gmra.mxu0 %v541
        %v555 = vpop.f32.mrf.mxu0
        %v556 = vadd.f32 0.0, %v555
        %v557 = vpop.f32.mrf.mxu0
        %558 = vdwg.mxu0
        %v560 = vsel %vm539, %v504, 0
        %562 = vmatpush.bf16.xpose.msra.mxu0 0
        %563 = vmatpush.bf16.xpose.msra.mxu0 0
        %564 = vmatpush.bf16.xpose.msra.mxu0 0
        %565 = vmatpush.bf16.xpose.msra.mxu0 0
        %566 = vmatpush.bf16.xpose.msra.mxu0 0
        %567 = vmatpush.bf16.xpose.msra.mxu0 0
        %568 = vmatpush.bf16.xpose.msra.mxu0 0
        %569 = vmatpush.bf16.xpose.msra.mxu0 %v560
        %570 = vmatmul.bf16.gmra.mxu0 %v541
        %v571 = vpop.f32.mrf.mxu0
        %v572 = vadd.f32 0.0, %v571
        %v573 = vpop.f32.mrf.mxu0
        %574 = vdwg.mxu0
        %v576 = vsel %vm539, %v505, 0
        %578 = vmatpush.bf16.xpose.msra.mxu0 0
        %579 = vmatpush.bf16.xpose.msra.mxu0 0
        %580 = vmatpush.bf16.xpose.msra.mxu0 0
        %581 = vmatpush.bf16.xpose.msra.mxu0 0
        %582 = vmatpush.bf16.xpose.msra.mxu0 0
        %583 = vmatpush.bf16.xpose.msra.mxu0 0
        %584 = vmatpush.bf16.xpose.msra.mxu0 0
        %585 = vmatpush.bf16.xpose.msra.mxu0 %v576
        %586 = vmatmul.bf16.gmra.mxu0 %v541
        %v587 = vpop.f32.mrf.mxu0
        %v588 = vadd.f32 0.0, %v587
        %v589 = vpop.f32.mrf.mxu0
        %590 = vdwg.mxu0
        %v592 = vsel %vm539, %v506, 0
        %594 = vmatpush.bf16.xpose.msra.mxu0 0
        %595 = vmatpush.bf16.xpose.msra.mxu0 0
        %596 = vmatpush.bf16.xpose.msra.mxu0 0
        %597 = vmatpush.bf16.xpose.msra.mxu0 0
        %598 = vmatpush.bf16.xpose.msra.mxu0 0
        %599 = vmatpush.bf16.xpose.msra.mxu0 0
        %600 = vmatpush.bf16.xpose.msra.mxu0 0
        %601 = vmatpush.bf16.xpose.msra.mxu0 %v592
        %602 = vmatmul.bf16.gmra.mxu0 %v541
        %v603 = vpop.f32.mrf.mxu0
        %v604 = vadd.f32 0.0, %v603
        %v605 = vpop.f32.mrf.mxu0
        %606 = vdwg.mxu0
        %v608 = vsel %vm539, %v507, 0
        %610 = vmatpush.bf16.xpose.msra.mxu0 0
        %611 = vmatpush.bf16.xpose.msra.mxu0 0
        %612 = vmatpush.bf16.xpose.msra.mxu0 0
        %613 = vmatpush.bf16.xpose.msra.mxu0 0
        %614 = vmatpush.bf16.xpose.msra.mxu0 0
        %615 = vmatpush.bf16.xpose.msra.mxu0 0
        %616 = vmatpush.bf16.xpose.msra.mxu0 0
        %617 = vmatpush.bf16.xpose.msra.mxu0 %v608
        %618 = vmatmul.bf16.gmra.mxu0 %v541
        %v619 = vpop.f32.mrf.mxu0
        %v620 = vadd.f32 0.0, %v619
        %v621 = vpop.f32.mrf.mxu0
        %622 = vdwg.mxu0
        %v624 = vsel %vm539, %v508, 0
        %626 = vmatpush.bf16.xpose.msra.mxu0 0
        %627 = vmatpush.bf16.xpose.msra.mxu0 0
        %628 = vmatpush.bf16.xpose.msra.mxu0 0
        %629 = vmatpush.bf16.xpose.msra.mxu0 0
        %630 = vmatpush.bf16.xpose.msra.mxu0 0
        %631 = vmatpush.bf16.xpose.msra.mxu0 0
        %632 = vmatpush.bf16.xpose.msra.mxu0 0
        %633 = vmatpush.bf16.xpose.msra.mxu0 %v624
        %634 = vmatmul.bf16.gmra.mxu0 %v541
        %v635 = vpop.f32.mrf.mxu0
        %v636 = vadd.f32 0.0, %v635
        %v637 = vpop.f32.mrf.mxu0
        %638 = vdwg.mxu0
        %v640 = vsel %vm539, %v509, 0
        %642 = vmatpush.bf16.xpose.msra.mxu0 0
        %643 = vmatpush.bf16.xpose.msra.mxu0 0
        %644 = vmatpush.bf16.xpose.msra.mxu0 0
        %645 = vmatpush.bf16.xpose.msra.mxu0 0
        %646 = vmatpush.bf16.xpose.msra.mxu0 0
        %647 = vmatpush.bf16.xpose.msra.mxu0 0
        %648 = vmatpush.bf16.xpose.msra.mxu0 0
        %649 = vmatpush.bf16.xpose.msra.mxu0 %v640
        %650 = vmatmul.bf16.gmra.mxu0 %v541
        %v651 = vpop.f32.mrf.mxu0
        %v652 = vadd.f32 0.0, %v651
        %v653 = vpop.f32.mrf.mxu0
        %654 = vdwg.mxu0
        %v656 = vsel %vm539, %v510, 0
        %658 = vmatpush.bf16.xpose.msra.mxu0 0
        %659 = vmatpush.bf16.xpose.msra.mxu0 0
        %660 = vmatpush.bf16.xpose.msra.mxu0 0
        %661 = vmatpush.bf16.xpose.msra.mxu0 0
        %662 = vmatpush.bf16.xpose.msra.mxu0 0
        %663 = vmatpush.bf16.xpose.msra.mxu0 0
        %664 = vmatpush.bf16.xpose.msra.mxu0 0
        %665 = vmatpush.bf16.xpose.msra.mxu0 %v656
        %666 = vmatmul.bf16.gmra.mxu0 %v541
        %v667 = vpop.f32.mrf.mxu0
        %v668 = vadd.f32 0.0, %v667
        %v669 = vpop.f32.mrf.mxu0
        %670 = vdwg.mxu0
        %v672 = vsel %vm539, %v511, 0
        %674 = vmatpush.bf16.xpose.msra.mxu0 0
        %675 = vmatpush.bf16.xpose.msra.mxu0 0
        %676 = vmatpush.bf16.xpose.msra.mxu0 0
        %677 = vmatpush.bf16.xpose.msra.mxu0 0
        %678 = vmatpush.bf16.xpose.msra.mxu0 0
        %679 = vmatpush.bf16.xpose.msra.mxu0 0
        %680 = vmatpush.bf16.xpose.msra.mxu0 0
        %681 = vmatpush.bf16.xpose.msra.mxu0 %v672
        %682 = vmatmul.bf16.gmra.mxu0 %v541
        %v683 = vpop.f32.mrf.mxu0
        %v684 = vadd.f32 0.0, %v683
        %v685 = vpop.f32.mrf.mxu0
        %686 = vdwg.mxu0
        %v688 = vsel %vm539, %v512, 0
        %690 = vmatpush.bf16.xpose.msra.mxu0 0
        %691 = vmatpush.bf16.xpose.msra.mxu0 0
        %692 = vmatpush.bf16.xpose.msra.mxu0 0
        %693 = vmatpush.bf16.xpose.msra.mxu0 0
        %694 = vmatpush.bf16.xpose.msra.mxu0 0
        %695 = vmatpush.bf16.xpose.msra.mxu0 0
        %696 = vmatpush.bf16.xpose.msra.mxu0 0
        %697 = vmatpush.bf16.xpose.msra.mxu0 %v688
        %698 = vmatmul.bf16.gmra.mxu0 %v541
        %v699 = vpop.f32.mrf.mxu0
        %v700 = vadd.f32 0.0, %v699
        %v701 = vpop.f32.mrf.mxu0
        %702 = vdwg.mxu0
        %v704 = vsel %vm539, %v513, 0
        %706 = vmatpush.bf16.xpose.msra.mxu0 0
        %707 = vmatpush.bf16.xpose.msra.mxu0 0
        %708 = vmatpush.bf16.xpose.msra.mxu0 0
        %709 = vmatpush.bf16.xpose.msra.mxu0 0
        %710 = vmatpush.bf16.xpose.msra.mxu0 0
        %711 = vmatpush.bf16.xpose.msra.mxu0 0
        %712 = vmatpush.bf16.xpose.msra.mxu0 0
        %713 = vmatpush.bf16.xpose.msra.mxu0 %v704
        %714 = vmatmul.bf16.gmra.mxu0 %v541
        %v715 = vpop.f32.mrf.mxu0
        %v716 = vadd.f32 0.0, %v715
        %v717 = vpop.f32.mrf.mxu0
        %718 = vdwg.mxu0
        %v720 = vsel %vm539, %v514, 0
        %722 = vmatpush.bf16.xpose.msra.mxu0 0
        %723 = vmatpush.bf16.xpose.msra.mxu0 0
        %724 = vmatpush.bf16.xpose.msra.mxu0 0
        %725 = vmatpush.bf16.xpose.msra.mxu0 0
        %726 = vmatpush.bf16.xpose.msra.mxu0 0
        %727 = vmatpush.bf16.xpose.msra.mxu0 0
        %728 = vmatpush.bf16.xpose.msra.mxu0 0
        %729 = vmatpush.bf16.xpose.msra.mxu0 %v720
        %730 = vmatmul.bf16.gmra.mxu0 %v541
        %v731 = vpop.f32.mrf.mxu0
        %v732 = vadd.f32 0.0, %v731
        %v733 = vpop.f32.mrf.mxu0
        %734 = vdwg.mxu0
        %v736 = vsel %vm539, %v538, 0
        %738 = vmatpush.bf16.xpose.msra.mxu0 0
        %739 = vmatpush.bf16.xpose.msra.mxu0 0
        %740 = vmatpush.bf16.xpose.msra.mxu0 0
        %741 = vmatpush.bf16.xpose.msra.mxu0 0
        %742 = vmatpush.bf16.xpose.msra.mxu0 0
        %743 = vmatpush.bf16.xpose.msra.mxu0 0
        %744 = vmatpush.bf16.xpose.msra.mxu0 0
        %745 = vmatpush.bf16.xpose.msra.mxu0 %v544
        %746 = vmatmul.bf16.gmra.mxu0 %v736
        %v747 = vpop.f32.mrf.mxu0
        %v748 = vadd.f32 0.0, %v747
        %v749 = vpop.f32.mrf.mxu0
        %750 = vdwg.mxu0
        %751 = vmatpush.bf16.xpose.msra.mxu0 0
        %752 = vmatpush.bf16.xpose.msra.mxu0 0
        %753 = vmatpush.bf16.xpose.msra.mxu0 0
        %754 = vmatpush.bf16.xpose.msra.mxu0 0
        %755 = vmatpush.bf16.xpose.msra.mxu0 0
        %756 = vmatpush.bf16.xpose.msra.mxu0 0
        %757 = vmatpush.bf16.xpose.msra.mxu0 0
        %758 = vmatpush.bf16.xpose.msra.mxu0 %v560
        %759 = vmatmul.bf16.gmra.mxu0 %v736
        %v760 = vpop.f32.mrf.mxu0
        %v761 = vadd.f32 0.0, %v760
        %v762 = vpop.f32.mrf.mxu0
        %763 = vdwg.mxu0
        %764 = vmatpush.bf16.xpose.msra.mxu0 0
        %765 = vmatpush.bf16.xpose.msra.mxu0 0
        %766 = vmatpush.bf16.xpose.msra.mxu0 0
        %767 = vmatpush.bf16.xpose.msra.mxu0 0
        %768 = vmatpush.bf16.xpose.msra.mxu0 0
        %769 = vmatpush.bf16.xpose.msra.mxu0 0
        %770 = vmatpush.bf16.xpose.msra.mxu0 0
        %771 = vmatpush.bf16.xpose.msra.mxu0 %v576
        %772 = vmatmul.bf16.gmra.mxu0 %v736
        %v773 = vpop.f32.mrf.mxu0
        %v774 = vadd.f32 0.0, %v773
        %v775 = vpop.f32.mrf.mxu0
        %776 = vdwg.mxu0
        %777 = vmatpush.bf16.xpose.msra.mxu0 0
        %778 = vmatpush.bf16.xpose.msra.mxu0 0
        %779 = vmatpush.bf16.xpose.msra.mxu0 0
        %780 = vmatpush.bf16.xpose.msra.mxu0 0
        %781 = vmatpush.bf16.xpose.msra.mxu0 0
        %782 = vmatpush.bf16.xpose.msra.mxu0 0
        %783 = vmatpush.bf16.xpose.msra.mxu0 0
        %784 = vmatpush.bf16.xpose.msra.mxu0 %v592
        %785 = vmatmul.bf16.gmra.mxu0 %v736
        %v786 = vpop.f32.mrf.mxu0
        %v787 = vadd.f32 0.0, %v786
        %v788 = vpop.f32.mrf.mxu0
        %789 = vdwg.mxu0
        %790 = vmatpush.bf16.xpose.msra.mxu0 0
        %791 = vmatpush.bf16.xpose.msra.mxu0 0
        %792 = vmatpush.bf16.xpose.msra.mxu0 0
        %793 = vmatpush.bf16.xpose.msra.mxu0 0
        %794 = vmatpush.bf16.xpose.msra.mxu0 0
        %795 = vmatpush.bf16.xpose.msra.mxu0 0
        %796 = vmatpush.bf16.xpose.msra.mxu0 0
        %797 = vmatpush.bf16.xpose.msra.mxu0 %v608
        %798 = vmatmul.bf16.gmra.mxu0 %v736
        %v799 = vpop.f32.mrf.mxu0
        %v800 = vadd.f32 0.0, %v799
        %v801 = vpop.f32.mrf.mxu0
        %802 = vdwg.mxu0
        %803 = vmatpush.bf16.xpose.msra.mxu0 0
        %804 = vmatpush.bf16.xpose.msra.mxu0 0
        %805 = vmatpush.bf16.xpose.msra.mxu0 0
        %806 = vmatpush.bf16.xpose.msra.mxu0 0
        %807 = vmatpush.bf16.xpose.msra.mxu0 0
        %808 = vmatpush.bf16.xpose.msra.mxu0 0
        %809 = vmatpush.bf16.xpose.msra.mxu0 0
        %810 = vmatpush.bf16.xpose.msra.mxu0 %v624
        %811 = vmatmul.bf16.gmra.mxu0 %v736
        %v812 = vpop.f32.mrf.mxu0
        %v813 = vadd.f32 0.0, %v812
        %v814 = vpop.f32.mrf.mxu0
        %815 = vdwg.mxu0
        %816 = vmatpush.bf16.xpose.msra.mxu0 0
        %817 = vmatpush.bf16.xpose.msra.mxu0 0
        %818 = vmatpush.bf16.xpose.msra.mxu0 0
        %819 = vmatpush.bf16.xpose.msra.mxu0 0
        %820 = vmatpush.bf16.xpose.msra.mxu0 0
        %821 = vmatpush.bf16.xpose.msra.mxu0 0
        %822 = vmatpush.bf16.xpose.msra.mxu0 0
        %823 = vmatpush.bf16.xpose.msra.mxu0 %v640
        %824 = vmatmul.bf16.gmra.mxu0 %v736
        %v825 = vpop.f32.mrf.mxu0
        %v826 = vadd.f32 0.0, %v825
        %v827 = vpop.f32.mrf.mxu0
        %828 = vdwg.mxu0
        %829 = vmatpush.bf16.xpose.msra.mxu0 0
        %830 = vmatpush.bf16.xpose.msra.mxu0 0
        %831 = vmatpush.bf16.xpose.msra.mxu0 0
        %832 = vmatpush.bf16.xpose.msra.mxu0 0
        %833 = vmatpush.bf16.xpose.msra.mxu0 0
        %834 = vmatpush.bf16.xpose.msra.mxu0 0
        %835 = vmatpush.bf16.xpose.msra.mxu0 0
        %836 = vmatpush.bf16.xpose.msra.mxu0 %v656
        %837 = vmatmul.bf16.gmra.mxu0 %v736
        %v838 = vpop.f32.mrf.mxu0
        %v839 = vadd.f32 0.0, %v838
        %v840 = vpop.f32.mrf.mxu0
        %841 = vdwg.mxu0
        %842 = vmatpush.bf16.xpose.msra.mxu0 0
        %843 = vmatpush.bf16.xpose.msra.mxu0 0
        %844 = vmatpush.bf16.xpose.msra.mxu0 0
        %845 = vmatpush.bf16.xpose.msra.mxu0 0
        %846 = vmatpush.bf16.xpose.msra.mxu0 0
        %847 = vmatpush.bf16.xpose.msra.mxu0 0
        %848 = vmatpush.bf16.xpose.msra.mxu0 0
        %849 = vmatpush.bf16.xpose.msra.mxu0 %v672
        %850 = vmatmul.bf16.gmra.mxu0 %v736
        %v851 = vpop.f32.mrf.mxu0
        %v852 = vadd.f32 0.0, %v851
        %v853 = vpop.f32.mrf.mxu0
        %854 = vdwg.mxu0
        %855 = vmatpush.bf16.xpose.msra.mxu0 0
        %856 = vmatpush.bf16.xpose.msra.mxu0 0
        %857 = vmatpush.bf16.xpose.msra.mxu0 0
        %858 = vmatpush.bf16.xpose.msra.mxu0 0
        %859 = vmatpush.bf16.xpose.msra.mxu0 0
        %860 = vmatpush.bf16.xpose.msra.mxu0 0
        %861 = vmatpush.bf16.xpose.msra.mxu0 0
        %862 = vmatpush.bf16.xpose.msra.mxu0 %v688
        %863 = vmatmul.bf16.gmra.mxu0 %v736
        %v864 = vpop.f32.mrf.mxu0
        %v865 = vadd.f32 0.0, %v864
        %v866 = vpop.f32.mrf.mxu0
        %867 = vdwg.mxu0
        %868 = vmatpush.bf16.xpose.msra.mxu0 0
        %869 = vmatpush.bf16.xpose.msra.mxu0 0
        %870 = vmatpush.bf16.xpose.msra.mxu0 0
        %871 = vmatpush.bf16.xpose.msra.mxu0 0
        %872 = vmatpush.bf16.xpose.msra.mxu0 0
        %873 = vmatpush.bf16.xpose.msra.mxu0 0
        %874 = vmatpush.bf16.xpose.msra.mxu0 0
        %875 = vmatpush.bf16.xpose.msra.mxu0 %v704
        %876 = vmatmul.bf16.gmra.mxu0 %v736
        %v877 = vpop.f32.mrf.mxu0
        %v878 = vadd.f32 0.0, %v877
        %v879 = vpop.f32.mrf.mxu0
        %880 = vdwg.mxu0
        %881 = vmatpush.bf16.xpose.msra.mxu0 0
        %882 = vmatpush.bf16.xpose.msra.mxu0 0
        %883 = vmatpush.bf16.xpose.msra.mxu0 0
        %884 = vmatpush.bf16.xpose.msra.mxu0 0
        %885 = vmatpush.bf16.xpose.msra.mxu0 0
        %886 = vmatpush.bf16.xpose.msra.mxu0 0
        %887 = vmatpush.bf16.xpose.msra.mxu0 0
        %888 = vmatpush.bf16.xpose.msra.mxu0 %v720
        %889 = vmatmul.bf16.gmra.mxu0 %v736
        %v890 = vpop.f32.mrf.mxu0
        %v891 = vadd.f32 0.0, %v890
        %v892 = vpop.f32.mrf.mxu0
        %893 = vdwg.mxu0
        %v894 = vpack.c.bf16 %v556, %v556
        %v895 = vpack.c.bf16 %v572, %v572
        %v896 = vpack.c.bf16 %v588, %v588
        %v897 = vpack.c.bf16 %v604, %v604
        %v898 = vpack.c.bf16 %v748, %v748
        %v899 = vpack.c.bf16 %v761, %v761
        %v900 = vpack.c.bf16 %v774, %v774
        %v901 = vpack.c.bf16 %v787, %v787
        %v902 = vpack.c.bf16 %v620, %v620
        %v903 = vpack.c.bf16 %v636, %v636
        %v904 = vpack.c.bf16 %v652, %v652
        %v905 = vpack.c.bf16 %v668, %v668
        %v906 = vpack.c.bf16 %v800, %v800
        %v907 = vpack.c.bf16 %v813, %v813
        %v908 = vpack.c.bf16 %v826, %v826
        %v909 = vpack.c.bf16 %v839, %v839
        %vm910 = vcmask 64512
        %v912 = vsel %vm910, %v894, 0
        %v915 = vsel %vm910, %v902, 0
        %917 = vmatpush.bf16.xpose.msra.mxu0 0
        %918 = vmatpush.bf16.xpose.msra.mxu0 0
        %919 = vmatpush.bf16.xpose.msra.mxu0 0
        %920 = vmatpush.bf16.xpose.msra.mxu0 0
        %921 = vmatpush.bf16.xpose.msra.mxu0 0
        %922 = vmatpush.bf16.xpose.msra.mxu0 0
        %923 = vmatpush.bf16.xpose.msra.mxu0 0
        %924 = vmatpush.bf16.xpose.msra.mxu0 %v915
        %925 = vmatmul.bf16.gmra.mxu0 %v912
        %v926 = vpop.f32.mrf.mxu0
        %v927 = vadd.f32 0.0, %v926
        %v928 = vpop.f32.mrf.mxu0
        %929 = vdwg.mxu0
        %v931 = vsel %vm910, %v895, 0
        %v934 = vsel %vm910, %v903, 0
        %936 = vmatpush.bf16.xpose.msra.mxu0 0
        %937 = vmatpush.bf16.xpose.msra.mxu0 0
        %938 = vmatpush.bf16.xpose.msra.mxu0 0
        %939 = vmatpush.bf16.xpose.msra.mxu0 0
        %940 = vmatpush.bf16.xpose.msra.mxu0 0
        %941 = vmatpush.bf16.xpose.msra.mxu0 0
        %942 = vmatpush.bf16.xpose.msra.mxu0 0
        %943 = vmatpush.bf16.xpose.msra.mxu0 %v934
        %944 = vmatmul.bf16.gmra.mxu0 %v931
        %v945 = vpop.f32.mrf.mxu0
        %v946 = vadd.f32 0.0, %v945
        %v947 = vpop.f32.mrf.mxu0
        %948 = vdwg.mxu0
        %v950 = vsel %vm910, %v896, 0
        %v953 = vsel %vm910, %v904, 0
        %955 = vmatpush.bf16.xpose.msra.mxu0 0
        %956 = vmatpush.bf16.xpose.msra.mxu0 0
        %957 = vmatpush.bf16.xpose.msra.mxu0 0
        %958 = vmatpush.bf16.xpose.msra.mxu0 0
        %959 = vmatpush.bf16.xpose.msra.mxu0 0
        %960 = vmatpush.bf16.xpose.msra.mxu0 0
        %961 = vmatpush.bf16.xpose.msra.mxu0 0
        %962 = vmatpush.bf16.xpose.msra.mxu0 %v953
        %963 = vmatmul.bf16.gmra.mxu0 %v950
        %v964 = vpop.f32.mrf.mxu0
        %v965 = vadd.f32 0.0, %v964
        %v966 = vpop.f32.mrf.mxu0
        %967 = vdwg.mxu0
        %v969 = vsel %vm910, %v897, 0
        %v972 = vsel %vm910, %v905, 0
        %974 = vmatpush.bf16.xpose.msra.mxu0 0
        %975 = vmatpush.bf16.xpose.msra.mxu0 0
        %976 = vmatpush.bf16.xpose.msra.mxu0 0
        %977 = vmatpush.bf16.xpose.msra.mxu0 0
        %978 = vmatpush.bf16.xpose.msra.mxu0 0
        %979 = vmatpush.bf16.xpose.msra.mxu0 0
        %980 = vmatpush.bf16.xpose.msra.mxu0 0
        %981 = vmatpush.bf16.xpose.msra.mxu0 %v972
        %982 = vmatmul.bf16.gmra.mxu0 %v969
        %v983 = vpop.f32.mrf.mxu0
        %v984 = vadd.f32 0.0, %v983
        %v985 = vpop.f32.mrf.mxu0
        %986 = vdwg.mxu0
        %v988 = vsel %vm910, %v898, 0
        %v991 = vsel %vm910, %v906, 0
        %993 = vmatpush.bf16.xpose.msra.mxu0 0
        %994 = vmatpush.bf16.xpose.msra.mxu0 0
        %995 = vmatpush.bf16.xpose.msra.mxu0 0
        %996 = vmatpush.bf16.xpose.msra.mxu0 0
        %997 = vmatpush.bf16.xpose.msra.mxu0 0
        %998 = vmatpush.bf16.xpose.msra.mxu0 0
        %999 = vmatpush.bf16.xpose.msra.mxu0 0
        %1000 = vmatpush.bf16.xpose.msra.mxu0 %v991
        %1001 = vmatmul.bf16.gmra.mxu0 %v988
        %v1002 = vpop.f32.mrf.mxu0
        %v1003 = vadd.f32 0.0, %v1002
        %v1004 = vpop.f32.mrf.mxu0
        %1005 = vdwg.mxu0
        %v1007 = vsel %vm910, %v899, 0
        %v1010 = vsel %vm910, %v907, 0
        %1012 = vmatpush.bf16.xpose.msra.mxu0 0
        %1013 = vmatpush.bf16.xpose.msra.mxu0 0
        %1014 = vmatpush.bf16.xpose.msra.mxu0 0
        %1015 = vmatpush.bf16.xpose.msra.mxu0 0
        %1016 = vmatpush.bf16.xpose.msra.mxu0 0
        %1017 = vmatpush.bf16.xpose.msra.mxu0 0
        %1018 = vmatpush.bf16.xpose.msra.mxu0 0
        %1019 = vmatpush.bf16.xpose.msra.mxu0 %v1010
        %1020 = vmatmul.bf16.gmra.mxu0 %v1007
        %v1021 = vpop.f32.mrf.mxu0
        %v1022 = vadd.f32 0.0, %v1021
        %v1023 = vpop.f32.mrf.mxu0
        %1024 = vdwg.mxu0
        %v1026 = vsel %vm910, %v900, 0
        %v1029 = vsel %vm910, %v908, 0
        %1031 = vmatpush.bf16.xpose.msra.mxu0 0
        %1032 = vmatpush.bf16.xpose.msra.mxu0 0
        %1033 = vmatpush.bf16.xpose.msra.mxu0 0
        %1034 = vmatpush.bf16.xpose.msra.mxu0 0
        %1035 = vmatpush.bf16.xpose.msra.mxu0 0
        %1036 = vmatpush.bf16.xpose.msra.mxu0 0
        %1037 = vmatpush.bf16.xpose.msra.mxu0 0
        %1038 = vmatpush.bf16.xpose.msra.mxu0 %v1029
        %1039 = vmatmul.bf16.gmra.mxu0 %v1026
        %v1040 = vpop.f32.mrf.mxu0
        %v1041 = vadd.f32 0.0, %v1040
        %v1042 = vpop.f32.mrf.mxu0
        %1043 = vdwg.mxu0
        %v1045 = vsel %vm910, %v901, 0
        %v1048 = vsel %vm910, %v909, 0
        %1050 = vmatpush.bf16.xpose.msra.mxu0 0
        %1051 = vmatpush.bf16.xpose.msra.mxu0 0
        %1052 = vmatpush.bf16.xpose.msra.mxu0 0
        %1053 = vmatpush.bf16.xpose.msra.mxu0 0
        %1054 = vmatpush.bf16.xpose.msra.mxu0 0
        %1055 = vmatpush.bf16.xpose.msra.mxu0 0
        %1056 = vmatpush.bf16.xpose.msra.mxu0 0
        %1057 = vmatpush.bf16.xpose.msra.mxu0 %v1048
        %1058 = vmatmul.bf16.gmra.mxu0 %v1045
        %v1059 = vpop.f32.mrf.mxu0
        %v1060 = vadd.f32 0.0, %v1059
        %v1061 = vpop.f32.mrf.mxu0
        %1062 = vdwg.mxu0
        %v1063 = vmul.f32 %v927, 0.35355338
        %v1064 = vmul.f32 %v946, 0.35355338
        %v1065 = vmul.f32 %v965, 0.35355338
        %v1066 = vmul.f32 %v984, 0.35355338
        %v1067 = vmul.f32 %v1003, 0.35355338
        %v1068 = vmul.f32 %v1022, 0.35355338
        %v1069 = vmul.f32 %v1041, 0.35355338
        %v1070 = vmul.f32 %v1060, 0.35355338
        %v1071 = vadd.f32 %v1063, %v535
        %v1072 = vadd.f32 %v1064, %v535
        %v1073 = vadd.f32 %v1065, %v535
        %v1074 = vadd.f32 %v1066, %v535
        %v1075 = vadd.f32 %v1067, %v536
        %v1076 = vadd.f32 %v1068, %v536
        %v1077 = vadd.f32 %v1069, %v536
        %v1078 = vadd.f32 %v1070, %v536
        %v1079 = vsel %vm910, %v1071, -inf
        %1080 = vmax.xlane.f32.xlu0 %v1079
        %v1081 = vpop.xlane.xlu0 %1080
        %v1082 = vsel %vm910, %v1072, -inf
        %1083 = vmax.xlane.f32.xlu0 %v1082
        %v1084 = vpop.xlane.xlu0 %1083
        %v1085 = vsel %vm910, %v1073, -inf
        %1086 = vmax.xlane.f32.xlu0 %v1085
        %v1087 = vpop.xlane.xlu0 %1086
        %v1088 = vsel %vm910, %v1074, -inf
        %1089 = vmax.xlane.f32.xlu0 %v1088
        %v1090 = vpop.xlane.xlu0 %1089
        %v1091 = vsel %vm910, %v1075, -inf
        %1092 = vmax.xlane.f32.xlu0 %v1091
        %v1093 = vpop.xlane.xlu0 %1092
        %v1094 = vsel %vm910, %v1076, -inf
        %1095 = vmax.xlane.f32.xlu0 %v1094
        %v1096 = vpop.xlane.xlu0 %1095
        %v1097 = vsel %vm910, %v1077, -inf
        %1098 = vmax.xlane.f32.xlu0 %v1097
        %v1099 = vpop.xlane.xlu0 %1098
        %v1100 = vsel %vm910, %v1078, -inf
        %1101 = vmax.xlane.f32.xlu0 %v1100
        %v1102 = vpop.xlane.xlu0 %1101
        %v1103 = vsub.f32 %v1071, %v1081
        %v1104 = vsub.f32 %v1072, %v1084
        %v1105 = vsub.f32 %v1073, %v1087
        %v1106 = vsub.f32 %v1074, %v1090
        %v1107 = vsub.f32 %v1075, %v1093
        %v1108 = vsub.f32 %v1076, %v1096
        %v1109 = vsub.f32 %v1077, %v1099
        %v1110 = vsub.f32 %v1078, %v1102
        %v1111 = vmul.f32 %v1103, 1.442695
        %v1112 = vpow.pop %v1111
        %v1113 = vmul.f32 %v1104, 1.442695
        %v1114 = vpow.pop %v1113
        %v1115 = vmul.f32 %v1105, 1.442695
        %v1116 = vpow.pop %v1115
        %v1117 = vmul.f32 %v1106, 1.442695
        %v1118 = vpow.pop %v1117
        %v1119 = vmul.f32 %v1107, 1.442695
        %v1120 = vpow.pop %v1119
        %v1121 = vmul.f32 %v1108, 1.442695
        %v1122 = vpow.pop %v1121
        %v1123 = vmul.f32 %v1109, 1.442695
        %v1124 = vpow.pop %v1123
        %v1125 = vmul.f32 %v1110, 1.442695
        %v1126 = vpow.pop %v1125
        %v1127 = vsel %vm910, %v1112, 0.0
        %1128 = vadd.xlane.f32.xlu0 %v1127
        %v1129 = vpop.xlane.xlu0 %1128
        %v1130 = vsel %vm910, %v1114, 0.0
        %1131 = vadd.xlane.f32.xlu0 %v1130
        %v1132 = vpop.xlane.xlu0 %1131
        %v1133 = vsel %vm910, %v1116, 0.0
        %1134 = vadd.xlane.f32.xlu0 %v1133
        %v1135 = vpop.xlane.xlu0 %1134
        %v1136 = vsel %vm910, %v1118, 0.0
        %1137 = vadd.xlane.f32.xlu0 %v1136
        %v1138 = vpop.xlane.xlu0 %1137
        %v1139 = vsel %vm910, %v1120, 0.0
        %1140 = vadd.xlane.f32.xlu0 %v1139
        %v1141 = vpop.xlane.xlu0 %1140
        %v1142 = vsel %vm910, %v1122, 0.0
        %1143 = vadd.xlane.f32.xlu0 %v1142
        %v1144 = vpop.xlane.xlu0 %1143
        %v1145 = vsel %vm910, %v1124, 0.0
        %1146 = vadd.xlane.f32.xlu0 %v1145
        %v1147 = vpop.xlane.xlu0 %1146
        %v1148 = vsel %vm910, %v1126, 0.0
        %1149 = vadd.xlane.f32.xlu0 %v1148
        %v1150 = vpop.xlane.xlu0 %1149
        %v1151 = vrcp.pop %v1129
        %v1152 = vrcp.pop %v1132
        %v1153 = vrcp.pop %v1135
        %v1154 = vrcp.pop %v1138
        %v1155 = vrcp.pop %v1141
        %v1156 = vrcp.pop %v1144
        %v1157 = vrcp.pop %v1147
        %v1158 = vrcp.pop %v1150
        %v1159 = vmul.f32 %v1112, %v1151
        %v1160 = vmul.f32 %v1114, %v1152
        %v1161 = vmul.f32 %v1116, %v1153
        %v1162 = vmul.f32 %v1118, %v1154
        %v1163 = vmul.f32 %v1120, %v1155
        %v1164 = vmul.f32 %v1122, %v1156
        %v1165 = vmul.f32 %v1124, %v1157
        %v1166 = vmul.f32 %v1126, %v1158
        %v1167 = vpack.c.bf16 %v1159, %v1159
        %v1168 = vpack.c.bf16 %v1160, %v1160
        %v1169 = vpack.c.bf16 %v1161, %v1161
        %v1170 = vpack.c.bf16 %v1162, %v1162
        %v1171 = vpack.c.bf16 %v1163, %v1163
        %v1172 = vpack.c.bf16 %v1164, %v1164
        %v1173 = vpack.c.bf16 %v1165, %v1165
        %v1174 = vpack.c.bf16 %v1166, %v1166
        %v1175 = vpack.c.bf16 %v684, %v684
        %v1176 = vpack.c.bf16 %v700, %v700
        %v1177 = vpack.c.bf16 %v716, %v716
        %v1178 = vpack.c.bf16 %v732, %v732
        %v1179 = vpack.c.bf16 %v852, %v852
        %v1180 = vpack.c.bf16 %v865, %v865
        %v1181 = vpack.c.bf16 %v878, %v878
        %v1182 = vpack.c.bf16 %v891, %v891
        %v1184 = vsel %vm910, %v1167, 0
        %vm1186 = vcmask 1043456
        %v1188 = vsel %vm1186, %v1175, 0
        %1190 = vmatpush.bf16.msra.mxu0 0
        %1191 = vmatpush.bf16.msra.mxu0 0
        %1192 = vmatpush.bf16.msra.mxu0 0
        %1193 = vmatpush.bf16.msra.mxu0 0
        %1194 = vmatpush.bf16.msra.mxu0 0
        %1195 = vmatpush.bf16.msra.mxu0 0
        %1196 = vmatpush.bf16.msra.mxu0 0
        %1197 = vmatpush.bf16.msra.mxu0 %v1188
        %1198 = vmatmul.bf16.gmra.mxu0 %v1184
        %v1199 = vpop.f32.mrf.mxu0
        %v1200 = vadd.f32 0.0, %v1199
        %v1201 = vpop.f32.mrf.mxu0
        %1202 = vdwg.mxu0
        %v1204 = vsel %vm910, %v1168, 0
        %v1207 = vsel %vm1186, %v1176, 0
        %1209 = vmatpush.bf16.msra.mxu0 0
        %1210 = vmatpush.bf16.msra.mxu0 0
        %1211 = vmatpush.bf16.msra.mxu0 0
        %1212 = vmatpush.bf16.msra.mxu0 0
        %1213 = vmatpush.bf16.msra.mxu0 0
        %1214 = vmatpush.bf16.msra.mxu0 0
        %1215 = vmatpush.bf16.msra.mxu0 0
        %1216 = vmatpush.bf16.msra.mxu0 %v1207
        %1217 = vmatmul.bf16.gmra.mxu0 %v1204
        %v1218 = vpop.f32.mrf.mxu0
        %v1219 = vadd.f32 0.0, %v1218
        %v1220 = vpop.f32.mrf.mxu0
        %1221 = vdwg.mxu0
        %v1223 = vsel %vm910, %v1169, 0
        %v1226 = vsel %vm1186, %v1177, 0
        %1228 = vmatpush.bf16.msra.mxu0 0
        %1229 = vmatpush.bf16.msra.mxu0 0
        %1230 = vmatpush.bf16.msra.mxu0 0
        %1231 = vmatpush.bf16.msra.mxu0 0
        %1232 = vmatpush.bf16.msra.mxu0 0
        %1233 = vmatpush.bf16.msra.mxu0 0
        %1234 = vmatpush.bf16.msra.mxu0 0
        %1235 = vmatpush.bf16.msra.mxu0 %v1226
        %1236 = vmatmul.bf16.gmra.mxu0 %v1223
        %v1237 = vpop.f32.mrf.mxu0
        %v1238 = vadd.f32 0.0, %v1237
        %v1239 = vpop.f32.mrf.mxu0
        %1240 = vdwg.mxu0
        %v1242 = vsel %vm910, %v1170, 0
        %v1245 = vsel %vm1186, %v1178, 0
        %1247 = vmatpush.bf16.msra.mxu0 0
        %1248 = vmatpush.bf16.msra.mxu0 0
        %1249 = vmatpush.bf16.msra.mxu0 0
        %1250 = vmatpush.bf16.msra.mxu0 0
        %1251 = vmatpush.bf16.msra.mxu0 0
        %1252 = vmatpush.bf16.msra.mxu0 0
        %1253 = vmatpush.bf16.msra.mxu0 0
        %1254 = vmatpush.bf16.msra.mxu0 %v1245
        %1255 = vmatmul.bf16.gmra.mxu0 %v1242
        %v1256 = vpop.f32.mrf.mxu0
        %v1257 = vadd.f32 0.0, %v1256
        %v1258 = vpop.f32.mrf.mxu0
        %1259 = vdwg.mxu0
        %v1261 = vsel %vm910, %v1171, 0
        %v1264 = vsel %vm1186, %v1179, 0
        %1266 = vmatpush.bf16.msra.mxu0 0
        %1267 = vmatpush.bf16.msra.mxu0 0
        %1268 = vmatpush.bf16.msra.mxu0 0
        %1269 = vmatpush.bf16.msra.mxu0 0
        %1270 = vmatpush.bf16.msra.mxu0 0
        %1271 = vmatpush.bf16.msra.mxu0 0
        %1272 = vmatpush.bf16.msra.mxu0 0
        %1273 = vmatpush.bf16.msra.mxu0 %v1264
        %1274 = vmatmul.bf16.gmra.mxu0 %v1261
        %v1275 = vpop.f32.mrf.mxu0
        %v1276 = vadd.f32 0.0, %v1275
        %v1277 = vpop.f32.mrf.mxu0
        %1278 = vdwg.mxu0
        %v1280 = vsel %vm910, %v1172, 0
        %v1283 = vsel %vm1186, %v1180, 0
        %1285 = vmatpush.bf16.msra.mxu0 0
        %1286 = vmatpush.bf16.msra.mxu0 0
        %1287 = vmatpush.bf16.msra.mxu0 0
        %1288 = vmatpush.bf16.msra.mxu0 0
        %1289 = vmatpush.bf16.msra.mxu0 0
        %1290 = vmatpush.bf16.msra.mxu0 0
        %1291 = vmatpush.bf16.msra.mxu0 0
        %1292 = vmatpush.bf16.msra.mxu0 %v1283
        %1293 = vmatmul.bf16.gmra.mxu0 %v1280
        %v1294 = vpop.f32.mrf.mxu0
        %v1295 = vadd.f32 0.0, %v1294
        %v1296 = vpop.f32.mrf.mxu0
        %1297 = vdwg.mxu0
        %v1299 = vsel %vm910, %v1173, 0
        %v1302 = vsel %vm1186, %v1181, 0
        %1304 = vmatpush.bf16.msra.mxu0 0
        %1305 = vmatpush.bf16.msra.mxu0 0
        %1306 = vmatpush.bf16.msra.mxu0 0
        %1307 = vmatpush.bf16.msra.mxu0 0
        %1308 = vmatpush.bf16.msra.mxu0 0
        %1309 = vmatpush.bf16.msra.mxu0 0
        %1310 = vmatpush.bf16.msra.mxu0 0
        %1311 = vmatpush.bf16.msra.mxu0 %v1302
        %1312 = vmatmul.bf16.gmra.mxu0 %v1299
        %v1313 = vpop.f32.mrf.mxu0
        %v1314 = vadd.f32 0.0, %v1313
        %v1315 = vpop.f32.mrf.mxu0
        %1316 = vdwg.mxu0
        %v1318 = vsel %vm910, %v1174, 0
        %v1321 = vsel %vm1186, %v1182, 0
        %1323 = vmatpush.bf16.msra.mxu0 0
        %1324 = vmatpush.bf16.msra.mxu0 0
        %1325 = vmatpush.bf16.msra.mxu0 0
        %1326 = vmatpush.bf16.msra.mxu0 0
        %1327 = vmatpush.bf16.msra.mxu0 0
        %1328 = vmatpush.bf16.msra.mxu0 0
        %1329 = vmatpush.bf16.msra.mxu0 0
        %1330 = vmatpush.bf16.msra.mxu0 %v1321
        %1331 = vmatmul.bf16.gmra.mxu0 %v1318
        %v1332 = vpop.f32.mrf.mxu0
        %v1333 = vadd.f32 0.0, %v1332
        %v1334 = vpop.f32.mrf.mxu0
        %1335 = vdwg.mxu0
        %v1336 = vpack.c.bf16 %v1200, %v1200
        %v1337 = vpack.c.bf16 %v1219, %v1219
        %v1338 = vpack.c.bf16 %v1238, %v1238
        %v1339 = vpack.c.bf16 %v1257, %v1257
        %v1340 = vpack.c.bf16 %v1276, %v1276
        %v1341 = vpack.c.bf16 %v1295, %v1295
        %v1342 = vpack.c.bf16 %v1314, %v1314
        %v1343 = vpack.c.bf16 %v1333, %v1333
        %v1345 = vsel %vm910, %v1336, 0
        %v1348 = vsel %vm1186, %v515, 0
        %1350 = vmatpush.bf16.msra.mxu0 0
        %1351 = vmatpush.bf16.msra.mxu0 0
        %1352 = vmatpush.bf16.msra.mxu0 0
        %1353 = vmatpush.bf16.msra.mxu0 0
        %1354 = vmatpush.bf16.msra.mxu0 0
        %1355 = vmatpush.bf16.msra.mxu0 0
        %1356 = vmatpush.bf16.msra.mxu0 0
        %1357 = vmatpush.bf16.msra.mxu0 %v1348
        %1358 = vmatmul.bf16.gmra.mxu0 %v1345
        %v1359 = vpop.f32.mrf.mxu0
        %v1360 = vadd.f32 0.0, %v1359
        %v1361 = vpop.f32.mrf.mxu0
        %1362 = vdwg.mxu0
        %v1364 = vsel %vm910, %v1337, 0
        %v1367 = vsel %vm1186, %v516, 0
        %1369 = vmatpush.bf16.msra.mxu0 0
        %1370 = vmatpush.bf16.msra.mxu0 0
        %1371 = vmatpush.bf16.msra.mxu0 0
        %1372 = vmatpush.bf16.msra.mxu0 0
        %1373 = vmatpush.bf16.msra.mxu0 0
        %1374 = vmatpush.bf16.msra.mxu0 0
        %1375 = vmatpush.bf16.msra.mxu0 0
        %1376 = vmatpush.bf16.msra.mxu0 %v1367
        %1377 = vmatmul.bf16.gmra.mxu0 %v1364
        %v1378 = vpop.f32.mrf.mxu0
        %v1379 = vadd.f32 0.0, %v1378
        %v1380 = vpop.f32.mrf.mxu0
        %1381 = vdwg.mxu0
        %v1383 = vsel %vm910, %v1338, 0
        %v1386 = vsel %vm1186, %v517, 0
        %1388 = vmatpush.bf16.msra.mxu0 0
        %1389 = vmatpush.bf16.msra.mxu0 0
        %1390 = vmatpush.bf16.msra.mxu0 0
        %1391 = vmatpush.bf16.msra.mxu0 0
        %1392 = vmatpush.bf16.msra.mxu0 0
        %1393 = vmatpush.bf16.msra.mxu0 0
        %1394 = vmatpush.bf16.msra.mxu0 0
        %1395 = vmatpush.bf16.msra.mxu0 %v1386
        %1396 = vmatmul.bf16.gmra.mxu0 %v1383
        %v1397 = vpop.f32.mrf.mxu0
        %v1398 = vadd.f32 0.0, %v1397
        %v1399 = vpop.f32.mrf.mxu0
        %1400 = vdwg.mxu0
        %v1402 = vsel %vm910, %v1339, 0
        %v1405 = vsel %vm1186, %v518, 0
        %1407 = vmatpush.bf16.msra.mxu0 0
        %1408 = vmatpush.bf16.msra.mxu0 0
        %1409 = vmatpush.bf16.msra.mxu0 0
        %1410 = vmatpush.bf16.msra.mxu0 0
        %1411 = vmatpush.bf16.msra.mxu0 0
        %1412 = vmatpush.bf16.msra.mxu0 0
        %1413 = vmatpush.bf16.msra.mxu0 0
        %1414 = vmatpush.bf16.msra.mxu0 %v1405
        %1415 = vmatmul.bf16.gmra.mxu0 %v1402
        %v1416 = vpop.f32.mrf.mxu0
        %v1417 = vadd.f32 0.0, %v1416
        %v1418 = vpop.f32.mrf.mxu0
        %1419 = vdwg.mxu0
        %v1421 = vsel %vm910, %v1340, 0
        %1423 = vmatpush.bf16.msra.mxu0 0
        %1424 = vmatpush.bf16.msra.mxu0 0
        %1425 = vmatpush.bf16.msra.mxu0 0
        %1426 = vmatpush.bf16.msra.mxu0 0
        %1427 = vmatpush.bf16.msra.mxu0 0
        %1428 = vmatpush.bf16.msra.mxu0 0
        %1429 = vmatpush.bf16.msra.mxu0 0
        %1430 = vmatpush.bf16.msra.mxu0 %v1348
        %1431 = vmatmul.bf16.gmra.mxu0 %v1421
        %v1432 = vpop.f32.mrf.mxu0
        %v1433 = vadd.f32 0.0, %v1432
        %v1434 = vpop.f32.mrf.mxu0
        %1435 = vdwg.mxu0
        %v1437 = vsel %vm910, %v1341, 0
        %1439 = vmatpush.bf16.msra.mxu0 0
        %1440 = vmatpush.bf16.msra.mxu0 0
        %1441 = vmatpush.bf16.msra.mxu0 0
        %1442 = vmatpush.bf16.msra.mxu0 0
        %1443 = vmatpush.bf16.msra.mxu0 0
        %1444 = vmatpush.bf16.msra.mxu0 0
        %1445 = vmatpush.bf16.msra.mxu0 0
        %1446 = vmatpush.bf16.msra.mxu0 %v1367
        %1447 = vmatmul.bf16.gmra.mxu0 %v1437
        %v1448 = vpop.f32.mrf.mxu0
        %v1449 = vadd.f32 0.0, %v1448
        %v1450 = vpop.f32.mrf.mxu0
        %1451 = vdwg.mxu0
        %v1453 = vsel %vm910, %v1342, 0
        %1455 = vmatpush.bf16.msra.mxu0 0
        %1456 = vmatpush.bf16.msra.mxu0 0
        %1457 = vmatpush.bf16.msra.mxu0 0
        %1458 = vmatpush.bf16.msra.mxu0 0
        %1459 = vmatpush.bf16.msra.mxu0 0
        %1460 = vmatpush.bf16.msra.mxu0 0
        %1461 = vmatpush.bf16.msra.mxu0 0
        %1462 = vmatpush.bf16.msra.mxu0 %v1386
        %1463 = vmatmul.bf16.gmra.mxu0 %v1453
        %v1464 = vpop.f32.mrf.mxu0
        %v1465 = vadd.f32 0.0, %v1464
        %v1466 = vpop.f32.mrf.mxu0
        %1467 = vdwg.mxu0
        %v1469 = vsel %vm910, %v1343, 0
        %1471 = vmatpush.bf16.msra.mxu0 0
        %1472 = vmatpush.bf16.msra.mxu0 0
        %1473 = vmatpush.bf16.msra.mxu0 0
        %1474 = vmatpush.bf16.msra.mxu0 0
        %1475 = vmatpush.bf16.msra.mxu0 0
        %1476 = vmatpush.bf16.msra.mxu0 0
        %1477 = vmatpush.bf16.msra.mxu0 0
        %1478 = vmatpush.bf16.msra.mxu0 %v1405
        %1479 = vmatmul.bf16.gmra.mxu0 %v1469
        %v1480 = vpop.f32.mrf.mxu0
        %v1481 = vadd.f32 0.0, %v1480
        %v1482 = vpop.f32.mrf.mxu0
        %1483 = vdwg.mxu0
        %v1484 = vadd.f32 %v1360, %v1379
        %v1485 = vadd.f32 %v1433, %v1449
        %v1486 = vadd.f32 %v1484, %v1398
        %v1487 = vadd.f32 %v1485, %v1465
        %v1488 = vadd.f32 %v1486, %v1417
        %v1489 = vadd.f32 %v1487, %v1481
        %v1490 = vperm.slane %v500, 0
        %v1491 = vadd.f32 %v1488, %v1490
        %v1492 = vadd.f32 %v1489, %v1490
        %v1493 = vadd.f32 %v494, %v1491
        %v1494 = vadd.f32 %v495, %v1492
        %v1495 = vsel %vm539, %v1493, 0.0
        %1496 = vadd.xlane.f32.xlu0 %v1495
        %v1497 = vpop.xlane.xlu0 %1496
        %v1498 = vsel %vm539, %v1494, 0.0
        %1499 = vadd.xlane.f32.xlu0 %v1498
        %v1500 = vpop.xlane.xlu0 %1499
        %v1501 = vrcp.pop 32.0
        %v1502 = vmul.f32 32.0, %v1501
        %v1503 = vsub.f32 1.0, %v1502
        %v1504 = vmul.f32 %v1501, %v1503
        %v1505 = vadd.f32 %v1501, %v1504
        %vm1506 = vweird.f32 %v1501
        %v1507 = vsel %vm1506, %v1501, %v1505
        %v1508 = vmul.f32 %v1497, %v1507
        %v1509 = vmul.f32 %v1500, %v1507
        %v1510 = vsub.f32 %v1493, %v1508
        %v1511 = vsub.f32 %v1494, %v1509
        %v1512 = vmul.f32 %v1510, %v1510
        %v1513 = vmul.f32 %v1511, %v1511
        %v1514 = vsel %vm539, %v1512, 0.0
        %1515 = vadd.xlane.f32.xlu0 %v1514
        %v1516 = vpop.xlane.xlu0 %1515
        %v1517 = vsel %vm539, %v1513, 0.0
        %1518 = vadd.xlane.f32.xlu0 %v1517
        %v1519 = vpop.xlane.xlu0 %1518
        %v1520 = vmul.f32 %v1516, %v1507
        %v1521 = vmul.f32 %v1519, %v1507
        %v1522 = vadd.f32 %v1520, 1e-05
        %v1523 = vadd.f32 %v1521, 1e-05
        %v1524 = vrsqrt.pop %v1522
        %v1525 = vmul.f32 %v1524, %v1522
        %v1526 = vmul.f32 %v1525, %v1524
        %v1527 = vmul.f32 0.5, %v1526
        %v1528 = vsub.f32 1.5, %v1527
        %v1529 = vmul.f32 %v1524, %v1528
        %vm1530 = vweird.f32 %v1522
        %vm1531 = vweird.f32 %v1524
        %vm1532 = vmor %vm1530, %vm1531
        %v1533 = vsel %vm1532, %v1524, %v1529
        %v1534 = vrsqrt.pop %v1523
        %v1535 = vmul.f32 %v1534, %v1523
        %v1536 = vmul.f32 %v1535, %v1534
        %v1537 = vmul.f32 0.5, %v1536
        %v1538 = vsub.f32 1.5, %v1537
        %v1539 = vmul.f32 %v1534, %v1538
        %vm1540 = vweird.f32 %v1523
        %vm1541 = vweird.f32 %v1534
        %vm1542 = vmor %vm1540, %vm1541
        %v1543 = vsel %vm1542, %v1534, %v1539
        %v1544 = vmul.f32 %v1510, %v1533
        %v1545 = vmul.f32 %v1511, %v1543
        %v1546 = vperm.slane %v500, 3
        %v1547 = vmul.f32 %v1544, %v1546
        %v1548 = vmul.f32 %v1545, %v1546
        %v1549 = vperm.slane %v500, 4
        %v1550 = vadd.f32 %v1547, %v1549
        %v1551 = vadd.f32 %v1548, %v1549
        %v1552 = vld [vmem:[%s3] sm:$0xff]
        %v1553 = vld [vmem:[%s3 + $0x8] sm:$0xff]
        %v1554 = vpack.c.bf16 %v1550, %v1550
        %v1555 = vpack.c.bf16 %v1551, %v1551
        %v1557 = vsel %vm539, %v1554, 0
        %v1560 = vsel %vm539, %v519, 0
        %1562 = vmatpush.bf16.xpose.msra.mxu0 0
        %1563 = vmatpush.bf16.xpose.msra.mxu0 0
        %1564 = vmatpush.bf16.xpose.msra.mxu0 0
        %1565 = vmatpush.bf16.xpose.msra.mxu0 0
        %1566 = vmatpush.bf16.xpose.msra.mxu0 0
        %1567 = vmatpush.bf16.xpose.msra.mxu0 0
        %1568 = vmatpush.bf16.xpose.msra.mxu0 0
        %1569 = vmatpush.bf16.xpose.msra.mxu0 %v1560
        %1570 = vmatmul.bf16.gmra.mxu0 %v1557
        %v1571 = vpop.f32.mrf.mxu0
        %v1572 = vadd.f32 0.0, %v1571
        %v1573 = vpop.f32.mrf.mxu0
        %1574 = vdwg.mxu0
        %v1576 = vsel %vm539, %v520, 0
        %1578 = vmatpush.bf16.xpose.msra.mxu0 0
        %1579 = vmatpush.bf16.xpose.msra.mxu0 0
        %1580 = vmatpush.bf16.xpose.msra.mxu0 0
        %1581 = vmatpush.bf16.xpose.msra.mxu0 0
        %1582 = vmatpush.bf16.xpose.msra.mxu0 0
        %1583 = vmatpush.bf16.xpose.msra.mxu0 0
        %1584 = vmatpush.bf16.xpose.msra.mxu0 0
        %1585 = vmatpush.bf16.xpose.msra.mxu0 %v1576
        %1586 = vmatmul.bf16.gmra.mxu0 %v1557
        %v1587 = vpop.f32.mrf.mxu0
        %v1588 = vadd.f32 0.0, %v1587
        %v1589 = vpop.f32.mrf.mxu0
        %1590 = vdwg.mxu0
        %v1592 = vsel %vm539, %v521, 0
        %1594 = vmatpush.bf16.xpose.msra.mxu0 0
        %1595 = vmatpush.bf16.xpose.msra.mxu0 0
        %1596 = vmatpush.bf16.xpose.msra.mxu0 0
        %1597 = vmatpush.bf16.xpose.msra.mxu0 0
        %1598 = vmatpush.bf16.xpose.msra.mxu0 0
        %1599 = vmatpush.bf16.xpose.msra.mxu0 0
        %1600 = vmatpush.bf16.xpose.msra.mxu0 0
        %1601 = vmatpush.bf16.xpose.msra.mxu0 %v1592
        %1602 = vmatmul.bf16.gmra.mxu0 %v1557
        %v1603 = vpop.f32.mrf.mxu0
        %v1604 = vadd.f32 0.0, %v1603
        %v1605 = vpop.f32.mrf.mxu0
        %1606 = vdwg.mxu0
        %v1608 = vsel %vm539, %v522, 0
        %1610 = vmatpush.bf16.xpose.msra.mxu0 0
        %1611 = vmatpush.bf16.xpose.msra.mxu0 0
        %1612 = vmatpush.bf16.xpose.msra.mxu0 0
        %1613 = vmatpush.bf16.xpose.msra.mxu0 0
        %1614 = vmatpush.bf16.xpose.msra.mxu0 0
        %1615 = vmatpush.bf16.xpose.msra.mxu0 0
        %1616 = vmatpush.bf16.xpose.msra.mxu0 0
        %1617 = vmatpush.bf16.xpose.msra.mxu0 %v1608
        %1618 = vmatmul.bf16.gmra.mxu0 %v1557
        %v1619 = vpop.f32.mrf.mxu0
        %v1620 = vadd.f32 0.0, %v1619
        %v1621 = vpop.f32.mrf.mxu0
        %1622 = vdwg.mxu0
        %v1624 = vsel %vm539, %v1555, 0
        %1626 = vmatpush.bf16.xpose.msra.mxu0 0
        %1627 = vmatpush.bf16.xpose.msra.mxu0 0
        %1628 = vmatpush.bf16.xpose.msra.mxu0 0
        %1629 = vmatpush.bf16.xpose.msra.mxu0 0
        %1630 = vmatpush.bf16.xpose.msra.mxu0 0
        %1631 = vmatpush.bf16.xpose.msra.mxu0 0
        %1632 = vmatpush.bf16.xpose.msra.mxu0 0
        %1633 = vmatpush.bf16.xpose.msra.mxu0 %v1560
        %1634 = vmatmul.bf16.gmra.mxu0 %v1624
        %v1635 = vpop.f32.mrf.mxu0
        %v1636 = vadd.f32 0.0, %v1635
        %v1637 = vpop.f32.mrf.mxu0
        %1638 = vdwg.mxu0
        %1639 = vmatpush.bf16.xpose.msra.mxu0 0
        %1640 = vmatpush.bf16.xpose.msra.mxu0 0
        %1641 = vmatpush.bf16.xpose.msra.mxu0 0
        %1642 = vmatpush.bf16.xpose.msra.mxu0 0
        %1643 = vmatpush.bf16.xpose.msra.mxu0 0
        %1644 = vmatpush.bf16.xpose.msra.mxu0 0
        %1645 = vmatpush.bf16.xpose.msra.mxu0 0
        %1646 = vmatpush.bf16.xpose.msra.mxu0 %v1576
        %1647 = vmatmul.bf16.gmra.mxu0 %v1624
        %v1648 = vpop.f32.mrf.mxu0
        %v1649 = vadd.f32 0.0, %v1648
        %v1650 = vpop.f32.mrf.mxu0
        %1651 = vdwg.mxu0
        %1652 = vmatpush.bf16.xpose.msra.mxu0 0
        %1653 = vmatpush.bf16.xpose.msra.mxu0 0
        %1654 = vmatpush.bf16.xpose.msra.mxu0 0
        %1655 = vmatpush.bf16.xpose.msra.mxu0 0
        %1656 = vmatpush.bf16.xpose.msra.mxu0 0
        %1657 = vmatpush.bf16.xpose.msra.mxu0 0
        %1658 = vmatpush.bf16.xpose.msra.mxu0 0
        %1659 = vmatpush.bf16.xpose.msra.mxu0 %v1592
        %1660 = vmatmul.bf16.gmra.mxu0 %v1624
        %v1661 = vpop.f32.mrf.mxu0
        %v1662 = vadd.f32 0.0, %v1661
        %v1663 = vpop.f32.mrf.mxu0
        %1664 = vdwg.mxu0
        %1665 = vmatpush.bf16.xpose.msra.mxu0 0
        %1666 = vmatpush.bf16.xpose.msra.mxu0 0
        %1667 = vmatpush.bf16.xpose.msra.mxu0 0
        %1668 = vmatpush.bf16.xpose.msra.mxu0 0
        %1669 = vmatpush.bf16.xpose.msra.mxu0 0
        %1670 = vmatpush.bf16.xpose.msra.mxu0 0
        %1671 = vmatpush.bf16.xpose.msra.mxu0 0
        %1672 = vmatpush.bf16.xpose.msra.mxu0 %v1608
        %1673 = vmatmul.bf16.gmra.mxu0 %v1624
        %v1674 = vpop.f32.mrf.mxu0
        %v1675 = vadd.f32 0.0, %v1674
        %v1676 = vpop.f32.mrf.mxu0
        %1677 = vdwg.mxu0
        %v1678 = vpack.c.bf16 %v496, %v496
        %v1679 = vpack.c.bf16 %v497, %v497
        %v1680 = vpack.c.bf16 %v498, %v498
        %v1681 = vpack.c.bf16 %v499, %v499
        %v1684 = vunpack.c.l.b16 %v1678
        %v1685 = vunpack.c.l.b16 %v1679
        %v1686 = vpack.c.b16 %v1685, %v1684
        %v1688 = vsel %vm539, %v1686, 0
        %v1691 = vsel %vm539, %v523, 0
        %1693 = vmatpush.bf16.xpose.msra.mxu0 0
        %1694 = vmatpush.bf16.xpose.msra.mxu0 0
        %1695 = vmatpush.bf16.xpose.msra.mxu0 0
        %1696 = vmatpush.bf16.xpose.msra.mxu0 0
        %1697 = vmatpush.bf16.xpose.msra.mxu0 0
        %1698 = vmatpush.bf16.xpose.msra.mxu0 0
        %1699 = vmatpush.bf16.xpose.msra.mxu0 0
        %1700 = vmatpush.bf16.xpose.msra.mxu0 %v1691
        %1701 = vmatmul.bf16.gmra.mxu0 %v1688
        %v1702 = vpop.f32.mrf.mxu0
        %v1703 = vadd.f32 0.0, %v1702
        %v1704 = vpop.f32.mrf.mxu0
        %v1705 = vadd.f32 0.0, %v1704
        %1706 = vdwg.mxu0
        %v1708 = vsel %vm539, %v524, 0
        %1710 = vmatpush.bf16.xpose.msra.mxu0 0
        %1711 = vmatpush.bf16.xpose.msra.mxu0 0
        %1712 = vmatpush.bf16.xpose.msra.mxu0 0
        %1713 = vmatpush.bf16.xpose.msra.mxu0 0
        %1714 = vmatpush.bf16.xpose.msra.mxu0 0
        %1715 = vmatpush.bf16.xpose.msra.mxu0 0
        %1716 = vmatpush.bf16.xpose.msra.mxu0 0
        %1717 = vmatpush.bf16.xpose.msra.mxu0 %v1708
        %1718 = vmatmul.bf16.gmra.mxu0 %v1688
        %v1719 = vpop.f32.mrf.mxu0
        %v1720 = vadd.f32 0.0, %v1719
        %v1721 = vpop.f32.mrf.mxu0
        %v1722 = vadd.f32 0.0, %v1721
        %1723 = vdwg.mxu0
        %v1725 = vsel %vm539, %v525, 0
        %1727 = vmatpush.bf16.xpose.msra.mxu0 0
        %1728 = vmatpush.bf16.xpose.msra.mxu0 0
        %1729 = vmatpush.bf16.xpose.msra.mxu0 0
        %1730 = vmatpush.bf16.xpose.msra.mxu0 0
        %1731 = vmatpush.bf16.xpose.msra.mxu0 0
        %1732 = vmatpush.bf16.xpose.msra.mxu0 0
        %1733 = vmatpush.bf16.xpose.msra.mxu0 0
        %1734 = vmatpush.bf16.xpose.msra.mxu0 %v1725
        %1735 = vmatmul.bf16.gmra.mxu0 %v1688
        %v1736 = vpop.f32.mrf.mxu0
        %v1737 = vadd.f32 0.0, %v1736
        %v1738 = vpop.f32.mrf.mxu0
        %v1739 = vadd.f32 0.0, %v1738
        %1740 = vdwg.mxu0
        %v1742 = vsel %vm539, %v526, 0
        %1744 = vmatpush.bf16.xpose.msra.mxu0 0
        %1745 = vmatpush.bf16.xpose.msra.mxu0 0
        %1746 = vmatpush.bf16.xpose.msra.mxu0 0
        %1747 = vmatpush.bf16.xpose.msra.mxu0 0
        %1748 = vmatpush.bf16.xpose.msra.mxu0 0
        %1749 = vmatpush.bf16.xpose.msra.mxu0 0
        %1750 = vmatpush.bf16.xpose.msra.mxu0 0
        %1751 = vmatpush.bf16.xpose.msra.mxu0 %v1742
        %1752 = vmatmul.bf16.gmra.mxu0 %v1688
        %v1753 = vpop.f32.mrf.mxu0
        %v1754 = vadd.f32 0.0, %v1753
        %v1755 = vpop.f32.mrf.mxu0
        %v1756 = vadd.f32 0.0, %v1755
        %1757 = vdwg.mxu0
        %v1759 = vsel %vm539, %v527, 0
        %1761 = vmatpush.bf16.xpose.msra.mxu0 0
        %1762 = vmatpush.bf16.xpose.msra.mxu0 0
        %1763 = vmatpush.bf16.xpose.msra.mxu0 0
        %1764 = vmatpush.bf16.xpose.msra.mxu0 0
        %1765 = vmatpush.bf16.xpose.msra.mxu0 0
        %1766 = vmatpush.bf16.xpose.msra.mxu0 0
        %1767 = vmatpush.bf16.xpose.msra.mxu0 0
        %1768 = vmatpush.bf16.xpose.msra.mxu0 %v1759
        %1769 = vmatmul.bf16.gmra.mxu0 %v1688
        %v1770 = vpop.f32.mrf.mxu0
        %v1771 = vadd.f32 0.0, %v1770
        %v1772 = vpop.f32.mrf.mxu0
        %v1773 = vadd.f32 0.0, %v1772
        %1774 = vdwg.mxu0
        %v1776 = vsel %vm539, %v528, 0
        %1778 = vmatpush.bf16.xpose.msra.mxu0 0
        %1779 = vmatpush.bf16.xpose.msra.mxu0 0
        %1780 = vmatpush.bf16.xpose.msra.mxu0 0
        %1781 = vmatpush.bf16.xpose.msra.mxu0 0
        %1782 = vmatpush.bf16.xpose.msra.mxu0 0
        %1783 = vmatpush.bf16.xpose.msra.mxu0 0
        %1784 = vmatpush.bf16.xpose.msra.mxu0 0
        %1785 = vmatpush.bf16.xpose.msra.mxu0 %v1776
        %1786 = vmatmul.bf16.gmra.mxu0 %v1688
        %v1787 = vpop.f32.mrf.mxu0
        %v1788 = vadd.f32 0.0, %v1787
        %v1789 = vpop.f32.mrf.mxu0
        %v1790 = vadd.f32 0.0, %v1789
        %1791 = vdwg.mxu0
        %v1793 = vsel %vm539, %v529, 0
        %1795 = vmatpush.bf16.xpose.msra.mxu0 0
        %1796 = vmatpush.bf16.xpose.msra.mxu0 0
        %1797 = vmatpush.bf16.xpose.msra.mxu0 0
        %1798 = vmatpush.bf16.xpose.msra.mxu0 0
        %1799 = vmatpush.bf16.xpose.msra.mxu0 0
        %1800 = vmatpush.bf16.xpose.msra.mxu0 0
        %1801 = vmatpush.bf16.xpose.msra.mxu0 0
        %1802 = vmatpush.bf16.xpose.msra.mxu0 %v1793
        %1803 = vmatmul.bf16.gmra.mxu0 %v1688
        %v1804 = vpop.f32.mrf.mxu0
        %v1805 = vadd.f32 0.0, %v1804
        %v1806 = vpop.f32.mrf.mxu0
        %v1807 = vadd.f32 0.0, %v1806
        %1808 = vdwg.mxu0
        %v1810 = vsel %vm539, %v530, 0
        %1812 = vmatpush.bf16.xpose.msra.mxu0 0
        %1813 = vmatpush.bf16.xpose.msra.mxu0 0
        %1814 = vmatpush.bf16.xpose.msra.mxu0 0
        %1815 = vmatpush.bf16.xpose.msra.mxu0 0
        %1816 = vmatpush.bf16.xpose.msra.mxu0 0
        %1817 = vmatpush.bf16.xpose.msra.mxu0 0
        %1818 = vmatpush.bf16.xpose.msra.mxu0 0
        %1819 = vmatpush.bf16.xpose.msra.mxu0 %v1810
        %1820 = vmatmul.bf16.gmra.mxu0 %v1688
        %v1821 = vpop.f32.mrf.mxu0
        %v1822 = vadd.f32 0.0, %v1821
        %v1823 = vpop.f32.mrf.mxu0
        %v1824 = vadd.f32 0.0, %v1823
        %1825 = vdwg.mxu0
        %v1828 = vunpack.c.l.b16 %v1680
        %v1829 = vunpack.c.l.b16 %v1681
        %v1830 = vpack.c.b16 %v1829, %v1828
        %v1832 = vsel %vm539, %v1830, 0
        %1834 = vmatpush.bf16.xpose.msra.mxu0 0
        %1835 = vmatpush.bf16.xpose.msra.mxu0 0
        %1836 = vmatpush.bf16.xpose.msra.mxu0 0
        %1837 = vmatpush.bf16.xpose.msra.mxu0 0
        %1838 = vmatpush.bf16.xpose.msra.mxu0 0
        %1839 = vmatpush.bf16.xpose.msra.mxu0 0
        %1840 = vmatpush.bf16.xpose.msra.mxu0 0
        %1841 = vmatpush.bf16.xpose.msra.mxu0 %v1691
        %1842 = vmatmul.bf16.gmra.mxu0 %v1832
        %v1843 = vpop.f32.mrf.mxu0
        %v1844 = vadd.f32 0.0, %v1843
        %v1845 = vpop.f32.mrf.mxu0
        %v1846 = vadd.f32 0.0, %v1845
        %1847 = vdwg.mxu0
        %1848 = vmatpush.bf16.xpose.msra.mxu0 0
        %1849 = vmatpush.bf16.xpose.msra.mxu0 0
        %1850 = vmatpush.bf16.xpose.msra.mxu0 0
        %1851 = vmatpush.bf16.xpose.msra.mxu0 0
        %1852 = vmatpush.bf16.xpose.msra.mxu0 0
        %1853 = vmatpush.bf16.xpose.msra.mxu0 0
        %1854 = vmatpush.bf16.xpose.msra.mxu0 0
        %1855 = vmatpush.bf16.xpose.msra.mxu0 %v1708
        %1856 = vmatmul.bf16.gmra.mxu0 %v1832
        %v1857 = vpop.f32.mrf.mxu0
        %v1858 = vadd.f32 0.0, %v1857
        %v1859 = vpop.f32.mrf.mxu0
        %v1860 = vadd.f32 0.0, %v1859
        %1861 = vdwg.mxu0
        %1862 = vmatpush.bf16.xpose.msra.mxu0 0
        %1863 = vmatpush.bf16.xpose.msra.mxu0 0
        %1864 = vmatpush.bf16.xpose.msra.mxu0 0
        %1865 = vmatpush.bf16.xpose.msra.mxu0 0
        %1866 = vmatpush.bf16.xpose.msra.mxu0 0
        %1867 = vmatpush.bf16.xpose.msra.mxu0 0
        %1868 = vmatpush.bf16.xpose.msra.mxu0 0
        %1869 = vmatpush.bf16.xpose.msra.mxu0 %v1725
        %1870 = vmatmul.bf16.gmra.mxu0 %v1832
        %v1871 = vpop.f32.mrf.mxu0
        %v1872 = vadd.f32 0.0, %v1871
        %v1873 = vpop.f32.mrf.mxu0
        %v1874 = vadd.f32 0.0, %v1873
        %1875 = vdwg.mxu0
        %1876 = vmatpush.bf16.xpose.msra.mxu0 0
        %1877 = vmatpush.bf16.xpose.msra.mxu0 0
        %1878 = vmatpush.bf16.xpose.msra.mxu0 0
        %1879 = vmatpush.bf16.xpose.msra.mxu0 0
        %1880 = vmatpush.bf16.xpose.msra.mxu0 0
        %1881 = vmatpush.bf16.xpose.msra.mxu0 0
        %1882 = vmatpush.bf16.xpose.msra.mxu0 0
        %1883 = vmatpush.bf16.xpose.msra.mxu0 %v1742
        %1884 = vmatmul.bf16.gmra.mxu0 %v1832
        %v1885 = vpop.f32.mrf.mxu0
        %v1886 = vadd.f32 0.0, %v1885
        %v1887 = vpop.f32.mrf.mxu0
        %v1888 = vadd.f32 0.0, %v1887
        %1889 = vdwg.mxu0
        %1890 = vmatpush.bf16.xpose.msra.mxu0 0
        %1891 = vmatpush.bf16.xpose.msra.mxu0 0
        %1892 = vmatpush.bf16.xpose.msra.mxu0 0
        %1893 = vmatpush.bf16.xpose.msra.mxu0 0
        %1894 = vmatpush.bf16.xpose.msra.mxu0 0
        %1895 = vmatpush.bf16.xpose.msra.mxu0 0
        %1896 = vmatpush.bf16.xpose.msra.mxu0 0
        %1897 = vmatpush.bf16.xpose.msra.mxu0 %v1759
        %1898 = vmatmul.bf16.gmra.mxu0 %v1832
        %v1899 = vpop.f32.mrf.mxu0
        %v1900 = vadd.f32 0.0, %v1899
        %v1901 = vpop.f32.mrf.mxu0
        %v1902 = vadd.f32 0.0, %v1901
        %1903 = vdwg.mxu0
        %1904 = vmatpush.bf16.xpose.msra.mxu0 0
        %1905 = vmatpush.bf16.xpose.msra.mxu0 0
        %1906 = vmatpush.bf16.xpose.msra.mxu0 0
        %1907 = vmatpush.bf16.xpose.msra.mxu0 0
        %1908 = vmatpush.bf16.xpose.msra.mxu0 0
        %1909 = vmatpush.bf16.xpose.msra.mxu0 0
        %1910 = vmatpush.bf16.xpose.msra.mxu0 0
        %1911 = vmatpush.bf16.xpose.msra.mxu0 %v1776
        %1912 = vmatmul.bf16.gmra.mxu0 %v1832
        %v1913 = vpop.f32.mrf.mxu0
        %v1914 = vadd.f32 0.0, %v1913
        %v1915 = vpop.f32.mrf.mxu0
        %v1916 = vadd.f32 0.0, %v1915
        %1917 = vdwg.mxu0
        %1918 = vmatpush.bf16.xpose.msra.mxu0 0
        %1919 = vmatpush.bf16.xpose.msra.mxu0 0
        %1920 = vmatpush.bf16.xpose.msra.mxu0 0
        %1921 = vmatpush.bf16.xpose.msra.mxu0 0
        %1922 = vmatpush.bf16.xpose.msra.mxu0 0
        %1923 = vmatpush.bf16.xpose.msra.mxu0 0
        %1924 = vmatpush.bf16.xpose.msra.mxu0 0
        %1925 = vmatpush.bf16.xpose.msra.mxu0 %v1793
        %1926 = vmatmul.bf16.gmra.mxu0 %v1832
        %v1927 = vpop.f32.mrf.mxu0
        %v1928 = vadd.f32 0.0, %v1927
        %v1929 = vpop.f32.mrf.mxu0
        %v1930 = vadd.f32 0.0, %v1929
        %1931 = vdwg.mxu0
        %1932 = vmatpush.bf16.xpose.msra.mxu0 0
        %1933 = vmatpush.bf16.xpose.msra.mxu0 0
        %1934 = vmatpush.bf16.xpose.msra.mxu0 0
        %1935 = vmatpush.bf16.xpose.msra.mxu0 0
        %1936 = vmatpush.bf16.xpose.msra.mxu0 0
        %1937 = vmatpush.bf16.xpose.msra.mxu0 0
        %1938 = vmatpush.bf16.xpose.msra.mxu0 0
        %1939 = vmatpush.bf16.xpose.msra.mxu0 %v1810
        %1940 = vmatmul.bf16.gmra.mxu0 %v1832
        %v1941 = vpop.f32.mrf.mxu0
        %v1942 = vadd.f32 0.0, %v1941
        %v1943 = vpop.f32.mrf.mxu0
        %v1944 = vadd.f32 0.0, %v1943
        %1945 = vdwg.mxu0
        %v1946 = vpack.c.bf16 %v1572, %v1572
        %v1947 = vpack.c.bf16 %v1588, %v1588
        %v1948 = vpack.c.bf16 %v1604, %v1604
        %v1949 = vpack.c.bf16 %v1620, %v1620
        %v1950 = vpack.c.bf16 %v1636, %v1636
        %v1951 = vpack.c.bf16 %v1649, %v1649
        %v1952 = vpack.c.bf16 %v1662, %v1662
        %v1953 = vpack.c.bf16 %v1675, %v1675
        %v1954 = vpack.c.bf16 %v1703, %v1703
        %v1955 = vpack.c.bf16 %v1705, %v1705
        %v1956 = vpack.c.bf16 %v1720, %v1720
        %v1957 = vpack.c.bf16 %v1722, %v1722
        %v1958 = vpack.c.bf16 %v1737, %v1737
        %v1959 = vpack.c.bf16 %v1739, %v1739
        %v1960 = vpack.c.bf16 %v1754, %v1754
        %v1961 = vpack.c.bf16 %v1756, %v1756
        %v1962 = vpack.c.bf16 %v1844, %v1844
        %v1963 = vpack.c.bf16 %v1846, %v1846
        %v1964 = vpack.c.bf16 %v1858, %v1858
        %v1965 = vpack.c.bf16 %v1860, %v1860
        %v1966 = vpack.c.bf16 %v1872, %v1872
        %v1967 = vpack.c.bf16 %v1874, %v1874
        %v1968 = vpack.c.bf16 %v1886, %v1886
        %v1969 = vpack.c.bf16 %v1888, %v1888
        %v1972 = vunpack.c.l.b16 %v1954
        %v1973 = vunpack.c.l.b16 %v1955
        %v1974 = vpack.c.b16 %v1973, %v1972
        %v1976 = vsel %vm910, %v1946, 0
        %v1979 = vsel %vm910, %v1974, 0
        %1981 = vmatpush.bf16.xpose.msra.mxu0 0
        %1982 = vmatpush.bf16.xpose.msra.mxu0 0
        %1983 = vmatpush.bf16.xpose.msra.mxu0 0
        %1984 = vmatpush.bf16.xpose.msra.mxu0 0
        %1985 = vmatpush.bf16.xpose.msra.mxu0 0
        %1986 = vmatpush.bf16.xpose.msra.mxu0 0
        %1987 = vmatpush.bf16.xpose.msra.mxu0 0
        %1988 = vmatpush.bf16.xpose.msra.mxu0 %v1979
        %1989 = vmatmul.bf16.gmra.mxu0 %v1976
        %v1990 = vpop.f32.mrf.mxu0
        %v1991 = vadd.f32 0.0, %v1990
        %v1992 = vpop.f32.mrf.mxu0
        %1993 = vdwg.mxu0
        %v1996 = vunpack.c.l.b16 %v1956
        %v1997 = vunpack.c.l.b16 %v1957
        %v1998 = vpack.c.b16 %v1997, %v1996
        %v2000 = vsel %vm910, %v1947, 0
        %v2003 = vsel %vm910, %v1998, 0
        %2005 = vmatpush.bf16.xpose.msra.mxu0 0
        %2006 = vmatpush.bf16.xpose.msra.mxu0 0
        %2007 = vmatpush.bf16.xpose.msra.mxu0 0
        %2008 = vmatpush.bf16.xpose.msra.mxu0 0
        %2009 = vmatpush.bf16.xpose.msra.mxu0 0
        %2010 = vmatpush.bf16.xpose.msra.mxu0 0
        %2011 = vmatpush.bf16.xpose.msra.mxu0 0
        %2012 = vmatpush.bf16.xpose.msra.mxu0 %v2003
        %2013 = vmatmul.bf16.gmra.mxu0 %v2000
        %v2014 = vpop.f32.mrf.mxu0
        %v2015 = vadd.f32 0.0, %v2014
        %v2016 = vpop.f32.mrf.mxu0
        %2017 = vdwg.mxu0
        %v2020 = vunpack.c.l.b16 %v1958
        %v2021 = vunpack.c.l.b16 %v1959
        %v2022 = vpack.c.b16 %v2021, %v2020
        %v2024 = vsel %vm910, %v1948, 0
        %v2027 = vsel %vm910, %v2022, 0
        %2029 = vmatpush.bf16.xpose.msra.mxu0 0
        %2030 = vmatpush.bf16.xpose.msra.mxu0 0
        %2031 = vmatpush.bf16.xpose.msra.mxu0 0
        %2032 = vmatpush.bf16.xpose.msra.mxu0 0
        %2033 = vmatpush.bf16.xpose.msra.mxu0 0
        %2034 = vmatpush.bf16.xpose.msra.mxu0 0
        %2035 = vmatpush.bf16.xpose.msra.mxu0 0
        %2036 = vmatpush.bf16.xpose.msra.mxu0 %v2027
        %2037 = vmatmul.bf16.gmra.mxu0 %v2024
        %v2038 = vpop.f32.mrf.mxu0
        %v2039 = vadd.f32 0.0, %v2038
        %v2040 = vpop.f32.mrf.mxu0
        %2041 = vdwg.mxu0
        %v2044 = vunpack.c.l.b16 %v1960
        %v2045 = vunpack.c.l.b16 %v1961
        %v2046 = vpack.c.b16 %v2045, %v2044
        %v2048 = vsel %vm910, %v1949, 0
        %v2051 = vsel %vm910, %v2046, 0
        %2053 = vmatpush.bf16.xpose.msra.mxu0 0
        %2054 = vmatpush.bf16.xpose.msra.mxu0 0
        %2055 = vmatpush.bf16.xpose.msra.mxu0 0
        %2056 = vmatpush.bf16.xpose.msra.mxu0 0
        %2057 = vmatpush.bf16.xpose.msra.mxu0 0
        %2058 = vmatpush.bf16.xpose.msra.mxu0 0
        %2059 = vmatpush.bf16.xpose.msra.mxu0 0
        %2060 = vmatpush.bf16.xpose.msra.mxu0 %v2051
        %2061 = vmatmul.bf16.gmra.mxu0 %v2048
        %v2062 = vpop.f32.mrf.mxu0
        %v2063 = vadd.f32 0.0, %v2062
        %v2064 = vpop.f32.mrf.mxu0
        %2065 = vdwg.mxu0
        %v2068 = vunpack.c.l.b16 %v1962
        %v2069 = vunpack.c.l.b16 %v1963
        %v2070 = vpack.c.b16 %v2069, %v2068
        %v2072 = vsel %vm910, %v1950, 0
        %v2075 = vsel %vm910, %v2070, 0
        %2077 = vmatpush.bf16.xpose.msra.mxu0 0
        %2078 = vmatpush.bf16.xpose.msra.mxu0 0
        %2079 = vmatpush.bf16.xpose.msra.mxu0 0
        %2080 = vmatpush.bf16.xpose.msra.mxu0 0
        %2081 = vmatpush.bf16.xpose.msra.mxu0 0
        %2082 = vmatpush.bf16.xpose.msra.mxu0 0
        %2083 = vmatpush.bf16.xpose.msra.mxu0 0
        %2084 = vmatpush.bf16.xpose.msra.mxu0 %v2075
        %2085 = vmatmul.bf16.gmra.mxu0 %v2072
        %v2086 = vpop.f32.mrf.mxu0
        %v2087 = vadd.f32 0.0, %v2086
        %v2088 = vpop.f32.mrf.mxu0
        %2089 = vdwg.mxu0
        %v2092 = vunpack.c.l.b16 %v1964
        %v2093 = vunpack.c.l.b16 %v1965
        %v2094 = vpack.c.b16 %v2093, %v2092
        %v2096 = vsel %vm910, %v1951, 0
        %v2099 = vsel %vm910, %v2094, 0
        %2101 = vmatpush.bf16.xpose.msra.mxu0 0
        %2102 = vmatpush.bf16.xpose.msra.mxu0 0
        %2103 = vmatpush.bf16.xpose.msra.mxu0 0
        %2104 = vmatpush.bf16.xpose.msra.mxu0 0
        %2105 = vmatpush.bf16.xpose.msra.mxu0 0
        %2106 = vmatpush.bf16.xpose.msra.mxu0 0
        %2107 = vmatpush.bf16.xpose.msra.mxu0 0
        %2108 = vmatpush.bf16.xpose.msra.mxu0 %v2099
        %2109 = vmatmul.bf16.gmra.mxu0 %v2096
        %v2110 = vpop.f32.mrf.mxu0
        %v2111 = vadd.f32 0.0, %v2110
        %v2112 = vpop.f32.mrf.mxu0
        %2113 = vdwg.mxu0
        %v2116 = vunpack.c.l.b16 %v1966
        %v2117 = vunpack.c.l.b16 %v1967
        %v2118 = vpack.c.b16 %v2117, %v2116
        %v2120 = vsel %vm910, %v1952, 0
        %v2123 = vsel %vm910, %v2118, 0
        %2125 = vmatpush.bf16.xpose.msra.mxu0 0
        %2126 = vmatpush.bf16.xpose.msra.mxu0 0
        %2127 = vmatpush.bf16.xpose.msra.mxu0 0
        %2128 = vmatpush.bf16.xpose.msra.mxu0 0
        %2129 = vmatpush.bf16.xpose.msra.mxu0 0
        %2130 = vmatpush.bf16.xpose.msra.mxu0 0
        %2131 = vmatpush.bf16.xpose.msra.mxu0 0
        %2132 = vmatpush.bf16.xpose.msra.mxu0 %v2123
        %2133 = vmatmul.bf16.gmra.mxu0 %v2120
        %v2134 = vpop.f32.mrf.mxu0
        %v2135 = vadd.f32 0.0, %v2134
        %v2136 = vpop.f32.mrf.mxu0
        %2137 = vdwg.mxu0
        %v2140 = vunpack.c.l.b16 %v1968
        %v2141 = vunpack.c.l.b16 %v1969
        %v2142 = vpack.c.b16 %v2141, %v2140
        %v2144 = vsel %vm910, %v1953, 0
        %v2147 = vsel %vm910, %v2142, 0
        %2149 = vmatpush.bf16.xpose.msra.mxu0 0
        %2150 = vmatpush.bf16.xpose.msra.mxu0 0
        %2151 = vmatpush.bf16.xpose.msra.mxu0 0
        %2152 = vmatpush.bf16.xpose.msra.mxu0 0
        %2153 = vmatpush.bf16.xpose.msra.mxu0 0
        %2154 = vmatpush.bf16.xpose.msra.mxu0 0
        %2155 = vmatpush.bf16.xpose.msra.mxu0 0
        %2156 = vmatpush.bf16.xpose.msra.mxu0 %v2147
        %2157 = vmatmul.bf16.gmra.mxu0 %v2144
        %v2158 = vpop.f32.mrf.mxu0
        %v2159 = vadd.f32 0.0, %v2158
        %v2160 = vpop.f32.mrf.mxu0
        %2161 = vdwg.mxu0
        %v2162 = vmul.f32 %v1991, 0.35355338
        %v2163 = vmul.f32 %v2015, 0.35355338
        %v2164 = vmul.f32 %v2039, 0.35355338
        %v2165 = vmul.f32 %v2063, 0.35355338
        %v2166 = vmul.f32 %v2087, 0.35355338
        %v2167 = vmul.f32 %v2111, 0.35355338
        %v2168 = vmul.f32 %v2135, 0.35355338
        %v2169 = vmul.f32 %v2159, 0.35355338
        %v2170 = vadd.f32 %v2162, %v1552
        %v2171 = vadd.f32 %v2163, %v1552
        %v2172 = vadd.f32 %v2164, %v1552
        %v2173 = vadd.f32 %v2165, %v1552
        %v2174 = vadd.f32 %v2166, %v1553
        %v2175 = vadd.f32 %v2167, %v1553
        %v2176 = vadd.f32 %v2168, %v1553
        %v2177 = vadd.f32 %v2169, %v1553
        %vm2178 = vcmask 80896
        %v2179 = vsel %vm2178, %v2170, -inf
        %2180 = vmax.xlane.f32.xlu0 %v2179
        %v2181 = vpop.xlane.xlu0 %2180
        %v2182 = vsel %vm2178, %v2171, -inf
        %2183 = vmax.xlane.f32.xlu0 %v2182
        %v2184 = vpop.xlane.xlu0 %2183
        %v2185 = vsel %vm2178, %v2172, -inf
        %2186 = vmax.xlane.f32.xlu0 %v2185
        %v2187 = vpop.xlane.xlu0 %2186
        %v2188 = vsel %vm2178, %v2173, -inf
        %2189 = vmax.xlane.f32.xlu0 %v2188
        %v2190 = vpop.xlane.xlu0 %2189
        %v2191 = vsel %vm2178, %v2174, -inf
        %2192 = vmax.xlane.f32.xlu0 %v2191
        %v2193 = vpop.xlane.xlu0 %2192
        %v2194 = vsel %vm2178, %v2175, -inf
        %2195 = vmax.xlane.f32.xlu0 %v2194
        %v2196 = vpop.xlane.xlu0 %2195
        %v2197 = vsel %vm2178, %v2176, -inf
        %2198 = vmax.xlane.f32.xlu0 %v2197
        %v2199 = vpop.xlane.xlu0 %2198
        %v2200 = vsel %vm2178, %v2177, -inf
        %2201 = vmax.xlane.f32.xlu0 %v2200
        %v2202 = vpop.xlane.xlu0 %2201
        %v2203 = vsub.f32 %v2170, %v2181
        %v2204 = vsub.f32 %v2171, %v2184
        %v2205 = vsub.f32 %v2172, %v2187
        %v2206 = vsub.f32 %v2173, %v2190
        %v2207 = vsub.f32 %v2174, %v2193
        %v2208 = vsub.f32 %v2175, %v2196
        %v2209 = vsub.f32 %v2176, %v2199
        %v2210 = vsub.f32 %v2177, %v2202
        %v2211 = vmul.f32 %v2203, 1.442695
        %v2212 = vpow.pop %v2211
        %v2213 = vmul.f32 %v2204, 1.442695
        %v2214 = vpow.pop %v2213
        %v2215 = vmul.f32 %v2205, 1.442695
        %v2216 = vpow.pop %v2215
        %v2217 = vmul.f32 %v2206, 1.442695
        %v2218 = vpow.pop %v2217
        %v2219 = vmul.f32 %v2207, 1.442695
        %v2220 = vpow.pop %v2219
        %v2221 = vmul.f32 %v2208, 1.442695
        %v2222 = vpow.pop %v2221
        %v2223 = vmul.f32 %v2209, 1.442695
        %v2224 = vpow.pop %v2223
        %v2225 = vmul.f32 %v2210, 1.442695
        %v2226 = vpow.pop %v2225
        %v2227 = vsel %vm2178, %v2212, 0.0
        %2228 = vadd.xlane.f32.xlu0 %v2227
        %v2229 = vpop.xlane.xlu0 %2228
        %v2230 = vsel %vm2178, %v2214, 0.0
        %2231 = vadd.xlane.f32.xlu0 %v2230
        %v2232 = vpop.xlane.xlu0 %2231
        %v2233 = vsel %vm2178, %v2216, 0.0
        %2234 = vadd.xlane.f32.xlu0 %v2233
        %v2235 = vpop.xlane.xlu0 %2234
        %v2236 = vsel %vm2178, %v2218, 0.0
        %2237 = vadd.xlane.f32.xlu0 %v2236
        %v2238 = vpop.xlane.xlu0 %2237
        %v2239 = vsel %vm2178, %v2220, 0.0
        %2240 = vadd.xlane.f32.xlu0 %v2239
        %v2241 = vpop.xlane.xlu0 %2240
        %v2242 = vsel %vm2178, %v2222, 0.0
        %2243 = vadd.xlane.f32.xlu0 %v2242
        %v2244 = vpop.xlane.xlu0 %2243
        %v2245 = vsel %vm2178, %v2224, 0.0
        %2246 = vadd.xlane.f32.xlu0 %v2245
        %v2247 = vpop.xlane.xlu0 %2246
        %v2248 = vsel %vm2178, %v2226, 0.0
        %2249 = vadd.xlane.f32.xlu0 %v2248
        %v2250 = vpop.xlane.xlu0 %2249
        %v2251 = vrcp.pop %v2229
        %v2252 = vrcp.pop %v2232
        %v2253 = vrcp.pop %v2235
        %v2254 = vrcp.pop %v2238
        %v2255 = vrcp.pop %v2241
        %v2256 = vrcp.pop %v2244
        %v2257 = vrcp.pop %v2247
        %v2258 = vrcp.pop %v2250
        %v2259 = vmul.f32 %v2212, %v2251
        %v2260 = vmul.f32 %v2214, %v2252
        %v2261 = vmul.f32 %v2216, %v2253
        %v2262 = vmul.f32 %v2218, %v2254
        %v2263 = vmul.f32 %v2220, %v2255
        %v2264 = vmul.f32 %v2222, %v2256
        %v2265 = vmul.f32 %v2224, %v2257
        %v2266 = vmul.f32 %v2226, %v2258
        %v2267 = vpack.c.bf16 %v2259, %v2259
        %v2268 = vpack.c.bf16 %v2260, %v2260
        %v2269 = vpack.c.bf16 %v2261, %v2261
        %v2270 = vpack.c.bf16 %v2262, %v2262
        %v2271 = vpack.c.bf16 %v2263, %v2263
        %v2272 = vpack.c.bf16 %v2264, %v2264
        %v2273 = vpack.c.bf16 %v2265, %v2265
        %v2274 = vpack.c.bf16 %v2266, %v2266
        %v2275 = vpack.c.bf16 %v1771, %v1771
        %v2276 = vpack.c.bf16 %v1773, %v1773
        %v2277 = vpack.c.bf16 %v1788, %v1788
        %v2278 = vpack.c.bf16 %v1790, %v1790
        %v2279 = vpack.c.bf16 %v1805, %v1805
        %v2280 = vpack.c.bf16 %v1807, %v1807
        %v2281 = vpack.c.bf16 %v1822, %v1822
        %v2282 = vpack.c.bf16 %v1824, %v1824
        %v2283 = vpack.c.bf16 %v1900, %v1900
        %v2284 = vpack.c.bf16 %v1902, %v1902
        %v2285 = vpack.c.bf16 %v1914, %v1914
        %v2286 = vpack.c.bf16 %v1916, %v1916
        %v2287 = vpack.c.bf16 %v1928, %v1928
        %v2288 = vpack.c.bf16 %v1930, %v1930
        %v2289 = vpack.c.bf16 %v1942, %v1942
        %v2290 = vpack.c.bf16 %v1944, %v1944
        %v2293 = vunpack.c.l.b16 %v2275
        %v2294 = vunpack.c.l.b16 %v2276
        %v2295 = vpack.c.b16 %v2294, %v2293
        %v2297 = vsel %vm2178, %v2267, 0
        %vm2299 = vcmask 1044480
        %v2301 = vsel %vm2299, %v2295, 0
        %2303 = vmatpush.bf16.msra.mxu0 0
        %2304 = vmatpush.bf16.msra.mxu0 0
        %2305 = vmatpush.bf16.msra.mxu0 0
        %2306 = vmatpush.bf16.msra.mxu0 0
        %2307 = vmatpush.bf16.msra.mxu0 0
        %2308 = vmatpush.bf16.msra.mxu0 0
        %2309 = vmatpush.bf16.msra.mxu0 0
        %2310 = vmatpush.bf16.msra.mxu0 %v2301
        %2311 = vmatmul.bf16.gmra.mxu0 %v2297
        %v2312 = vpop.f32.mrf.mxu0
        %v2313 = vadd.f32 0.0, %v2312
        %v2314 = vpop.f32.mrf.mxu0
        %2315 = vdwg.mxu0
        %v2318 = vunpack.c.l.b16 %v2277
        %v2319 = vunpack.c.l.b16 %v2278
        %v2320 = vpack.c.b16 %v2319, %v2318
        %v2322 = vsel %vm2178, %v2268, 0
        %v2325 = vsel %vm2299, %v2320, 0
        %2327 = vmatpush.bf16.msra.mxu0 0
        %2328 = vmatpush.bf16.msra.mxu0 0
        %2329 = vmatpush.bf16.msra.mxu0 0
        %2330 = vmatpush.bf16.msra.mxu0 0
        %2331 = vmatpush.bf16.msra.mxu0 0
        %2332 = vmatpush.bf16.msra.mxu0 0
        %2333 = vmatpush.bf16.msra.mxu0 0
        %2334 = vmatpush.bf16.msra.mxu0 %v2325
        %2335 = vmatmul.bf16.gmra.mxu0 %v2322
        %v2336 = vpop.f32.mrf.mxu0
        %v2337 = vadd.f32 0.0, %v2336
        %v2338 = vpop.f32.mrf.mxu0
        %2339 = vdwg.mxu0
        %v2342 = vunpack.c.l.b16 %v2279
        %v2343 = vunpack.c.l.b16 %v2280
        %v2344 = vpack.c.b16 %v2343, %v2342
        %v2346 = vsel %vm2178, %v2269, 0
        %v2349 = vsel %vm2299, %v2344, 0
        %2351 = vmatpush.bf16.msra.mxu0 0
        %2352 = vmatpush.bf16.msra.mxu0 0
        %2353 = vmatpush.bf16.msra.mxu0 0
        %2354 = vmatpush.bf16.msra.mxu0 0
        %2355 = vmatpush.bf16.msra.mxu0 0
        %2356 = vmatpush.bf16.msra.mxu0 0
        %2357 = vmatpush.bf16.msra.mxu0 0
        %2358 = vmatpush.bf16.msra.mxu0 %v2349
        %2359 = vmatmul.bf16.gmra.mxu0 %v2346
        %v2360 = vpop.f32.mrf.mxu0
        %v2361 = vadd.f32 0.0, %v2360
        %v2362 = vpop.f32.mrf.mxu0
        %2363 = vdwg.mxu0
        %v2366 = vunpack.c.l.b16 %v2281
        %v2367 = vunpack.c.l.b16 %v2282
        %v2368 = vpack.c.b16 %v2367, %v2366
        %v2370 = vsel %vm2178, %v2270, 0
        %v2373 = vsel %vm2299, %v2368, 0
        %2375 = vmatpush.bf16.msra.mxu0 0
        %2376 = vmatpush.bf16.msra.mxu0 0
        %2377 = vmatpush.bf16.msra.mxu0 0
        %2378 = vmatpush.bf16.msra.mxu0 0
        %2379 = vmatpush.bf16.msra.mxu0 0
        %2380 = vmatpush.bf16.msra.mxu0 0
        %2381 = vmatpush.bf16.msra.mxu0 0
        %2382 = vmatpush.bf16.msra.mxu0 %v2373
        %2383 = vmatmul.bf16.gmra.mxu0 %v2370
        %v2384 = vpop.f32.mrf.mxu0
        %v2385 = vadd.f32 0.0, %v2384
        %v2386 = vpop.f32.mrf.mxu0
        %2387 = vdwg.mxu0
        %v2390 = vunpack.c.l.b16 %v2283
        %v2391 = vunpack.c.l.b16 %v2284
        %v2392 = vpack.c.b16 %v2391, %v2390
        %v2394 = vsel %vm2178, %v2271, 0
        %v2397 = vsel %vm2299, %v2392, 0
        %2399 = vmatpush.bf16.msra.mxu0 0
        %2400 = vmatpush.bf16.msra.mxu0 0
        %2401 = vmatpush.bf16.msra.mxu0 0
        %2402 = vmatpush.bf16.msra.mxu0 0
        %2403 = vmatpush.bf16.msra.mxu0 0
        %2404 = vmatpush.bf16.msra.mxu0 0
        %2405 = vmatpush.bf16.msra.mxu0 0
        %2406 = vmatpush.bf16.msra.mxu0 %v2397
        %2407 = vmatmul.bf16.gmra.mxu0 %v2394
        %v2408 = vpop.f32.mrf.mxu0
        %v2409 = vadd.f32 0.0, %v2408
        %v2410 = vpop.f32.mrf.mxu0
        %2411 = vdwg.mxu0
        %v2414 = vunpack.c.l.b16 %v2285
        %v2415 = vunpack.c.l.b16 %v2286
        %v2416 = vpack.c.b16 %v2415, %v2414
        %v2418 = vsel %vm2178, %v2272, 0
        %v2421 = vsel %vm2299, %v2416, 0
        %2423 = vmatpush.bf16.msra.mxu0 0
        %2424 = vmatpush.bf16.msra.mxu0 0
        %2425 = vmatpush.bf16.msra.mxu0 0
        %2426 = vmatpush.bf16.msra.mxu0 0
        %2427 = vmatpush.bf16.msra.mxu0 0
        %2428 = vmatpush.bf16.msra.mxu0 0
        %2429 = vmatpush.bf16.msra.mxu0 0
        %2430 = vmatpush.bf16.msra.mxu0 %v2421
        %2431 = vmatmul.bf16.gmra.mxu0 %v2418
        %v2432 = vpop.f32.mrf.mxu0
        %v2433 = vadd.f32 0.0, %v2432
        %v2434 = vpop.f32.mrf.mxu0
        %2435 = vdwg.mxu0
        %v2438 = vunpack.c.l.b16 %v2287
        %v2439 = vunpack.c.l.b16 %v2288
        %v2440 = vpack.c.b16 %v2439, %v2438
        %v2442 = vsel %vm2178, %v2273, 0
        %v2445 = vsel %vm2299, %v2440, 0
        %2447 = vmatpush.bf16.msra.mxu0 0
        %2448 = vmatpush.bf16.msra.mxu0 0
        %2449 = vmatpush.bf16.msra.mxu0 0
        %2450 = vmatpush.bf16.msra.mxu0 0
        %2451 = vmatpush.bf16.msra.mxu0 0
        %2452 = vmatpush.bf16.msra.mxu0 0
        %2453 = vmatpush.bf16.msra.mxu0 0
        %2454 = vmatpush.bf16.msra.mxu0 %v2445
        %2455 = vmatmul.bf16.gmra.mxu0 %v2442
        %v2456 = vpop.f32.mrf.mxu0
        %v2457 = vadd.f32 0.0, %v2456
        %v2458 = vpop.f32.mrf.mxu0
        %2459 = vdwg.mxu0
        %v2462 = vunpack.c.l.b16 %v2289
        %v2463 = vunpack.c.l.b16 %v2290
        %v2464 = vpack.c.b16 %v2463, %v2462
        %v2466 = vsel %vm2178, %v2274, 0
        %v2469 = vsel %vm2299, %v2464, 0
        %2471 = vmatpush.bf16.msra.mxu0 0
        %2472 = vmatpush.bf16.msra.mxu0 0
        %2473 = vmatpush.bf16.msra.mxu0 0
        %2474 = vmatpush.bf16.msra.mxu0 0
        %2475 = vmatpush.bf16.msra.mxu0 0
        %2476 = vmatpush.bf16.msra.mxu0 0
        %2477 = vmatpush.bf16.msra.mxu0 0
        %2478 = vmatpush.bf16.msra.mxu0 %v2469
        %2479 = vmatmul.bf16.gmra.mxu0 %v2466
        %v2480 = vpop.f32.mrf.mxu0
        %v2481 = vadd.f32 0.0, %v2480
        %v2482 = vpop.f32.mrf.mxu0
        %2483 = vdwg.mxu0
        %v2484 = vpack.c.bf16 %v2313, %v2313
        %v2485 = vpack.c.bf16 %v2337, %v2337
        %v2486 = vpack.c.bf16 %v2361, %v2361
        %v2487 = vpack.c.bf16 %v2385, %v2385
        %v2488 = vpack.c.bf16 %v2409, %v2409
        %v2489 = vpack.c.bf16 %v2433, %v2433
        %v2490 = vpack.c.bf16 %v2457, %v2457
        %v2491 = vpack.c.bf16 %v2481, %v2481
        %v2493 = vsel %vm910, %v2484, 0
        %v2496 = vsel %vm1186, %v531, 0
        %2498 = vmatpush.bf16.msra.mxu0 0
        %2499 = vmatpush.bf16.msra.mxu0 0
        %2500 = vmatpush.bf16.msra.mxu0 0
        %2501 = vmatpush.bf16.msra.mxu0 0
        %2502 = vmatpush.bf16.msra.mxu0 0
        %2503 = vmatpush.bf16.msra.mxu0 0
        %2504 = vmatpush.bf16.msra.mxu0 0
        %2505 = vmatpush.bf16.msra.mxu0 %v2496
        %2506 = vmatmul.bf16.gmra.mxu0 %v2493
        %v2507 = vpop.f32.mrf.mxu0
        %v2508 = vadd.f32 0.0, %v2507
        %v2509 = vpop.f32.mrf.mxu0
        %2510 = vdwg.mxu0
        %v2512 = vsel %vm910, %v2485, 0
        %v2515 = vsel %vm1186, %v532, 0
        %2517 = vmatpush.bf16.msra.mxu0 0
        %2518 = vmatpush.bf16.msra.mxu0 0
        %2519 = vmatpush.bf16.msra.mxu0 0
        %2520 = vmatpush.bf16.msra.mxu0 0
        %2521 = vmatpush.bf16.msra.mxu0 0
        %2522 = vmatpush.bf16.msra.mxu0 0
        %2523 = vmatpush.bf16.msra.mxu0 0
        %2524 = vmatpush.bf16.msra.mxu0 %v2515
        %2525 = vmatmul.bf16.gmra.mxu0 %v2512
        %v2526 = vpop.f32.mrf.mxu0
        %v2527 = vadd.f32 0.0, %v2526
        %v2528 = vpop.f32.mrf.mxu0
        %2529 = vdwg.mxu0
        %v2531 = vsel %vm910, %v2486, 0
        %v2534 = vsel %vm1186, %v533, 0
        %2536 = vmatpush.bf16.msra.mxu0 0
        %2537 = vmatpush.bf16.msra.mxu0 0
        %2538 = vmatpush.bf16.msra.mxu0 0
        %2539 = vmatpush.bf16.msra.mxu0 0
        %2540 = vmatpush.bf16.msra.mxu0 0
        %2541 = vmatpush.bf16.msra.mxu0 0
        %2542 = vmatpush.bf16.msra.mxu0 0
        %2543 = vmatpush.bf16.msra.mxu0 %v2534
        %2544 = vmatmul.bf16.gmra.mxu0 %v2531
        %v2545 = vpop.f32.mrf.mxu0
        %v2546 = vadd.f32 0.0, %v2545
        %v2547 = vpop.f32.mrf.mxu0
        %2548 = vdwg.mxu0
        %v2550 = vsel %vm910, %v2487, 0
        %v2553 = vsel %vm1186, %v534, 0
        %2555 = vmatpush.bf16.msra.mxu0 0
        %2556 = vmatpush.bf16.msra.mxu0 0
        %2557 = vmatpush.bf16.msra.mxu0 0
        %2558 = vmatpush.bf16.msra.mxu0 0
        %2559 = vmatpush.bf16.msra.mxu0 0
        %2560 = vmatpush.bf16.msra.mxu0 0
        %2561 = vmatpush.bf16.msra.mxu0 0
        %2562 = vmatpush.bf16.msra.mxu0 %v2553
        %2563 = vmatmul.bf16.gmra.mxu0 %v2550
        %v2564 = vpop.f32.mrf.mxu0
        %v2565 = vadd.f32 0.0, %v2564
        %v2566 = vpop.f32.mrf.mxu0
        %2567 = vdwg.mxu0
        %v2569 = vsel %vm910, %v2488, 0
        %2571 = vmatpush.bf16.msra.mxu0 0
        %2572 = vmatpush.bf16.msra.mxu0 0
        %2573 = vmatpush.bf16.msra.mxu0 0
        %2574 = vmatpush.bf16.msra.mxu0 0
        %2575 = vmatpush.bf16.msra.mxu0 0
        %2576 = vmatpush.bf16.msra.mxu0 0
        %2577 = vmatpush.bf16.msra.mxu0 0
        %2578 = vmatpush.bf16.msra.mxu0 %v2496
        %2579 = vmatmul.bf16.gmra.mxu0 %v2569
        %v2580 = vpop.f32.mrf.mxu0
        %v2581 = vadd.f32 0.0, %v2580
        %v2582 = vpop.f32.mrf.mxu0
        %2583 = vdwg.mxu0
        %v2585 = vsel %vm910, %v2489, 0
        %2587 = vmatpush.bf16.msra.mxu0 0
        %2588 = vmatpush.bf16.msra.mxu0 0
        %2589 = vmatpush.bf16.msra.mxu0 0
        %2590 = vmatpush.bf16.msra.mxu0 0
        %2591 = vmatpush.bf16.msra.mxu0 0
        %2592 = vmatpush.bf16.msra.mxu0 0
        %2593 = vmatpush.bf16.msra.mxu0 0
        %2594 = vmatpush.bf16.msra.mxu0 %v2515
        %2595 = vmatmul.bf16.gmra.mxu0 %v2585
        %v2596 = vpop.f32.mrf.mxu0
        %v2597 = vadd.f32 0.0, %v2596
        %v2598 = vpop.f32.mrf.mxu0
        %2599 = vdwg.mxu0
        %v2601 = vsel %vm910, %v2490, 0
        %2603 = vmatpush.bf16.msra.mxu0 0
        %2604 = vmatpush.bf16.msra.mxu0 0
        %2605 = vmatpush.bf16.msra.mxu0 0
        %2606 = vmatpush.bf16.msra.mxu0 0
        %2607 = vmatpush.bf16.msra.mxu0 0
        %2608 = vmatpush.bf16.msra.mxu0 0
        %2609 = vmatpush.bf16.msra.mxu0 0
        %2610 = vmatpush.bf16.msra.mxu0 %v2534
        %2611 = vmatmul.bf16.gmra.mxu0 %v2601
        %v2612 = vpop.f32.mrf.mxu0
        %v2613 = vadd.f32 0.0, %v2612
        %v2614 = vpop.f32.mrf.mxu0
        %2615 = vdwg.mxu0
        %v2617 = vsel %vm910, %v2491, 0
        %2619 = vmatpush.bf16.msra.mxu0 0
        %2620 = vmatpush.bf16.msra.mxu0 0
        %2621 = vmatpush.bf16.msra.mxu0 0
        %2622 = vmatpush.bf16.msra.mxu0 0
        %2623 = vmatpush.bf16.msra.mxu0 0
        %2624 = vmatpush.bf16.msra.mxu0 0
        %2625 = vmatpush.bf16.msra.mxu0 0
        %2626 = vmatpush.bf16.msra.mxu0 %v2553
        %2627 = vmatmul.bf16.gmra.mxu0 %v2617
        %v2628 = vpop.f32.mrf.mxu0
        %v2629 = vadd.f32 0.0, %v2628
        %v2630 = vpop.f32.mrf.mxu0
        %2631 = vdwg.mxu0
        %v2632 = vadd.f32 %v2508, %v2527
        %v2633 = vadd.f32 %v2581, %v2597
        %v2634 = vadd.f32 %v2632, %v2546
        %v2635 = vadd.f32 %v2633, %v2613
        %v2636 = vadd.f32 %v2634, %v2565
        %v2637 = vadd.f32 %v2635, %v2629
        %v2638 = vperm.slane %v500, 1
        %v2639 = vadd.f32 %v2636, %v2638
        %v2640 = vadd.f32 %v2637, %v2638
        %v2641 = vadd.f32 %v1550, %v2639
        %v2642 = vadd.f32 %v1551, %v2640
        %v2643 = vsel %vm539, %v2641, 0.0
        %2644 = vadd.xlane.f32.xlu0 %v2643
        %v2645 = vpop.xlane.xlu0 %2644
        %v2646 = vsel %vm539, %v2642, 0.0
        %2647 = vadd.xlane.f32.xlu0 %v2646
        %v2648 = vpop.xlane.xlu0 %2647
        %v2649 = vmul.f32 %v2645, %v1507
        %v2650 = vmul.f32 %v2648, %v1507
        %v2651 = vsub.f32 %v2641, %v2649
        %v2652 = vsub.f32 %v2642, %v2650
        %v2653 = vmul.f32 %v2651, %v2651
        %v2654 = vmul.f32 %v2652, %v2652
        %v2655 = vsel %vm539, %v2653, 0.0
        %2656 = vadd.xlane.f32.xlu0 %v2655
        %v2657 = vpop.xlane.xlu0 %2656
        %v2658 = vsel %vm539, %v2654, 0.0
        %2659 = vadd.xlane.f32.xlu0 %v2658
        %v2660 = vpop.xlane.xlu0 %2659
        %v2661 = vmul.f32 %v2657, %v1507
        %v2662 = vmul.f32 %v2660, %v1507
        %v2663 = vadd.f32 %v2661, 1e-05
        %v2664 = vadd.f32 %v2662, 1e-05
        %v2665 = vrsqrt.pop %v2663
        %v2666 = vmul.f32 %v2665, %v2663
        %v2667 = vmul.f32 %v2666, %v2665
        %v2668 = vmul.f32 0.5, %v2667
        %v2669 = vsub.f32 1.5, %v2668
        %v2670 = vmul.f32 %v2665, %v2669
        %vm2671 = vweird.f32 %v2663
        %vm2672 = vweird.f32 %v2665
        %vm2673 = vmor %vm2671, %vm2672
        %v2674 = vsel %vm2673, %v2665, %v2670
        %v2675 = vrsqrt.pop %v2664
        %v2676 = vmul.f32 %v2675, %v2664
        %v2677 = vmul.f32 %v2676, %v2675
        %v2678 = vmul.f32 0.5, %v2677
        %v2679 = vsub.f32 1.5, %v2678
        %v2680 = vmul.f32 %v2675, %v2679
        %vm2681 = vweird.f32 %v2664
        %vm2682 = vweird.f32 %v2675
        %vm2683 = vmor %vm2681, %vm2682
        %v2684 = vsel %vm2683, %v2675, %v2680
        %v2685 = vmul.f32 %v2651, %v2674
        %v2686 = vmul.f32 %v2652, %v2684
        %v2687 = vperm.slane %v500, 5
        %v2688 = vmul.f32 %v2685, %v2687
        %v2689 = vmul.f32 %v2686, %v2687
        %v2690 = vperm.slane %v500, 6
        %v2691 = vadd.f32 %v2688, %v2690
        %v2692 = vadd.f32 %v2689, %v2690
        %v2693 = vld [vmem:[%s470] sm:$0xf]
        %v2694 = vld [vmem:[%s470 + $0x4] sm:$0xf]
        %v2695 = vld [vmem:[%s470 + $0x8] sm:$0xf]
        %v2696 = vld [vmem:[%s470 + $0xc] sm:$0xf]
        %v2697 = vld [vmem:[%s475] sm:$0xf]
        %v2698 = vld [vmem:[%s475 + $0x4] sm:$0xf]
        %v2699 = vld [vmem:[%s475 + $0x8] sm:$0xf]
        %v2700 = vld [vmem:[%s475 + $0xc] sm:$0xf]
        %v2701 = vld [vmem:[%s475 + $0x10] sm:$0xf]
        %v2702 = vld [vmem:[%s475 + $0x14] sm:$0xf]
        %v2703 = vld [vmem:[%s475 + $0x18] sm:$0xf]
        %v2704 = vld [vmem:[%s475 + $0x1c] sm:$0xf]
        %v2705 = vpack.c.bf16 %v2691, %v2691
        %v2706 = vpack.c.bf16 %v2692, %v2692
        %v2708 = vperm.slane %v502, 0
        %v2714 = vunpack.c.l.b16 %v2693
        %v2715 = vunpack.c.l.b16 %v2694
        %v2716 = vunpack.c.l.b16 %v2695
        %v2717 = vunpack.c.l.b16 %v2696
        %v2718 = vpack.c.b16 %v2715, %v2714
        %v2719 = vpack.c.b16 %v2717, %v2716
        %v2723 = vsel %vm539, %v2705, 0
        %2725 = vmatpush.bf16.msra.mxu0 0
        %2726 = vmatpush.bf16.msra.mxu0 0
        %2727 = vmatpush.bf16.msra.mxu0 0
        %2728 = vmatpush.bf16.msra.mxu0 0
        %2729 = vmatpush.bf16.msra.mxu0 0
        %2730 = vmatpush.bf16.msra.mxu0 0
        %2731 = vmatpush.bf16.msra.mxu0 %v2719
        %2732 = vmatpush.bf16.msra.mxu0 %v2718
        %2733 = vmatmul.bf16.gmra.mxu0 %v2723
        %v2734 = vpop.f32.mrf.mxu0
        %v2735 = vadd.f32 %v2708, %v2734
        %v2736 = vpop.f32.mrf.mxu0
        %2737 = vdwg.mxu0
        %v2739 = vsel %vm539, %v2706, 0
        %2741 = vmatpush.bf16.msra.mxu0 0
        %2742 = vmatpush.bf16.msra.mxu0 0
        %2743 = vmatpush.bf16.msra.mxu0 0
        %2744 = vmatpush.bf16.msra.mxu0 0
        %2745 = vmatpush.bf16.msra.mxu0 0
        %2746 = vmatpush.bf16.msra.mxu0 0
        %2747 = vmatpush.bf16.msra.mxu0 %v2719
        %2748 = vmatpush.bf16.msra.mxu0 %v2718
        %2749 = vmatmul.bf16.gmra.mxu0 %v2739
        %v2750 = vpop.f32.mrf.mxu0
        %v2751 = vadd.f32 %v2708, %v2750
        %v2752 = vpop.f32.mrf.mxu0
        %2753 = vdwg.mxu0
        %v2754 = vmax.f32 %v2735, 0.0
        %v2755 = vmax.f32 %v2751, 0.0
        %v2756 = vpack.c.bf16 %v2754, %v2754
        %v2757 = vpack.c.bf16 %v2755, %v2755
        %v2758 = vperm.slane %v500, 2
        %v2767 = vunpack.c.l.b16 %v2697
        %v2768 = vunpack.c.l.b16 %v2698
        %v2769 = vunpack.c.l.b16 %v2699
        %v2770 = vunpack.c.l.b16 %v2700
        %v2771 = vunpack.c.l.b16 %v2701
        %v2772 = vunpack.c.l.b16 %v2702
        %v2773 = vunpack.c.l.b16 %v2703
        %v2774 = vunpack.c.l.b16 %v2704
        %v2775 = vpack.c.b16 %v2768, %v2767
        %v2776 = vpack.c.b16 %v2770, %v2769
        %v2777 = vpack.c.b16 %v2772, %v2771
        %v2778 = vpack.c.b16 %v2774, %v2773
        %vm2783 = vcmask 523264
        %v2785 = vsel %vm2783, %v2756, 0
        %2787 = vmatpush.bf16.msra.mxu0 0
        %2788 = vmatpush.bf16.msra.mxu0 0
        %2789 = vmatpush.bf16.msra.mxu0 0
        %2790 = vmatpush.bf16.msra.mxu0 0
        %2791 = vmatpush.bf16.msra.mxu0 %v2778
        %2792 = vmatpush.bf16.msra.mxu0 %v2777
        %2793 = vmatpush.bf16.msra.mxu0 %v2776
        %2794 = vmatpush.bf16.msra.mxu0 %v2775
        %2795 = vmatmul.bf16.gmra.mxu0 %v2785
        %v2796 = vpop.f32.mrf.mxu0
        %v2797 = vadd.f32 %v2758, %v2796
        %v2798 = vpop.f32.mrf.mxu0
        %2799 = vdwg.mxu0
        %v2801 = vsel %vm2783, %v2757, 0
        %2803 = vmatpush.bf16.msra.mxu0 0
        %2804 = vmatpush.bf16.msra.mxu0 0
        %2805 = vmatpush.bf16.msra.mxu0 0
        %2806 = vmatpush.bf16.msra.mxu0 0
        %2807 = vmatpush.bf16.msra.mxu0 %v2778
        %2808 = vmatpush.bf16.msra.mxu0 %v2777
        %2809 = vmatpush.bf16.msra.mxu0 %v2776
        %2810 = vmatpush.bf16.msra.mxu0 %v2775
        %2811 = vmatmul.bf16.gmra.mxu0 %v2801
        %v2812 = vpop.f32.mrf.mxu0
        %v2813 = vadd.f32 %v2758, %v2812
        %v2814 = vpop.f32.mrf.mxu0
        %2815 = vdwg.mxu0
        %v2816 = vadd.f32 %v2691, %v2797
        %v2817 = vadd.f32 %v2692, %v2813
        %v2818 = vsel %vm539, %v2816, 0.0
        %2819 = vadd.xlane.f32.xlu0 %v2818
        %v2820 = vpop.xlane.xlu0 %2819
        %v2821 = vsel %vm539, %v2817, 0.0
        %2822 = vadd.xlane.f32.xlu0 %v2821
        %v2823 = vpop.xlane.xlu0 %2822
        %v2824 = vmul.f32 %v2820, %v1507
        %v2825 = vmul.f32 %v2823, %v1507
        %v2826 = vsub.f32 %v2816, %v2824
        %v2827 = vsub.f32 %v2817, %v2825
        %v2828 = vmul.f32 %v2826, %v2826
        %v2829 = vmul.f32 %v2827, %v2827
        %v2830 = vsel %vm539, %v2828, 0.0
        %2831 = vadd.xlane.f32.xlu0 %v2830
        %v2832 = vpop.xlane.xlu0 %2831
        %v2833 = vsel %vm539, %v2829, 0.0
        %2834 = vadd.xlane.f32.xlu0 %v2833
        %v2835 = vpop.xlane.xlu0 %2834
        %v2836 = vmul.f32 %v2832, %v1507
        %v2837 = vmul.f32 %v2835, %v1507
        %v2838 = vadd.f32 %v2836, 1e-05
        %v2839 = vadd.f32 %v2837, 1e-05
        %v2840 = vrsqrt.pop %v2838
        %v2841 = vmul.f32 %v2840, %v2838
        %v2842 = vmul.f32 %v2841, %v2840
        %v2843 = vmul.f32 0.5, %v2842
        %v2844 = vsub.f32 1.5, %v2843
        %v2845 = vmul.f32 %v2840, %v2844
        %vm2846 = vweird.f32 %v2838
        %vm2847 = vweird.f32 %v2840
        %vm2848 = vmor %vm2846, %vm2847
        %v2849 = vsel %vm2848, %v2840, %v2845
        %v2850 = vrsqrt.pop %v2839
        %v2851 = vmul.f32 %v2850, %v2839
        %v2852 = vmul.f32 %v2851, %v2850
        %v2853 = vmul.f32 0.5, %v2852
        %v2854 = vsub.f32 1.5, %v2853
        %v2855 = vmul.f32 %v2850, %v2854
        %vm2856 = vweird.f32 %v2839
        %vm2857 = vweird.f32 %v2850
        %vm2858 = vmor %vm2856, %vm2857
        %v2859 = vsel %vm2858, %v2850, %v2855
        %v2860 = vmul.f32 %v2826, %v2849
        %v2861 = vmul.f32 %v2827, %v2859
        %v2862 = vperm.slane %v500, 7
        %v2863 = vmul.f32 %v2860, %v2862
        %v2864 = vmul.f32 %v2861, %v2862
        %v2865 = vperm.slane %v501, 0
        %v2866 = vadd.f32 %v2863, %v2865
        %v2867 = vadd.f32 %v2864, %v2865
        %2868 = vst.msk [vmem:[#allocation2] sm:$0xff] %vm539, %v2866
        %2869 = vst.msk [vmem:[#allocation2 + $0x8] sm:$0xff] %vm539, %v2867
        %2870 = vst.msk [vmem:[#allocation8] sm:$0xff] %vm539, %v2866
        %2871 = vst.msk [vmem:[#allocation8 + $0x8] sm:$0xff] %vm539, %v2867
        // Predicated region
        $region73: #{tpu_custom_call.1} parent=59 // pred_check
          %p2872 = pneg %p281
        $region74: #{tpu_custom_call.1} parent=59 // pred_check_branch
          %2874 = sbr.rel (%p2872) target = $region76
        $region75: #{tpu_custom_call.1} parent=59 // pred_region
          %2876 = vsyncadd [#allocation5], 0
          %s2877 = sshll.u32 [#allocation8], 4
          %s2878 = int_to_ptr.vmem [resolvable:$true] %s2877
          %s2879 = sshll.u32 %s10, 4
          %s2880 = int_to_ptr.hbm [resolvable:$true] %s2879
          %2885 = dma.vmem_to_hbm [thread:$0]  %s2878, 256, %s2880, [#allocation5], 128, 128, 8
        $region76: #{tpu_custom_call.1} parent=59 // pred_fallthru
          _
        // Predicated region
        $region77: #{tpu_custom_call.1} parent=59 // pred_check
          %p2886 = pneg %p281
        $region78: #{tpu_custom_call.1} parent=59 // pred_check_branch
          %2888 = sbr.rel (%p2886) target = $region80
        $region79: #{tpu_custom_call.1} parent=59 // pred_region
          %2890 = dma.done [#allocation5], 256
        $region80: #{tpu_custom_call.1} parent=59 // pred_fallthru
          _
      $region60: #{tpu_custom_call.1} parent=5 // pred_fallthru
        _
      %p2891 = scmp.le.s32.totalorder 2, %s23
      // Predicated region
      $region81: #{tpu_custom_call.1} parent=5 // pred_check
        %p2892 = pneg %p2891
      $region82: #{tpu_custom_call.1} parent=5 // pred_check_branch
        %2894 = sbr.rel (%p2892) target = $region84
      $region83: #{tpu_custom_call.1} parent=5 // pred_region
        %s2895 = ssub.s32 %s23, 2
      $region84: #{tpu_custom_call.1} parent=5 // pred_fallthru
        _
    $region6: #{tpu_custom_call.1} parent=1 // loop_footer
      %s27 = sadd.s32 1, %s23
    $region7: #{tpu_custom_call.1} parent=1 // loop_footer_branch
      %22 = sbr.rel target = $region3
    $region8: #{tpu_custom_call.1} parent=1 // loop_exit
      _
    %2896 = vsyncpa [#allocation4], 1
    %s2897 = scalar_lea.sflag [#allocation4], 1
    %2898 = vsyncpa %s2897, 1
    %2899 = vsyncpa [#allocation7], 1
    %s2900 = scalar_lea.sflag [#allocation7], 1
    %2901 = vsyncpa %s2900, 1
    %2902 = vsyncpa [#allocation5], 1
    %s2903 = scalar_lea.sflag [#allocation5], 1
    %2904 = vsyncpa %s2903, 1

</llo_original>
